<compile_context>
chip_gen: v5e
topology: v5e:2x2
jax: 0.10.0
libtpu: 0.0.40
codegen_flags: <defaults>
</compile_context>

<pallas_src>
import functools

import jax
import jax.numpy as jnp
from jax.experimental import pallas as pl
from jax.experimental.pallas import tpu as pltpu


# Fixed ordering of the pre-split weight/bias arguments passed to the kernel.
_WEIGHT_KEYS = (
    "w_ein_t", "b_ein", "w_eout_t", "b_eout", "b_iah", "b_oah",
    "w_in_r", "w_out_r", "w_hh_r", "b_i_r", "b_h_r",
    "w_in_u", "w_out_u", "w_hh_u", "b_i_u", "b_h_u",
    "w_in_c", "w_out_c", "w_hh_c", "b_i_c", "b_h_c",
)


def _gnn_kernel(a_in_ref, a_out_ref, h_ref, *refs,
                n_nodes, hidden_size, tb, step, compute_dtype):
    N, H, TB = n_nodes, hidden_size, tb
    M = TB * N
    cdt = compute_dtype

    out_ref = refs[-1]
    (w_ein_ref, b_ein_ref, w_eout_ref, b_eout_ref, b_iah_ref, b_oah_ref,
     w_in_r_ref, w_out_r_ref, w_hh_r_ref, b_i_r_ref, b_h_r_ref,
     w_in_u_ref, w_out_u_ref, w_hh_u_ref, b_i_u_ref, b_h_u_ref,
     w_in_c_ref, w_out_c_ref, w_hh_c_ref, b_i_c_ref, b_h_c_ref) = refs[:-1]

    # Adjacency halves for this batch block (pre-split in the wrapper, so no
    # lane-dimension slicing happens inside the kernel).
    a_in = a_in_ref[...].astype(cdt)                 # (TB, N, N)
    a_out = a_out_ref[...].astype(cdt)               # (TB, N, N)

    # Initial hidden, with batch folded into the matmul M dimension.
    h0 = h_ref[...].astype(jnp.float32).reshape(M, H)

    # Load weights once; pre-cast MXU operands to the compute dtype.
    w_ein = w_ein_ref[...].astype(cdt)
    w_eout = w_eout_ref[...].astype(cdt)
    w_in_r = w_in_r_ref[...].astype(cdt)
    w_out_r = w_out_r_ref[...].astype(cdt)
    w_hh_r = w_hh_r_ref[...].astype(cdt)
    w_in_u = w_in_u_ref[...].astype(cdt)
    w_out_u = w_out_u_ref[...].astype(cdt)
    w_hh_u = w_hh_u_ref[...].astype(cdt)
    w_in_c = w_in_c_ref[...].astype(cdt)
    w_out_c = w_out_c_ref[...].astype(cdt)
    w_hh_c = w_hh_c_ref[...].astype(cdt)

    b_ein = b_ein_ref[...]          # (1, H) f32 biases; gating stays f32.
    b_eout = b_eout_ref[...]
    b_iah = b_iah_ref[...]
    b_oah = b_oah_ref[...]
    b_i_r = b_i_r_ref[...]
    b_h_r = b_h_r_ref[...]
    b_i_u = b_i_u_ref[...]
    b_h_u = b_h_u_ref[...]
    b_i_c = b_i_c_ref[...]
    b_h_c = b_h_c_ref[...]

    def mm(x, w):
        # MXU matmul in compute dtype with f32 accumulation.
        return jnp.dot(x.astype(cdt), w, preferred_element_type=jnp.float32)

    def cell(_, h):                                   # h: (M, H) f32
        # Edge linears (shared weights -> one big-M matmul each).
        edge_in = mm(h, w_ein) + b_ein                # (M, H)
        edge_out = mm(h, w_eout) + b_eout             # (M, H)

        # Adjacency aggregation: per-graph batched matmul.
        ein3 = edge_in.reshape(TB, N, H).astype(cdt)
        eout3 = edge_out.reshape(TB, N, H).astype(cdt)
        input_in = jnp.einsum("bij,bjh->bih", a_in, ein3,
                              preferred_element_type=jnp.float32).reshape(M, H) + b_iah
        input_out = jnp.einsum("bij,bjh->bih", a_out, eout3,
                               preferred_element_type=jnp.float32).reshape(M, H) + b_oah

        # Gate projections, pre-split per gate / per input half (no concat,
        # no lane-dim gate slicing).
        i_r = mm(input_in, w_in_r) + mm(input_out, w_out_r) + b_i_r
        i_u = mm(input_in, w_in_u) + mm(input_out, w_out_u) + b_i_u
        i_c = mm(input_in, w_in_c) + mm(input_out, w_out_c) + b_i_c
        h_r = mm(h, w_hh_r) + b_h_r
        h_u = mm(h, w_hh_u) + b_h_u
        h_c = mm(h, w_hh_c) + b_h_c

        # GRU-style gating in f32 (VPU/EUP path).
        updategate = jax.nn.sigmoid(i_u + h_u)
        resetgate = jax.nn.sigmoid(i_r + h_r)
        candidate = jnp.tanh(i_c + resetgate * h_c)
        return (h - candidate) * updategate + candidate

    h_fin = jax.lax.fori_loop(0, step, cell, h0)
    out_ref[...] = h_fin.reshape(TB, N, H).astype(out_ref.dtype)


def _pick_tb(B, N, target_rows=256):
    """Largest batch tile TB that divides B, keeps TB*N <= target_rows, and
    (when possible) leaves at least 2 grid steps so both v7x TensorCores work."""
    divisors = [d for d in range(1, B + 1) if B % d == 0]
    cands = [d for d in divisors if B // d >= 2] or divisors
    good = [d for d in cands if d * N <= target_rows]
    return max(good) if good else min(cands)


def gnn_forward_pallas(A, hidden, kparams, *, step=1, tb=None,
                       compute_dtype=jnp.float32):
    """Fused multi-step GNN forward. A: (B, N, 2N), hidden: (B, N, H)."""
    B, N, H = hidden.shape
    assert A.shape == (B, N, 2 * N)

    # Wrapper-side layout plumbing: split A so the kernel never slices lanes.
    a_in = A[:, :, :N]
    a_out = A[:, :, N:2 * N]

    if tb is None:
        tb = _pick_tb(B, N)
    assert B % tb == 0, (B, tb)
    grid = (B // tb,)

    kernel = functools.partial(
        _gnn_kernel, n_nodes=N, hidden_size=H, tb=tb, step=step,
        compute_dtype=compute_dtype)

    batch3 = lambda g: (g, 0, 0)
    rep2 = lambda g: (0, 0)

    weight_args = [kparams[k] for k in _WEIGHT_KEYS]
    weight_specs = [pl.BlockSpec(tuple(kparams[k].shape), rep2) for k in _WEIGHT_KEYS]

    # Advisory cost estimate (per review): 11 (M,H)x(H,H) matmuls + 2 (N,N)x(N,H)
    # adjacency matmuls per graph per step; 3 transcendentals per hidden element.
    itemsize = jnp.dtype(hidden.dtype).itemsize
    flops = int(step) * B * (11 * 2 * N * H * H + 2 * 2 * N * N * H)
    transcendentals = int(step) * B * N * H * 3
    bytes_accessed = int(
        (a_in.size + a_out.size + 2 * hidden.size) * itemsize
        + sum(int(w.size) * jnp.dtype(w.dtype).itemsize for w in weight_args) * grid[0])

    out = pl.pallas_call(
        kernel,
        out_shape=jax.ShapeDtypeStruct((B, N, H), hidden.dtype),
        grid_spec=pltpu.PrefetchScalarGridSpec(
            num_scalar_prefetch=0,
            grid=grid,
            in_specs=[
                pl.BlockSpec((tb, N, N), batch3),   # A_in
                pl.BlockSpec((tb, N, N), batch3),   # A_out
                pl.BlockSpec((tb, N, H), batch3),   # hidden
            ] + weight_specs,
            out_specs=pl.BlockSpec((tb, N, H), batch3),
        ),
        compiler_params=pltpu.CompilerParams(
            dimension_semantics=("parallel",)),
        cost_estimate=pl.CostEstimate(
            flops=flops, transcendentals=transcendentals,
            bytes_accessed=bytes_accessed),
    )(a_in, a_out, hidden, *weight_args)
    return out


# ------------------ parameter helpers (PyTorch layout <-> kernel layout) ------------------
def init_params(key, hidden_size):
    """Parameters in the original PyTorch layout."""
    H = hidden_size
    stdv = 1.0 / (H ** 0.5)
    ks = jax.random.split(key, 10)
    u = lambda k, shape: jax.random.uniform(k, shape, jnp.float32, -stdv, stdv)
    return {
        "w_ih": u(ks[0], (3 * H, 2 * H)),
        "w_hh": u(ks[1], (3 * H, H)),
        "b_ih": u(ks[2], (3 * H,)),
        "b_hh": u(ks[3], (3 * H,)),
        "b_iah": u(ks[4], (H,)),
        "b_oah": u(ks[5], (H,)),
        "w_edge_in": u(ks[6], (H, H)),    # nn.Linear weight (out, in)
        "b_edge_in": u(ks[7], (H,)),
        "w_edge_out": u(ks[8], (H, H)),
        "b_edge_out": u(ks[9], (H,)),
        # TODO(synk): linear_edge_f exists in __init__ but is unused in forward; omitted.
    }


def prepare_params(p):
    """Pre-transpose / pre-split PyTorch-layout params into the kernel layout so the
    kernel never slices or concatenates along the minor (lane) dimension."""
    H = p["w_hh"].shape[1]
    kp = {
        "w_ein_t": p["w_edge_in"].T,
        "b_ein": p["b_edge_in"].reshape(1, H),
        "w_eout_t": p["w_edge_out"].T,
        "b_eout": p["b_edge_out"].reshape(1, H),
        "b_iah": p["b_iah"].reshape(1, H),
        "b_oah": p["b_oah"].reshape(1, H),
    }
    for g, name in enumerate(("r", "u", "c")):        # torch chunk order: r, u, c
        rows = slice(g * H, (g + 1) * H)
        w_ih_g = p["w_ih"][rows]                      # (H, 2H)
        kp[f"w_in_{name}"] = w_ih_g[:, :H].T          # input_in  @ .
        kp[f"w_out_{name}"] = w_ih_g[:, H:].T         # input_out @ .
        kp[f"w_hh_{name}"] = p["w_hh"][rows].T        # hidden    @ .
        kp[f"b_i_{name}"] = p["b_ih"][rows].reshape(1, H)
        kp[f"b_h_{name}"] = p["b_hh"][rows].reshape(1, H)
    return kp


# ------------------ pure-JAX reference (mirrors the PyTorch code) ------------------
def gnn_ref(A, hidden, p, step):
    N = A.shape[1]
    for _ in range(step):
        edge_in = hidden @ p["w_edge_in"].T + p["b_edge_in"]
        edge_out = hidden @ p["w_edge_out"].T + p["b_edge_out"]
        input_in = jnp.matmul(A[:, :, :N], edge_in) + p["b_iah"]
        input_out = jnp.matmul(A[:, :, N:2 * N], edge_out) + p["b_oah"]
        inputs = jnp.concatenate([input_in, input_out], axis=2)
        gi = inputs @ p["w_ih"].T + p["b_ih"]
        gh = hidden @ p["w_hh"].T + p["b_hh"]
        i_r, i_u, i_c = jnp.split(gi, 3, axis=2)
        h_r, h_u, h_c = jnp.split(gh, 3, axis=2)
        updategate = jax.nn.sigmoid(i_u + h_u)
        resetgate = jax.nn.sigmoid(i_r + h_r)
        candidate = jnp.tanh(i_c + resetgate * h_c)
        hidden = (hidden - candidate) * updategate + candidate
    return hidden


if __name__ == "__main__":
    B, N, H = 32, 8, 32     # 32 graphs, 8 nodes, hidden 32 -> TB=16, grid=(2,), M=128
    STEP = 2

    key = jax.random.PRNGKey(0)
    k_a, k_h, k_p = jax.random.split(key, 3)
    A = jax.random.uniform(k_a, (B, N, 2 * N), jnp.float32)
    hidden = jax.random.normal(k_h, (B, N, H), jnp.float32)
    params = init_params(k_p, H)
    kparams = prepare_params(params)

    ref = gnn_ref(A, hidden, params, STEP)

    # f32 path (default): tight check vs. the reference.
    out = gnn_forward_pallas(A, hidden, kparams, step=STEP)
    out = jax.block_until_ready(out)
    assert out.shape == (B, N, H)
    assert jnp.allclose(out, ref, atol=1e-4, rtol=1e-4), "f32 kernel mismatch vs reference"

    # bf16 MXU path (v6e/v7x optimization; f32 accumulation + f32 gating): loose sanity check.
    out_bf16 = gnn_forward_pallas(A, hidden, kparams, step=STEP,
                                  compute_dtype=jnp.bfloat16)
    out_bf16 = jax.block_until_ready(out_bf16)
    assert float(jnp.max(jnp.abs(out_bf16 - ref))) < 0.25, "bf16 kernel grossly off"

    print("KERNEL_OK")
</pallas_src>

<mosaic_0001>
module attributes {stable_mosaic.version = 11 : i64} {
  func.func @_gnn_kernel(%arg0: i32, %arg1: memref<16x8x8xf32, #tpu.memory_space<vmem>>, %arg2: memref<16x8x8xf32, #tpu.memory_space<vmem>>, %arg3: memref<16x8x32xf32, #tpu.memory_space<vmem>>, %arg4: memref<32x32xf32, #tpu.memory_space<vmem>>, %arg5: memref<1x32xf32, #tpu.memory_space<vmem>>, %arg6: memref<32x32xf32, #tpu.memory_space<vmem>>, %arg7: memref<1x32xf32, #tpu.memory_space<vmem>>, %arg8: memref<1x32xf32, #tpu.memory_space<vmem>>, %arg9: memref<1x32xf32, #tpu.memory_space<vmem>>, %arg10: memref<32x32xf32, #tpu.memory_space<vmem>>, %arg11: memref<32x32xf32, #tpu.memory_space<vmem>>, %arg12: memref<32x32xf32, #tpu.memory_space<vmem>>, %arg13: memref<1x32xf32, #tpu.memory_space<vmem>>, %arg14: memref<1x32xf32, #tpu.memory_space<vmem>>, %arg15: memref<32x32xf32, #tpu.memory_space<vmem>>, %arg16: memref<32x32xf32, #tpu.memory_space<vmem>>, %arg17: memref<32x32xf32, #tpu.memory_space<vmem>>, %arg18: memref<1x32xf32, #tpu.memory_space<vmem>>, %arg19: memref<1x32xf32, #tpu.memory_space<vmem>>, %arg20: memref<32x32xf32, #tpu.memory_space<vmem>>, %arg21: memref<32x32xf32, #tpu.memory_space<vmem>>, %arg22: memref<32x32xf32, #tpu.memory_space<vmem>>, %arg23: memref<1x32xf32, #tpu.memory_space<vmem>>, %arg24: memref<1x32xf32, #tpu.memory_space<vmem>>, %arg25: memref<16x8x32xf32, #tpu.memory_space<vmem>>) attributes {dimension_semantics = [#tpu.dimension_semantics<parallel>], iteration_bounds = array<i64: 2>, scalar_prefetch = 0 : i64, scratch_operands = 0 : i64, tpu.core_type = #tpu.core_type<tc>, window_params = [{transform_indices = @transform_0, window_bounds = array<i64: 16, 8, 8>}, {transform_indices = @transform_1, window_bounds = array<i64: 16, 8, 8>}, {transform_indices = @transform_2, window_bounds = array<i64: 16, 8, 32>}, {pipeline_mode = #tpu.pipeline_mode<synchronous>, transform_indices = @transform_3, window_bounds = array<i64: 32, 32>}, {pipeline_mode = #tpu.pipeline_mode<synchronous>, transform_indices = @transform_4, window_bounds = array<i64: 1, 32>}, {pipeline_mode = #tpu.pipeline_mode<synchronous>, transform_indices = @transform_5, window_bounds = array<i64: 32, 32>}, {pipeline_mode = #tpu.pipeline_mode<synchronous>, transform_indices = @transform_6, window_bounds = array<i64: 1, 32>}, {pipeline_mode = #tpu.pipeline_mode<synchronous>, transform_indices = @transform_7, window_bounds = array<i64: 1, 32>}, {pipeline_mode = #tpu.pipeline_mode<synchronous>, transform_indices = @transform_8, window_bounds = array<i64: 1, 32>}, {pipeline_mode = #tpu.pipeline_mode<synchronous>, transform_indices = @transform_9, window_bounds = array<i64: 32, 32>}, {pipeline_mode = #tpu.pipeline_mode<synchronous>, transform_indices = @transform_10, window_bounds = array<i64: 32, 32>}, {pipeline_mode = #tpu.pipeline_mode<synchronous>, transform_indices = @transform_11, window_bounds = array<i64: 32, 32>}, {pipeline_mode = #tpu.pipeline_mode<synchronous>, transform_indices = @transform_12, window_bounds = array<i64: 1, 32>}, {pipeline_mode = #tpu.pipeline_mode<synchronous>, transform_indices = @transform_13, window_bounds = array<i64: 1, 32>}, {pipeline_mode = #tpu.pipeline_mode<synchronous>, transform_indices = @transform_14, window_bounds = array<i64: 32, 32>}, {pipeline_mode = #tpu.pipeline_mode<synchronous>, transform_indices = @transform_15, window_bounds = array<i64: 32, 32>}, {pipeline_mode = #tpu.pipeline_mode<synchronous>, transform_indices = @transform_16, window_bounds = array<i64: 32, 32>}, {pipeline_mode = #tpu.pipeline_mode<synchronous>, transform_indices = @transform_17, window_bounds = array<i64: 1, 32>}, {pipeline_mode = #tpu.pipeline_mode<synchronous>, transform_indices = @transform_18, window_bounds = array<i64: 1, 32>}, {pipeline_mode = #tpu.pipeline_mode<synchronous>, transform_indices = @transform_19, window_bounds = array<i64: 32, 32>}, {pipeline_mode = #tpu.pipeline_mode<synchronous>, transform_indices = @transform_20, window_bounds = array<i64: 32, 32>}, {pipeline_mode = #tpu.pipeline_mode<synchronous>, transform_indices = @transform_21, window_bounds = array<i64: 32, 32>}, {pipeline_mode = #tpu.pipeline_mode<synchronous>, transform_indices = @transform_22, window_bounds = array<i64: 1, 32>}, {pipeline_mode = #tpu.pipeline_mode<synchronous>, transform_indices = @transform_23, window_bounds = array<i64: 1, 32>}, {transform_indices = @transform_24, window_bounds = array<i64: 16, 8, 32>}]} {
    %c0 = arith.constant 0 : index
    %c0_0 = arith.constant 0 : index
    %c0_1 = arith.constant 0 : index
    %0 = vector.load %arg1[%c0, %c0_0, %c0_1] : memref<16x8x8xf32, #tpu.memory_space<vmem>>, vector<16x8x8xf32>
    %c0_2 = arith.constant 0 : index
    %c0_3 = arith.constant 0 : index
    %c0_4 = arith.constant 0 : index
    %1 = vector.load %arg2[%c0_2, %c0_3, %c0_4] : memref<16x8x8xf32, #tpu.memory_space<vmem>>, vector<16x8x8xf32>
    %c0_5 = arith.constant 0 : index
    %c0_6 = arith.constant 0 : index
    %c0_7 = arith.constant 0 : index
    %2 = vector.load %arg3[%c0_5, %c0_6, %c0_7] : memref<16x8x32xf32, #tpu.memory_space<vmem>>, vector<16x8x32xf32>
    %3 = vector.shape_cast %2 : vector<16x8x32xf32> to vector<128x32xf32>
    %c0_8 = arith.constant 0 : index
    %c0_9 = arith.constant 0 : index
    %4 = vector.load %arg4[%c0_8, %c0_9] : memref<32x32xf32, #tpu.memory_space<vmem>>, vector<32x32xf32>
    %c0_10 = arith.constant 0 : index
    %c0_11 = arith.constant 0 : index
    %5 = vector.load %arg6[%c0_10, %c0_11] : memref<32x32xf32, #tpu.memory_space<vmem>>, vector<32x32xf32>
    %c0_12 = arith.constant 0 : index
    %c0_13 = arith.constant 0 : index
    %6 = vector.load %arg10[%c0_12, %c0_13] : memref<32x32xf32, #tpu.memory_space<vmem>>, vector<32x32xf32>
    %c0_14 = arith.constant 0 : index
    %c0_15 = arith.constant 0 : index
    %7 = vector.load %arg11[%c0_14, %c0_15] : memref<32x32xf32, #tpu.memory_space<vmem>>, vector<32x32xf32>
    %c0_16 = arith.constant 0 : index
    %c0_17 = arith.constant 0 : index
    %8 = vector.load %arg12[%c0_16, %c0_17] : memref<32x32xf32, #tpu.memory_space<vmem>>, vector<32x32xf32>
    %c0_18 = arith.constant 0 : index
    %c0_19 = arith.constant 0 : index
    %9 = vector.load %arg15[%c0_18, %c0_19] : memref<32x32xf32, #tpu.memory_space<vmem>>, vector<32x32xf32>
    %c0_20 = arith.constant 0 : index
    %c0_21 = arith.constant 0 : index
    %10 = vector.load %arg16[%c0_20, %c0_21] : memref<32x32xf32, #tpu.memory_space<vmem>>, vector<32x32xf32>
    %c0_22 = arith.constant 0 : index
    %c0_23 = arith.constant 0 : index
    %11 = vector.load %arg17[%c0_22, %c0_23] : memref<32x32xf32, #tpu.memory_space<vmem>>, vector<32x32xf32>
    %c0_24 = arith.constant 0 : index
    %c0_25 = arith.constant 0 : index
    %12 = vector.load %arg20[%c0_24, %c0_25] : memref<32x32xf32, #tpu.memory_space<vmem>>, vector<32x32xf32>
    %c0_26 = arith.constant 0 : index
    %c0_27 = arith.constant 0 : index
    %13 = vector.load %arg21[%c0_26, %c0_27] : memref<32x32xf32, #tpu.memory_space<vmem>>, vector<32x32xf32>
    %c0_28 = arith.constant 0 : index
    %c0_29 = arith.constant 0 : index
    %14 = vector.load %arg22[%c0_28, %c0_29] : memref<32x32xf32, #tpu.memory_space<vmem>>, vector<32x32xf32>
    %c0_30 = arith.constant 0 : index
    %c0_31 = arith.constant 0 : index
    %15 = vector.load %arg5[%c0_30, %c0_31] : memref<1x32xf32, #tpu.memory_space<vmem>>, vector<1x32xf32>
    %c0_32 = arith.constant 0 : index
    %c0_33 = arith.constant 0 : index
    %16 = vector.load %arg7[%c0_32, %c0_33] : memref<1x32xf32, #tpu.memory_space<vmem>>, vector<1x32xf32>
    %c0_34 = arith.constant 0 : index
    %c0_35 = arith.constant 0 : index
    %17 = vector.load %arg8[%c0_34, %c0_35] : memref<1x32xf32, #tpu.memory_space<vmem>>, vector<1x32xf32>
    %c0_36 = arith.constant 0 : index
    %c0_37 = arith.constant 0 : index
    %18 = vector.load %arg9[%c0_36, %c0_37] : memref<1x32xf32, #tpu.memory_space<vmem>>, vector<1x32xf32>
    %c0_38 = arith.constant 0 : index
    %c0_39 = arith.constant 0 : index
    %19 = vector.load %arg13[%c0_38, %c0_39] : memref<1x32xf32, #tpu.memory_space<vmem>>, vector<1x32xf32>
    %c0_40 = arith.constant 0 : index
    %c0_41 = arith.constant 0 : index
    %20 = vector.load %arg14[%c0_40, %c0_41] : memref<1x32xf32, #tpu.memory_space<vmem>>, vector<1x32xf32>
    %c0_42 = arith.constant 0 : index
    %c0_43 = arith.constant 0 : index
    %21 = vector.load %arg18[%c0_42, %c0_43] : memref<1x32xf32, #tpu.memory_space<vmem>>, vector<1x32xf32>
    %c0_44 = arith.constant 0 : index
    %c0_45 = arith.constant 0 : index
    %22 = vector.load %arg19[%c0_44, %c0_45] : memref<1x32xf32, #tpu.memory_space<vmem>>, vector<1x32xf32>
    %c0_46 = arith.constant 0 : index
    %c0_47 = arith.constant 0 : index
    %23 = vector.load %arg23[%c0_46, %c0_47] : memref<1x32xf32, #tpu.memory_space<vmem>>, vector<1x32xf32>
    %c0_48 = arith.constant 0 : index
    %c0_49 = arith.constant 0 : index
    %24 = vector.load %arg24[%c0_48, %c0_49] : memref<1x32xf32, #tpu.memory_space<vmem>>, vector<1x32xf32>
    %c0_i32 = arith.constant 0 : i32
    %c2_i32 = arith.constant 2 : i32
    %25 = arith.addi %c0_i32, %c2_i32 : i32
    %c1_i32 = arith.constant 1 : i32
    %26 = scf.for %arg26 = %c0_i32 to %25 step %c1_i32 iter_args(%arg27 = %3) -> (vector<128x32xf32>)  : i32 {
      %cst = arith.constant dense<0.000000e+00> : vector<128x32xf32>
      %29 = tpu.matmul %arg27, %4, %cst {dimension_numbers = #tpu.dot_dimension_numbers<[1], [0], [0], [1], [0, 0, 1, 1], [], []>} : vector<128x32xf32>, vector<32x32xf32>, vector<128x32xf32> -> vector<128x32xf32>
      %30 = vector.broadcast %15 : vector<1x32xf32> to vector<128x32xf32>
      %31 = arith.addf %29, %30 : vector<128x32xf32>
      %cst_53 = arith.constant dense<0.000000e+00> : vector<128x32xf32>
      %32 = tpu.matmul %arg27, %5, %cst_53 {dimension_numbers = #tpu.dot_dimension_numbers<[1], [0], [0], [1], [0, 0, 1, 1], [], []>} : vector<128x32xf32>, vector<32x32xf32>, vector<128x32xf32> -> vector<128x32xf32>
      %33 = vector.broadcast %16 : vector<1x32xf32> to vector<128x32xf32>
      %34 = arith.addf %32, %33 : vector<128x32xf32>
      %35 = vector.shape_cast %31 : vector<128x32xf32> to vector<16x8x32xf32>
      %36 = vector.shape_cast %34 : vector<128x32xf32> to vector<16x8x32xf32>
      "tpu.trace_start"() <{level = 10 : i32, message = "bij,bjh->bih"}> : () -> ()
      %cst_54 = arith.constant dense<0.000000e+00> : vector<16x8x32xf32>
      %37 = tpu.matmul %0, %35, %cst_54 {dimension_numbers = #tpu.dot_dimension_numbers<[2], [1], [1], [2], [0, 0, 0, 1, 1, 2], [0], [0]>} : vector<16x8x8xf32>, vector<16x8x32xf32>, vector<16x8x32xf32> -> vector<16x8x32xf32>
      "tpu.trace_stop"() : () -> ()
      %38 = vector.shape_cast %37 : vector<16x8x32xf32> to vector<128x32xf32>
      %39 = vector.broadcast %17 : vector<1x32xf32> to vector<128x32xf32>
      %40 = arith.addf %38, %39 : vector<128x32xf32>
      "tpu.trace_start"() <{level = 10 : i32, message = "bij,bjh->bih"}> : () -> ()
      %cst_55 = arith.constant dense<0.000000e+00> : vector<16x8x32xf32>
      %41 = tpu.matmul %1, %36, %cst_55 {dimension_numbers = #tpu.dot_dimension_numbers<[2], [1], [1], [2], [0, 0, 0, 1, 1, 2], [0], [0]>} : vector<16x8x8xf32>, vector<16x8x32xf32>, vector<16x8x32xf32> -> vector<16x8x32xf32>
      "tpu.trace_stop"() : () -> ()
      %42 = vector.shape_cast %41 : vector<16x8x32xf32> to vector<128x32xf32>
      %43 = vector.broadcast %18 : vector<1x32xf32> to vector<128x32xf32>
      %44 = arith.addf %42, %43 : vector<128x32xf32>
      %cst_56 = arith.constant dense<0.000000e+00> : vector<128x32xf32>
      %45 = tpu.matmul %40, %6, %cst_56 {dimension_numbers = #tpu.dot_dimension_numbers<[1], [0], [0], [1], [0, 0, 1, 1], [], []>} : vector<128x32xf32>, vector<32x32xf32>, vector<128x32xf32> -> vector<128x32xf32>
      %cst_57 = arith.constant dense<0.000000e+00> : vector<128x32xf32>
      %46 = tpu.matmul %44, %7, %cst_57 {dimension_numbers = #tpu.dot_dimension_numbers<[1], [0], [0], [1], [0, 0, 1, 1], [], []>} : vector<128x32xf32>, vector<32x32xf32>, vector<128x32xf32> -> vector<128x32xf32>
      %47 = arith.addf %45, %46 : vector<128x32xf32>
      %48 = vector.broadcast %19 : vector<1x32xf32> to vector<128x32xf32>
      %49 = arith.addf %47, %48 : vector<128x32xf32>
      %cst_58 = arith.constant dense<0.000000e+00> : vector<128x32xf32>
      %50 = tpu.matmul %40, %9, %cst_58 {dimension_numbers = #tpu.dot_dimension_numbers<[1], [0], [0], [1], [0, 0, 1, 1], [], []>} : vector<128x32xf32>, vector<32x32xf32>, vector<128x32xf32> -> vector<128x32xf32>
      %cst_59 = arith.constant dense<0.000000e+00> : vector<128x32xf32>
      %51 = tpu.matmul %44, %10, %cst_59 {dimension_numbers = #tpu.dot_dimension_numbers<[1], [0], [0], [1], [0, 0, 1, 1], [], []>} : vector<128x32xf32>, vector<32x32xf32>, vector<128x32xf32> -> vector<128x32xf32>
      %52 = arith.addf %50, %51 : vector<128x32xf32>
      %53 = vector.broadcast %21 : vector<1x32xf32> to vector<128x32xf32>
      %54 = arith.addf %52, %53 : vector<128x32xf32>
      %cst_60 = arith.constant dense<0.000000e+00> : vector<128x32xf32>
      %55 = tpu.matmul %40, %12, %cst_60 {dimension_numbers = #tpu.dot_dimension_numbers<[1], [0], [0], [1], [0, 0, 1, 1], [], []>} : vector<128x32xf32>, vector<32x32xf32>, vector<128x32xf32> -> vector<128x32xf32>
      %cst_61 = arith.constant dense<0.000000e+00> : vector<128x32xf32>
      %56 = tpu.matmul %44, %13, %cst_61 {dimension_numbers = #tpu.dot_dimension_numbers<[1], [0], [0], [1], [0, 0, 1, 1], [], []>} : vector<128x32xf32>, vector<32x32xf32>, vector<128x32xf32> -> vector<128x32xf32>
      %57 = arith.addf %55, %56 : vector<128x32xf32>
      %58 = vector.broadcast %23 : vector<1x32xf32> to vector<128x32xf32>
      %59 = arith.addf %57, %58 : vector<128x32xf32>
      %cst_62 = arith.constant dense<0.000000e+00> : vector<128x32xf32>
      %60 = tpu.matmul %arg27, %8, %cst_62 {dimension_numbers = #tpu.dot_dimension_numbers<[1], [0], [0], [1], [0, 0, 1, 1], [], []>} : vector<128x32xf32>, vector<32x32xf32>, vector<128x32xf32> -> vector<128x32xf32>
      %61 = vector.broadcast %20 : vector<1x32xf32> to vector<128x32xf32>
      %62 = arith.addf %60, %61 : vector<128x32xf32>
      %cst_63 = arith.constant dense<0.000000e+00> : vector<128x32xf32>
      %63 = tpu.matmul %arg27, %11, %cst_63 {dimension_numbers = #tpu.dot_dimension_numbers<[1], [0], [0], [1], [0, 0, 1, 1], [], []>} : vector<128x32xf32>, vector<32x32xf32>, vector<128x32xf32> -> vector<128x32xf32>
      %64 = vector.broadcast %22 : vector<1x32xf32> to vector<128x32xf32>
      %65 = arith.addf %63, %64 : vector<128x32xf32>
      %cst_64 = arith.constant dense<0.000000e+00> : vector<128x32xf32>
      %66 = tpu.matmul %arg27, %14, %cst_64 {dimension_numbers = #tpu.dot_dimension_numbers<[1], [0], [0], [1], [0, 0, 1, 1], [], []>} : vector<128x32xf32>, vector<32x32xf32>, vector<128x32xf32> -> vector<128x32xf32>
      %67 = vector.broadcast %24 : vector<1x32xf32> to vector<128x32xf32>
      %68 = arith.addf %66, %67 : vector<128x32xf32>
      %69 = arith.addf %54, %65 : vector<128x32xf32>
      %70 = arith.negf %69 : vector<128x32xf32>
      %71 = math.exp %70 : vector<128x32xf32>
      %cst_65 = arith.constant 1.000000e+00 : f32
      %72 = vector.broadcast %cst_65 : f32 to vector<128x32xf32>
      %73 = arith.addf %72, %71 : vector<128x32xf32>
      %74 = arith.divf %72, %73 : vector<128x32xf32>
      %75 = arith.addf %49, %62 : vector<128x32xf32>
      %76 = arith.negf %75 : vector<128x32xf32>
      %77 = math.exp %76 : vector<128x32xf32>
      %cst_66 = arith.constant 1.000000e+00 : f32
      %78 = vector.broadcast %cst_66 : f32 to vector<128x32xf32>
      %79 = arith.addf %78, %77 : vector<128x32xf32>
      %80 = arith.divf %78, %79 : vector<128x32xf32>
      %81 = arith.mulf %80, %68 : vector<128x32xf32>
      %82 = arith.addf %59, %81 : vector<128x32xf32>
      %83 = math.tanh %82 : vector<128x32xf32>
      %84 = arith.subf %arg27, %83 : vector<128x32xf32>
      %85 = arith.mulf %84, %74 : vector<128x32xf32>
      %86 = arith.addf %85, %83 : vector<128x32xf32>
      scf.yield %86 : vector<128x32xf32>
    }
    %27 = vector.shape_cast %26 : vector<128x32xf32> to vector<16x8x32xf32>
    %c0_50 = arith.constant 0 : index
    %c0_51 = arith.constant 0 : index
    %c0_52 = arith.constant 0 : index
    %28 = vector.load %arg25[%c0_50, %c0_51, %c0_52] : memref<16x8x32xf32, #tpu.memory_space<vmem>>, vector<16x8x32xf32>
    tpu.vector_store %arg25[%c0_50, %c0_51, %c0_52], %27 {strides = array<i32>} : memref<16x8x32xf32, #tpu.memory_space<vmem>>, vector<16x8x32xf32>,
    return
  }
  func.func @transform_0(%arg0: i32) -> (i32, i32, i32) {
    %c0_i32 = arith.constant 0 : i32
    %c0_i32_0 = arith.constant 0 : i32
    %c0_i32_1 = arith.constant 0 : i32
    return %arg0, %c0_i32, %c0_i32_0 : i32, i32, i32
  }
  func.func @transform_1(%arg0: i32) -> (i32, i32, i32) {
    %c0_i32 = arith.constant 0 : i32
    %c0_i32_0 = arith.constant 0 : i32
    %c0_i32_1 = arith.constant 0 : i32
    return %arg0, %c0_i32, %c0_i32_0 : i32, i32, i32
  }
  func.func @transform_2(%arg0: i32) -> (i32, i32, i32) {
    %c0_i32 = arith.constant 0 : i32
    %c0_i32_0 = arith.constant 0 : i32
    %c0_i32_1 = arith.constant 0 : i32
    return %arg0, %c0_i32, %c0_i32_0 : i32, i32, i32
  }
  func.func @transform_3(%arg0: i32) -> (i32, i32) {
    %c0_i32 = arith.constant 0 : i32
    %c0_i32_0 = arith.constant 0 : i32
    %c0_i32_1 = arith.constant 0 : i32
    return %c0_i32, %c0_i32_0 : i32, i32
  }
  func.func @transform_4(%arg0: i32) -> (i32, i32) {
    %c0_i32 = arith.constant 0 : i32
    %c0_i32_0 = arith.constant 0 : i32
    %c0_i32_1 = arith.constant 0 : i32
    return %c0_i32, %c0_i32_0 : i32, i32
  }
  func.func @transform_5(%arg0: i32) -> (i32, i32) {
    %c0_i32 = arith.constant 0 : i32
    %c0_i32_0 = arith.constant 0 : i32
    %c0_i32_1 = arith.constant 0 : i32
    return %c0_i32, %c0_i32_0 : i32, i32
  }
  func.func @transform_6(%arg0: i32) -> (i32, i32) {
    %c0_i32 = arith.constant 0 : i32
    %c0_i32_0 = arith.constant 0 : i32
    %c0_i32_1 = arith.constant 0 : i32
    return %c0_i32, %c0_i32_0 : i32, i32
  }
  func.func @transform_7(%arg0: i32) -> (i32, i32) {
    %c0_i32 = arith.constant 0 : i32
    %c0_i32_0 = arith.constant 0 : i32
    %c0_i32_1 = arith.constant 0 : i32
    return %c0_i32, %c0_i32_0 : i32, i32
  }
  func.func @transform_8(%arg0: i32) -> (i32, i32) {
    %c0_i32 = arith.constant 0 : i32
    %c0_i32_0 = arith.constant 0 : i32
    %c0_i32_1 = arith.constant 0 : i32
    return %c0_i32, %c0_i32_0 : i32, i32
  }
  func.func @transform_9(%arg0: i32) -> (i32, i32) {
    %c0_i32 = arith.constant 0 : i32
    %c0_i32_0 = arith.constant 0 : i32
    %c0_i32_1 = arith.constant 0 : i32
    return %c0_i32, %c0_i32_0 : i32, i32
  }
  func.func @transform_10(%arg0: i32) -> (i32, i32) {
    %c0_i32 = arith.constant 0 : i32
    %c0_i32_0 = arith.constant 0 : i32
    %c0_i32_1 = arith.constant 0 : i32
    return %c0_i32, %c0_i32_0 : i32, i32
  }
  func.func @transform_11(%arg0: i32) -> (i32, i32) {
    %c0_i32 = arith.constant 0 : i32
    %c0_i32_0 = arith.constant 0 : i32
    %c0_i32_1 = arith.constant 0 : i32
    return %c0_i32, %c0_i32_0 : i32, i32
  }
  func.func @transform_12(%arg0: i32) -> (i32, i32) {
    %c0_i32 = arith.constant 0 : i32
    %c0_i32_0 = arith.constant 0 : i32
    %c0_i32_1 = arith.constant 0 : i32
    return %c0_i32, %c0_i32_0 : i32, i32
  }
  func.func @transform_13(%arg0: i32) -> (i32, i32) {
    %c0_i32 = arith.constant 0 : i32
    %c0_i32_0 = arith.constant 0 : i32
    %c0_i32_1 = arith.constant 0 : i32
    return %c0_i32, %c0_i32_0 : i32, i32
  }
  func.func @transform_14(%arg0: i32) -> (i32, i32) {
    %c0_i32 = arith.constant 0 : i32
    %c0_i32_0 = arith.constant 0 : i32
    %c0_i32_1 = arith.constant 0 : i32
    return %c0_i32, %c0_i32_0 : i32, i32
  }
  func.func @transform_15(%arg0: i32) -> (i32, i32) {
    %c0_i32 = arith.constant 0 : i32
    %c0_i32_0 = arith.constant 0 : i32
    %c0_i32_1 = arith.constant 0 : i32
    return %c0_i32, %c0_i32_0 : i32, i32
  }
  func.func @transform_16(%arg0: i32) -> (i32, i32) {
    %c0_i32 = arith.constant 0 : i32
    %c0_i32_0 = arith.constant 0 : i32
    %c0_i32_1 = arith.constant 0 : i32
    return %c0_i32, %c0_i32_0 : i32, i32
  }
  func.func @transform_17(%arg0: i32) -> (i32, i32) {
    %c0_i32 = arith.constant 0 : i32
    %c0_i32_0 = arith.constant 0 : i32
    %c0_i32_1 = arith.constant 0 : i32
    return %c0_i32, %c0_i32_0 : i32, i32
  }
  func.func @transform_18(%arg0: i32) -> (i32, i32) {
    %c0_i32 = arith.constant 0 : i32
    %c0_i32_0 = arith.constant 0 : i32
    %c0_i32_1 = arith.constant 0 : i32
    return %c0_i32, %c0_i32_0 : i32, i32
  }
  func.func @transform_19(%arg0: i32) -> (i32, i32) {
    %c0_i32 = arith.constant 0 : i32
    %c0_i32_0 = arith.constant 0 : i32
    %c0_i32_1 = arith.constant 0 : i32
    return %c0_i32, %c0_i32_0 : i32, i32
  }
  func.func @transform_20(%arg0: i32) -> (i32, i32) {
    %c0_i32 = arith.constant 0 : i32
    %c0_i32_0 = arith.constant 0 : i32
    %c0_i32_1 = arith.constant 0 : i32
    return %c0_i32, %c0_i32_0 : i32, i32
  }
  func.func @transform_21(%arg0: i32) -> (i32, i32) {
    %c0_i32 = arith.constant 0 : i32
    %c0_i32_0 = arith.constant 0 : i32
    %c0_i32_1 = arith.constant 0 : i32
    return %c0_i32, %c0_i32_0 : i32, i32
  }
  func.func @transform_22(%arg0: i32) -> (i32, i32) {
    %c0_i32 = arith.constant 0 : i32
    %c0_i32_0 = arith.constant 0 : i32
    %c0_i32_1 = arith.constant 0 : i32
    return %c0_i32, %c0_i32_0 : i32, i32
  }
  func.func @transform_23(%arg0: i32) -> (i32, i32) {
    %c0_i32 = arith.constant 0 : i32
    %c0_i32_0 = arith.constant 0 : i32
    %c0_i32_1 = arith.constant 0 : i32
    return %c0_i32, %c0_i32_0 : i32, i32
  }
  func.func @transform_24(%arg0: i32) -> (i32, i32, i32) {
    %c0_i32 = arith.constant 0 : i32
    %c0_i32_0 = arith.constant 0 : i32
    %c0_i32_1 = arith.constant 0 : i32
    return %arg0, %c0_i32, %c0_i32_0 : i32, i32, i32
  }
}

</mosaic_0001>

<llo_original>
// kernel: tpu_custom_call.1
$region0: #{tpu_custom_call.1}
  #allocation0 [shape = 'u32[]', space=smem, size = 0x4, offset = 0x4, fixed_abs, tag = 'smem constant byte address 0x4 - core index']
  #allocation1 [shape = 'u32[72,128]{1,0:T(1,128)}', space=vmem, size = 0x9000, scoped, tag = 'internal scratch']
  %s0 = inlined_call_operand.vmem [shape: f32[32,8,8], index: 0, kind: input, shape index: {}]
  %s1 = inlined_call_operand.vmem [shape: f32[32,8,8], index: 1, kind: input, shape index: {}]
  %s2 = inlined_call_operand.vmem [shape: f32[32,8,32], index: 2, kind: input, shape index: {}]
  %s3 = inlined_call_operand.vmem [shape: f32[32,32], index: 3, kind: input, shape index: {}]
  %s4 = inlined_call_operand.hbm [shape: f32[1,32], index: 4, kind: input, shape index: {}]
  %s5 = inlined_call_operand.vmem [shape: f32[32,32], index: 5, kind: input, shape index: {}]
  %s6 = inlined_call_operand.hbm [shape: f32[1,32], index: 6, kind: input, shape index: {}]
  %s7 = inlined_call_operand.vmem [shape: f32[1,32], index: 7, kind: input, shape index: {}]
  %s8 = inlined_call_operand.vmem [shape: f32[1,32], index: 8, kind: input, shape index: {}]
  %s9 = inlined_call_operand.vmem [shape: f32[32,32], index: 9, kind: input, shape index: {}]
  %s10 = inlined_call_operand.vmem [shape: f32[32,32], index: 10, kind: input, shape index: {}]
  %s11 = inlined_call_operand.vmem [shape: f32[32,32], index: 11, kind: input, shape index: {}]
  %s12 = inlined_call_operand.vmem [shape: f32[1,32], index: 12, kind: input, shape index: {}]
  %s13 = inlined_call_operand.vmem [shape: f32[1,32], index: 13, kind: input, shape index: {}]
  %s14 = inlined_call_operand.vmem [shape: f32[32,32], index: 14, kind: input, shape index: {}]
  %s15 = inlined_call_operand.vmem [shape: f32[32,32], index: 15, kind: input, shape index: {}]
  %s16 = inlined_call_operand.vmem [shape: f32[32,32], index: 16, kind: input, shape index: {}]
  %s17 = inlined_call_operand.vmem [shape: f32[1,32], index: 17, kind: input, shape index: {}]
  %s18 = inlined_call_operand.vmem [shape: f32[1,32], index: 18, kind: input, shape index: {}]
  %s19 = inlined_call_operand.vmem [shape: f32[32,32], index: 19, kind: input, shape index: {}]
  %s20 = inlined_call_operand.vmem [shape: f32[32,32], index: 20, kind: input, shape index: {}]
  %s21 = inlined_call_operand.hbm [shape: f32[32,32], index: 21, kind: input, shape index: {}]
  %s22 = inlined_call_operand.vmem [shape: f32[1,32], index: 22, kind: input, shape index: {}]
  %s23 = inlined_call_operand.vmem [shape: f32[1,32], index: 23, kind: input, shape index: {}]
  %s24 = inlined_call_operand.hbm [shape: f32[32,8,32], index: 24, kind: output, shape index: {}]
  %s25 = sld [smem:[#allocation0]]
  $region148: #{tpu_custom_call.1} parent=0
    _
  %s27 = ssub.s32 1, %s25
  %s28 = scalar_select 0, %s27, %s25
  $region1: #{tpu_custom_call.1} parent=0
    #allocation2 [shape = 'u8[512]{0}', space=vmem, size = 0x400, scoped, tag = 'input window, operand 4, single buffered']
    #allocation3 [shape = 's32[2]{0}', space=sflag, size = 0x8, scoped, tag = 'scoped memory for tpu_custom_call.1']
    #allocation4 [shape = 's32[2]{0}', space=sflag, size = 0x8, scoped, tag = 'scoped memory for tpu_custom_call.1']
    #allocation5 [shape = 'u8[512]{0}', space=vmem, size = 0x400, scoped, tag = 'input window, operand 6, single buffered']
    #allocation6 [shape = 's32[1]{0}', space=sflag, size = 0x4, scoped, tag = 'scoped memory for tpu_custom_call.1']
    #allocation7 [shape = 'u8[16384]{0}', space=vmem, size = 0x4000, scoped, tag = 'input window, operand 21, single buffered']
    #allocation8 [shape = 'u8[131072]{0}', space=vmem, size = 0x20000, scoped, tag = 'output window, operand 0']
    %29 = vsyncpa [#allocation3], 0
    %30 = vsyncpa [#allocation6], 0
    %31 = vsyncpa [#allocation4], 0
    %s32 = scalar_lea.sflag [#allocation4], 1
    %33 = vsyncpa %s32, 0
    loop: start=0, step=1, limit=4
    $region2: #{tpu_custom_call.1} parent=1 // loop_pre_header
      _
    $region3: #{tpu_custom_call.1} parent=1 // loop_header
      %s35 = sphi 0, %s39
      %p36 = scmp.ge.s32.totalorder %s35, 4
      %s45 = sphi 0, %s47
      %s48 = sphi 0, %s45
      %s49 = sphi 0, %s48
      %s65 = sphi 0, %s49
      %s71 = sphi 0, %s73
      %s74 = sphi 0, %s71
      %s75 = sphi 0, %s74
      %s91 = sphi 0, %s75
      %s97 = sphi 0, %s99
      %s100 = sphi 0, %s97
      %s101 = sphi 0, %s100
      %s117 = sphi 0, %s101
      %s121 = sphi 0, %s121
      %s123 = sphi 0, %s121
      %s124 = sphi 0, %s123
      %s138 = sphi 0, %s124
      %s142 = sphi 0, %s142
      %s144 = sphi 0, %s142
      %s145 = sphi 0, %s144
      %s159 = sphi 0, %s145
      %s163 = sphi 0, %s163
      %s165 = sphi 0, %s163
      %s166 = sphi 0, %s165
      %s180 = sphi 0, %s166
      %s184 = sphi 0, %s184
      %s186 = sphi 0, %s184
      %s187 = sphi 0, %s186
      %s201 = sphi 0, %s187
      %s205 = sphi 0, %s205
      %s207 = sphi 0, %s205
      %s208 = sphi 0, %s207
      %s222 = sphi 0, %s208
      %s226 = sphi 0, %s226
      %s228 = sphi 0, %s226
      %s229 = sphi 0, %s228
      %s243 = sphi 0, %s229
      %s247 = sphi 0, %s247
      %s249 = sphi 0, %s247
      %s250 = sphi 0, %s249
      %s264 = sphi 0, %s250
      %s268 = sphi 0, %s268
      %s270 = sphi 0, %s268
      %s271 = sphi 0, %s270
      %s285 = sphi 0, %s271
      %s289 = sphi 0, %s289
      %s291 = sphi 0, %s289
      %s292 = sphi 0, %s291
      %s306 = sphi 0, %s292
      %s310 = sphi 0, %s310
      %s312 = sphi 0, %s310
      %s313 = sphi 0, %s312
      %s327 = sphi 0, %s313
      %s331 = sphi 0, %s331
      %s333 = sphi 0, %s331
      %s334 = sphi 0, %s333
      %s348 = sphi 0, %s334
      %s352 = sphi 0, %s352
      %s354 = sphi 0, %s352
      %s355 = sphi 0, %s354
      %s369 = sphi 0, %s355
      %s373 = sphi 0, %s373
      %s375 = sphi 0, %s373
      %s376 = sphi 0, %s375
      %s390 = sphi 0, %s376
      %s394 = sphi 0, %s394
      %s396 = sphi 0, %s394
      %s397 = sphi 0, %s396
      %s411 = sphi 0, %s397
      %s415 = sphi 0, %s415
      %s417 = sphi 0, %s415
      %s418 = sphi 0, %s417
      %s432 = sphi 0, %s418
      %s436 = sphi 0, %s436
      %s438 = sphi 0, %s436
      %s439 = sphi 0, %s438
      %s453 = sphi 0, %s439
      %s457 = sphi 0, %s457
      %s459 = sphi 0, %s457
      %s460 = sphi 0, %s459
      %s474 = sphi 0, %s460
      %s478 = sphi 0, %s478
      %s480 = sphi 0, %s478
      %s481 = sphi 0, %s480
      %s495 = sphi 0, %s481
      %s499 = sphi 0, %s499
      %s501 = sphi 0, %s499
      %s502 = sphi 0, %s501
      %s516 = sphi 0, %s502
      %s520 = sphi 0, %s520
      %s522 = sphi 0, %s520
      %s523 = sphi 0, %s522
      %s537 = sphi 0, %s523
      %s541 = sphi 0, %s541
      %s543 = sphi 0, %s541
      %s544 = sphi 0, %s543
      %s558 = sphi 0, %s544
      %s564 = sphi 0, %s566
      %s567 = sphi 0, %s564
      %s568 = sphi 0, %s567
      %s584 = sphi 0, %s568
    $region4: #{tpu_custom_call.1} parent=1 // loop_header_branch
      %38 = sbr.rel (%p36) target = $region8
    $region5: #{tpu_custom_call.1} parent=1 // loop_body
      %s40 = ssub.s32 %s35, 1
      %s41 = ssub.s32 %s35, 2
      %s42 = sadd.s32 %s35, 1
      %s43 = ssub.s32 %s35, %s42
      %p44 = scmp.eq.s32.totalorder %s43, 0
      %s46 = sadd.s32 %s45, 1
      %s47 = scalar_select %p44, %s45, %s46
      %p50 = pneg %p44
      %p51 = scmp.eq.s32.totalorder %s35, 1
      %p52 = por %p50, %p51
      %p53 = scmp.ne.s32.totalorder %s45, %s48
      %p54 = scmp.eq.s32.totalorder %s35, 0
      %p55 = por %p53, %p54
      %p56 = scmp.ne.s32.totalorder %s45, %s48
      %p57 = scmp.eq.s32.totalorder %s40, 1
      %p58 = por %p56, %p57
      %p59 = scmp.ne.s32.totalorder %s48, %s49
      %p60 = scmp.eq.s32.totalorder %s40, 0
      %p61 = por %p59, %p60
      %p62 = scmp.ne.s32.totalorder %s48, %s49
      %p63 = scmp.eq.s32.totalorder %s41, 1
      %p64 = por %p62, %p63
      %p66 = scmp.ne.s32.totalorder %s49, %s65
      %p67 = scmp.eq.s32.totalorder %s41, 0
      %p68 = por %p66, %p67
      %s69 = ssub.s32 %s35, %s42
      %p70 = scmp.eq.s32.totalorder %s69, 0
      %s72 = sadd.s32 %s71, 1
      %s73 = scalar_select %p70, %s71, %s72
      %p76 = pneg %p70
      %p77 = scmp.eq.s32.totalorder %s35, 1
      %p78 = por %p76, %p77
      %p79 = scmp.ne.s32.totalorder %s71, %s74
      %p80 = scmp.eq.s32.totalorder %s35, 0
      %p81 = por %p79, %p80
      %p82 = scmp.ne.s32.totalorder %s71, %s74
      %p83 = scmp.eq.s32.totalorder %s40, 1
      %p84 = por %p82, %p83
      %p85 = scmp.ne.s32.totalorder %s74, %s75
      %p86 = scmp.eq.s32.totalorder %s40, 0
      %p87 = por %p85, %p86
      %p88 = scmp.ne.s32.totalorder %s74, %s75
      %p89 = scmp.eq.s32.totalorder %s41, 1
      %p90 = por %p88, %p89
      %p92 = scmp.ne.s32.totalorder %s75, %s91
      %p93 = scmp.eq.s32.totalorder %s41, 0
      %p94 = por %p92, %p93
      %s95 = ssub.s32 %s35, %s42
      %p96 = scmp.eq.s32.totalorder %s95, 0
      %s98 = sadd.s32 %s97, 1
      %s99 = scalar_select %p96, %s97, %s98
      %p102 = pneg %p96
      %p103 = scmp.eq.s32.totalorder %s35, 1
      %p104 = por %p102, %p103
      %p105 = scmp.ne.s32.totalorder %s97, %s100
      %p106 = scmp.eq.s32.totalorder %s35, 0
      %p107 = por %p105, %p106
      %p108 = scmp.ne.s32.totalorder %s97, %s100
      %p109 = scmp.eq.s32.totalorder %s40, 1
      %p110 = por %p108, %p109
      %p111 = scmp.ne.s32.totalorder %s100, %s101
      %p112 = scmp.eq.s32.totalorder %s40, 0
      %p113 = por %p111, %p112
      %p114 = scmp.ne.s32.totalorder %s100, %s101
      %p115 = scmp.eq.s32.totalorder %s41, 1
      %p116 = por %p114, %p115
      %p118 = scmp.ne.s32.totalorder %s101, %s117
      %p119 = scmp.eq.s32.totalorder %s41, 0
      %p120 = por %p118, %p119
      %s122 = sadd.s32 %s121, 1
      %p125 = scmp.eq.s32.totalorder %s35, 1
      %p126 = scmp.ne.s32.totalorder %s121, %s123
      %p127 = scmp.eq.s32.totalorder %s35, 0
      %p128 = por %p126, %p127
      %p129 = scmp.ne.s32.totalorder %s121, %s123
      %p130 = scmp.eq.s32.totalorder %s40, 1
      %p131 = por %p129, %p130
      %p132 = scmp.ne.s32.totalorder %s123, %s124
      %p133 = scmp.eq.s32.totalorder %s40, 0
      %p134 = por %p132, %p133
      %p135 = scmp.ne.s32.totalorder %s123, %s124
      %p136 = scmp.eq.s32.totalorder %s41, 1
      %p137 = por %p135, %p136
      %p139 = scmp.ne.s32.totalorder %s124, %s138
      %p140 = scmp.eq.s32.totalorder %s41, 0
      %p141 = por %p139, %p140
      %s143 = sadd.s32 %s142, 1
      %p146 = scmp.eq.s32.totalorder %s35, 1
      %p147 = scmp.ne.s32.totalorder %s142, %s144
      %p148 = scmp.eq.s32.totalorder %s35, 0
      %p149 = por %p147, %p148
      %p150 = scmp.ne.s32.totalorder %s142, %s144
      %p151 = scmp.eq.s32.totalorder %s40, 1
      %p152 = por %p150, %p151
      %p153 = scmp.ne.s32.totalorder %s144, %s145
      %p154 = scmp.eq.s32.totalorder %s40, 0
      %p155 = por %p153, %p154
      %p156 = scmp.ne.s32.totalorder %s144, %s145
      %p157 = scmp.eq.s32.totalorder %s41, 1
      %p158 = por %p156, %p157
      %p160 = scmp.ne.s32.totalorder %s145, %s159
      %p161 = scmp.eq.s32.totalorder %s41, 0
      %p162 = por %p160, %p161
      %s164 = sadd.s32 %s163, 1
      %p167 = scmp.eq.s32.totalorder %s35, 1
      %p168 = scmp.ne.s32.totalorder %s163, %s165
      %p169 = scmp.eq.s32.totalorder %s35, 0
      %p170 = por %p168, %p169
      %p171 = scmp.ne.s32.totalorder %s163, %s165
      %p172 = scmp.eq.s32.totalorder %s40, 1
      %p173 = por %p171, %p172
      %p174 = scmp.ne.s32.totalorder %s165, %s166
      %p175 = scmp.eq.s32.totalorder %s40, 0
      %p176 = por %p174, %p175
      %p177 = scmp.ne.s32.totalorder %s165, %s166
      %p178 = scmp.eq.s32.totalorder %s41, 1
      %p179 = por %p177, %p178
      %p181 = scmp.ne.s32.totalorder %s166, %s180
      %p182 = scmp.eq.s32.totalorder %s41, 0
      %p183 = por %p181, %p182
      %s185 = sadd.s32 %s184, 1
      %p188 = scmp.eq.s32.totalorder %s35, 1
      %p189 = scmp.ne.s32.totalorder %s184, %s186
      %p190 = scmp.eq.s32.totalorder %s35, 0
      %p191 = por %p189, %p190
      %p192 = scmp.ne.s32.totalorder %s184, %s186
      %p193 = scmp.eq.s32.totalorder %s40, 1
      %p194 = por %p192, %p193
      %p195 = scmp.ne.s32.totalorder %s186, %s187
      %p196 = scmp.eq.s32.totalorder %s40, 0
      %p197 = por %p195, %p196
      %p198 = scmp.ne.s32.totalorder %s186, %s187
      %p199 = scmp.eq.s32.totalorder %s41, 1
      %p200 = por %p198, %p199
      %p202 = scmp.ne.s32.totalorder %s187, %s201
      %p203 = scmp.eq.s32.totalorder %s41, 0
      %p204 = por %p202, %p203
      %s206 = sadd.s32 %s205, 1
      %p209 = scmp.eq.s32.totalorder %s35, 1
      %p210 = scmp.ne.s32.totalorder %s205, %s207
      %p211 = scmp.eq.s32.totalorder %s35, 0
      %p212 = por %p210, %p211
      %p213 = scmp.ne.s32.totalorder %s205, %s207
      %p214 = scmp.eq.s32.totalorder %s40, 1
      %p215 = por %p213, %p214
      %p216 = scmp.ne.s32.totalorder %s207, %s208
      %p217 = scmp.eq.s32.totalorder %s40, 0
      %p218 = por %p216, %p217
      %p219 = scmp.ne.s32.totalorder %s207, %s208
      %p220 = scmp.eq.s32.totalorder %s41, 1
      %p221 = por %p219, %p220
      %p223 = scmp.ne.s32.totalorder %s208, %s222
      %p224 = scmp.eq.s32.totalorder %s41, 0
      %p225 = por %p223, %p224
      %s227 = sadd.s32 %s226, 1
      %p230 = scmp.eq.s32.totalorder %s35, 1
      %p231 = scmp.ne.s32.totalorder %s226, %s228
      %p232 = scmp.eq.s32.totalorder %s35, 0
      %p233 = por %p231, %p232
      %p234 = scmp.ne.s32.totalorder %s226, %s228
      %p235 = scmp.eq.s32.totalorder %s40, 1
      %p236 = por %p234, %p235
      %p237 = scmp.ne.s32.totalorder %s228, %s229
      %p238 = scmp.eq.s32.totalorder %s40, 0
      %p239 = por %p237, %p238
      %p240 = scmp.ne.s32.totalorder %s228, %s229
      %p241 = scmp.eq.s32.totalorder %s41, 1
      %p242 = por %p240, %p241
      %p244 = scmp.ne.s32.totalorder %s229, %s243
      %p245 = scmp.eq.s32.totalorder %s41, 0
      %p246 = por %p244, %p245
      %s248 = sadd.s32 %s247, 1
      %p251 = scmp.eq.s32.totalorder %s35, 1
      %p252 = scmp.ne.s32.totalorder %s247, %s249
      %p253 = scmp.eq.s32.totalorder %s35, 0
      %p254 = por %p252, %p253
      %p255 = scmp.ne.s32.totalorder %s247, %s249
      %p256 = scmp.eq.s32.totalorder %s40, 1
      %p257 = por %p255, %p256
      %p258 = scmp.ne.s32.totalorder %s249, %s250
      %p259 = scmp.eq.s32.totalorder %s40, 0
      %p260 = por %p258, %p259
      %p261 = scmp.ne.s32.totalorder %s249, %s250
      %p262 = scmp.eq.s32.totalorder %s41, 1
      %p263 = por %p261, %p262
      %p265 = scmp.ne.s32.totalorder %s250, %s264
      %p266 = scmp.eq.s32.totalorder %s41, 0
      %p267 = por %p265, %p266
      %s269 = sadd.s32 %s268, 1
      %p272 = scmp.eq.s32.totalorder %s35, 1
      %p273 = scmp.ne.s32.totalorder %s268, %s270
      %p274 = scmp.eq.s32.totalorder %s35, 0
      %p275 = por %p273, %p274
      %p276 = scmp.ne.s32.totalorder %s268, %s270
      %p277 = scmp.eq.s32.totalorder %s40, 1
      %p278 = por %p276, %p277
      %p279 = scmp.ne.s32.totalorder %s270, %s271
      %p280 = scmp.eq.s32.totalorder %s40, 0
      %p281 = por %p279, %p280
      %p282 = scmp.ne.s32.totalorder %s270, %s271
      %p283 = scmp.eq.s32.totalorder %s41, 1
      %p284 = por %p282, %p283
      %p286 = scmp.ne.s32.totalorder %s271, %s285
      %p287 = scmp.eq.s32.totalorder %s41, 0
      %p288 = por %p286, %p287
      %s290 = sadd.s32 %s289, 1
      %p293 = scmp.eq.s32.totalorder %s35, 1
      %p294 = scmp.ne.s32.totalorder %s289, %s291
      %p295 = scmp.eq.s32.totalorder %s35, 0
      %p296 = por %p294, %p295
      %p297 = scmp.ne.s32.totalorder %s289, %s291
      %p298 = scmp.eq.s32.totalorder %s40, 1
      %p299 = por %p297, %p298
      %p300 = scmp.ne.s32.totalorder %s291, %s292
      %p301 = scmp.eq.s32.totalorder %s40, 0
      %p302 = por %p300, %p301
      %p303 = scmp.ne.s32.totalorder %s291, %s292
      %p304 = scmp.eq.s32.totalorder %s41, 1
      %p305 = por %p303, %p304
      %p307 = scmp.ne.s32.totalorder %s292, %s306
      %p308 = scmp.eq.s32.totalorder %s41, 0
      %p309 = por %p307, %p308
      %s311 = sadd.s32 %s310, 1
      %p314 = scmp.eq.s32.totalorder %s35, 1
      %p315 = scmp.ne.s32.totalorder %s310, %s312
      %p316 = scmp.eq.s32.totalorder %s35, 0
      %p317 = por %p315, %p316
      %p318 = scmp.ne.s32.totalorder %s310, %s312
      %p319 = scmp.eq.s32.totalorder %s40, 1
      %p320 = por %p318, %p319
      %p321 = scmp.ne.s32.totalorder %s312, %s313
      %p322 = scmp.eq.s32.totalorder %s40, 0
      %p323 = por %p321, %p322
      %p324 = scmp.ne.s32.totalorder %s312, %s313
      %p325 = scmp.eq.s32.totalorder %s41, 1
      %p326 = por %p324, %p325
      %p328 = scmp.ne.s32.totalorder %s313, %s327
      %p329 = scmp.eq.s32.totalorder %s41, 0
      %p330 = por %p328, %p329
      %s332 = sadd.s32 %s331, 1
      %p335 = scmp.eq.s32.totalorder %s35, 1
      %p336 = scmp.ne.s32.totalorder %s331, %s333
      %p337 = scmp.eq.s32.totalorder %s35, 0
      %p338 = por %p336, %p337
      %p339 = scmp.ne.s32.totalorder %s331, %s333
      %p340 = scmp.eq.s32.totalorder %s40, 1
      %p341 = por %p339, %p340
      %p342 = scmp.ne.s32.totalorder %s333, %s334
      %p343 = scmp.eq.s32.totalorder %s40, 0
      %p344 = por %p342, %p343
      %p345 = scmp.ne.s32.totalorder %s333, %s334
      %p346 = scmp.eq.s32.totalorder %s41, 1
      %p347 = por %p345, %p346
      %p349 = scmp.ne.s32.totalorder %s334, %s348
      %p350 = scmp.eq.s32.totalorder %s41, 0
      %p351 = por %p349, %p350
      %s353 = sadd.s32 %s352, 1
      %p356 = scmp.eq.s32.totalorder %s35, 1
      %p357 = scmp.ne.s32.totalorder %s352, %s354
      %p358 = scmp.eq.s32.totalorder %s35, 0
      %p359 = por %p357, %p358
      %p360 = scmp.ne.s32.totalorder %s352, %s354
      %p361 = scmp.eq.s32.totalorder %s40, 1
      %p362 = por %p360, %p361
      %p363 = scmp.ne.s32.totalorder %s354, %s355
      %p364 = scmp.eq.s32.totalorder %s40, 0
      %p365 = por %p363, %p364
      %p366 = scmp.ne.s32.totalorder %s354, %s355
      %p367 = scmp.eq.s32.totalorder %s41, 1
      %p368 = por %p366, %p367
      %p370 = scmp.ne.s32.totalorder %s355, %s369
      %p371 = scmp.eq.s32.totalorder %s41, 0
      %p372 = por %p370, %p371
      %s374 = sadd.s32 %s373, 1
      %p377 = scmp.eq.s32.totalorder %s35, 1
      %p378 = scmp.ne.s32.totalorder %s373, %s375
      %p379 = scmp.eq.s32.totalorder %s35, 0
      %p380 = por %p378, %p379
      %p381 = scmp.ne.s32.totalorder %s373, %s375
      %p382 = scmp.eq.s32.totalorder %s40, 1
      %p383 = por %p381, %p382
      %p384 = scmp.ne.s32.totalorder %s375, %s376
      %p385 = scmp.eq.s32.totalorder %s40, 0
      %p386 = por %p384, %p385
      %p387 = scmp.ne.s32.totalorder %s375, %s376
      %p388 = scmp.eq.s32.totalorder %s41, 1
      %p389 = por %p387, %p388
      %p391 = scmp.ne.s32.totalorder %s376, %s390
      %p392 = scmp.eq.s32.totalorder %s41, 0
      %p393 = por %p391, %p392
      %s395 = sadd.s32 %s394, 1
      %p398 = scmp.eq.s32.totalorder %s35, 1
      %p399 = scmp.ne.s32.totalorder %s394, %s396
      %p400 = scmp.eq.s32.totalorder %s35, 0
      %p401 = por %p399, %p400
      %p402 = scmp.ne.s32.totalorder %s394, %s396
      %p403 = scmp.eq.s32.totalorder %s40, 1
      %p404 = por %p402, %p403
      %p405 = scmp.ne.s32.totalorder %s396, %s397
      %p406 = scmp.eq.s32.totalorder %s40, 0
      %p407 = por %p405, %p406
      %p408 = scmp.ne.s32.totalorder %s396, %s397
      %p409 = scmp.eq.s32.totalorder %s41, 1
      %p410 = por %p408, %p409
      %p412 = scmp.ne.s32.totalorder %s397, %s411
      %p413 = scmp.eq.s32.totalorder %s41, 0
      %p414 = por %p412, %p413
      %s416 = sadd.s32 %s415, 1
      %p419 = scmp.eq.s32.totalorder %s35, 1
      %p420 = scmp.ne.s32.totalorder %s415, %s417
      %p421 = scmp.eq.s32.totalorder %s35, 0
      %p422 = por %p420, %p421
      %p423 = scmp.ne.s32.totalorder %s415, %s417
      %p424 = scmp.eq.s32.totalorder %s40, 1
      %p425 = por %p423, %p424
      %p426 = scmp.ne.s32.totalorder %s417, %s418
      %p427 = scmp.eq.s32.totalorder %s40, 0
      %p428 = por %p426, %p427
      %p429 = scmp.ne.s32.totalorder %s417, %s418
      %p430 = scmp.eq.s32.totalorder %s41, 1
      %p431 = por %p429, %p430
      %p433 = scmp.ne.s32.totalorder %s418, %s432
      %p434 = scmp.eq.s32.totalorder %s41, 0
      %p435 = por %p433, %p434
      %s437 = sadd.s32 %s436, 1
      %p440 = scmp.eq.s32.totalorder %s35, 1
      %p441 = scmp.ne.s32.totalorder %s436, %s438
      %p442 = scmp.eq.s32.totalorder %s35, 0
      %p443 = por %p441, %p442
      %p444 = scmp.ne.s32.totalorder %s436, %s438
      %p445 = scmp.eq.s32.totalorder %s40, 1
      %p446 = por %p444, %p445
      %p447 = scmp.ne.s32.totalorder %s438, %s439
      %p448 = scmp.eq.s32.totalorder %s40, 0
      %p449 = por %p447, %p448
      %p450 = scmp.ne.s32.totalorder %s438, %s439
      %p451 = scmp.eq.s32.totalorder %s41, 1
      %p452 = por %p450, %p451
      %p454 = scmp.ne.s32.totalorder %s439, %s453
      %p455 = scmp.eq.s32.totalorder %s41, 0
      %p456 = por %p454, %p455
      %s458 = sadd.s32 %s457, 1
      %p461 = scmp.eq.s32.totalorder %s35, 1
      %p462 = scmp.ne.s32.totalorder %s457, %s459
      %p463 = scmp.eq.s32.totalorder %s35, 0
      %p464 = por %p462, %p463
      %p465 = scmp.ne.s32.totalorder %s457, %s459
      %p466 = scmp.eq.s32.totalorder %s40, 1
      %p467 = por %p465, %p466
      %p468 = scmp.ne.s32.totalorder %s459, %s460
      %p469 = scmp.eq.s32.totalorder %s40, 0
      %p470 = por %p468, %p469
      %p471 = scmp.ne.s32.totalorder %s459, %s460
      %p472 = scmp.eq.s32.totalorder %s41, 1
      %p473 = por %p471, %p472
      %p475 = scmp.ne.s32.totalorder %s460, %s474
      %p476 = scmp.eq.s32.totalorder %s41, 0
      %p477 = por %p475, %p476
      %s479 = sadd.s32 %s478, 1
      %p482 = scmp.eq.s32.totalorder %s35, 1
      %p483 = scmp.ne.s32.totalorder %s478, %s480
      %p484 = scmp.eq.s32.totalorder %s35, 0
      %p485 = por %p483, %p484
      %p486 = scmp.ne.s32.totalorder %s478, %s480
      %p487 = scmp.eq.s32.totalorder %s40, 1
      %p488 = por %p486, %p487
      %p489 = scmp.ne.s32.totalorder %s480, %s481
      %p490 = scmp.eq.s32.totalorder %s40, 0
      %p491 = por %p489, %p490
      %p492 = scmp.ne.s32.totalorder %s480, %s481
      %p493 = scmp.eq.s32.totalorder %s41, 1
      %p494 = por %p492, %p493
      %p496 = scmp.ne.s32.totalorder %s481, %s495
      %p497 = scmp.eq.s32.totalorder %s41, 0
      %p498 = por %p496, %p497
      %s500 = sadd.s32 %s499, 1
      %p503 = scmp.eq.s32.totalorder %s35, 1
      %p504 = scmp.ne.s32.totalorder %s499, %s501
      %p505 = scmp.eq.s32.totalorder %s35, 0
      %p506 = por %p504, %p505
      %p507 = scmp.ne.s32.totalorder %s499, %s501
      %p508 = scmp.eq.s32.totalorder %s40, 1
      %p509 = por %p507, %p508
      %p510 = scmp.ne.s32.totalorder %s501, %s502
      %p511 = scmp.eq.s32.totalorder %s40, 0
      %p512 = por %p510, %p511
      %p513 = scmp.ne.s32.totalorder %s501, %s502
      %p514 = scmp.eq.s32.totalorder %s41, 1
      %p515 = por %p513, %p514
      %p517 = scmp.ne.s32.totalorder %s502, %s516
      %p518 = scmp.eq.s32.totalorder %s41, 0
      %p519 = por %p517, %p518
      %s521 = sadd.s32 %s520, 1
      %p524 = scmp.eq.s32.totalorder %s35, 1
      %p525 = scmp.ne.s32.totalorder %s520, %s522
      %p526 = scmp.eq.s32.totalorder %s35, 0
      %p527 = por %p525, %p526
      %p528 = scmp.ne.s32.totalorder %s520, %s522
      %p529 = scmp.eq.s32.totalorder %s40, 1
      %p530 = por %p528, %p529
      %p531 = scmp.ne.s32.totalorder %s522, %s523
      %p532 = scmp.eq.s32.totalorder %s40, 0
      %p533 = por %p531, %p532
      %p534 = scmp.ne.s32.totalorder %s522, %s523
      %p535 = scmp.eq.s32.totalorder %s41, 1
      %p536 = por %p534, %p535
      %p538 = scmp.ne.s32.totalorder %s523, %s537
      %p539 = scmp.eq.s32.totalorder %s41, 0
      %p540 = por %p538, %p539
      %s542 = sadd.s32 %s541, 1
      %p545 = scmp.eq.s32.totalorder %s35, 1
      %p546 = scmp.ne.s32.totalorder %s541, %s543
      %p547 = scmp.eq.s32.totalorder %s35, 0
      %p548 = por %p546, %p547
      %p549 = scmp.ne.s32.totalorder %s541, %s543
      %p550 = scmp.eq.s32.totalorder %s40, 1
      %p551 = por %p549, %p550
      %p552 = scmp.ne.s32.totalorder %s543, %s544
      %p553 = scmp.eq.s32.totalorder %s40, 0
      %p554 = por %p552, %p553
      %p555 = scmp.ne.s32.totalorder %s543, %s544
      %p556 = scmp.eq.s32.totalorder %s41, 1
      %p557 = por %p555, %p556
      %p559 = scmp.ne.s32.totalorder %s544, %s558
      %p560 = scmp.eq.s32.totalorder %s41, 0
      %p561 = por %p559, %p560
      %s562 = ssub.s32 %s35, %s42
      %p563 = scmp.eq.s32.totalorder %s562, 0
      %s565 = sadd.s32 %s564, 1
      %s566 = scalar_select %p563, %s564, %s565
      %p569 = pneg %p563
      %p570 = scmp.eq.s32.totalorder %s35, 1
      %p571 = por %p569, %p570
      %p572 = scmp.ne.s32.totalorder %s564, %s567
      %p573 = scmp.eq.s32.totalorder %s35, 0
      %p574 = por %p572, %p573
      %p575 = scmp.ne.s32.totalorder %s564, %s567
      %p576 = scmp.eq.s32.totalorder %s40, 1
      %p577 = por %p575, %p576
      %p578 = scmp.ne.s32.totalorder %s567, %s568
      %p579 = scmp.eq.s32.totalorder %s40, 0
      %p580 = por %p578, %p579
      %p581 = scmp.ne.s32.totalorder %s567, %s568
      %p582 = scmp.eq.s32.totalorder %s41, 1
      %p583 = por %p581, %p582
      %p585 = scmp.ne.s32.totalorder %s568, %s584
      %p586 = scmp.eq.s32.totalorder %s41, 0
      %p587 = por %p585, %p586
      %p588 = scmp.le.s32.totalorder 1, %s35
      %p589 = scmp.lt.s32.totalorder %s35, 3
      %p590 = pnand %p588, %p589
      %p591 = pneg %p590
      // Predicated region
      $region9: #{tpu_custom_call.1} parent=5 // pred_check
        _
      $region10: #{tpu_custom_call.1} parent=5 // pred_check_branch
        %593 = sbr.rel (%p590) target = $region12
      $region11: #{tpu_custom_call.1} parent=5 // pred_region
        %s594 = ssub.s32 %s35, 1
        // Predicated region
        $region13: #{tpu_custom_call.1} parent=11 // pred_check
          %p595 = pneg %p134
        $region14: #{tpu_custom_call.1} parent=11 // pred_check_branch
          %597 = sbr.rel (%p595) target = $region16
        $region15: #{tpu_custom_call.1} parent=11 // pred_region
          _
        $region16: #{tpu_custom_call.1} parent=11 // pred_fallthru
          _
        // Predicated region
        $region17: #{tpu_custom_call.1} parent=11 // pred_check
          %p598 = pneg %p155
        $region18: #{tpu_custom_call.1} parent=11 // pred_check_branch
          %600 = sbr.rel (%p598) target = $region20
        $region19: #{tpu_custom_call.1} parent=11 // pred_region
          %602 = vsyncadd [#allocation3], 0
          %s604 = sshll.u32 %s4, 4
          %s605 = int_to_ptr.hbm [resolvable:$true] %s604
          %s606 = sshll.u32 [#allocation2], 4
          %s607 = int_to_ptr.vmem [resolvable:$true] %s606
          %609 = dma.hbm_to_vmem [thread:$0]  %s605, 16, %s607, [#allocation3]
        $region20: #{tpu_custom_call.1} parent=11 // pred_fallthru
          _
        // Predicated region
        $region21: #{tpu_custom_call.1} parent=11 // pred_check
          %p610 = pneg %p176
        $region22: #{tpu_custom_call.1} parent=11 // pred_check_branch
          %612 = sbr.rel (%p610) target = $region24
        $region23: #{tpu_custom_call.1} parent=11 // pred_region
          _
        $region24: #{tpu_custom_call.1} parent=11 // pred_fallthru
          _
        // Predicated region
        $region25: #{tpu_custom_call.1} parent=11 // pred_check
          %p613 = pneg %p197
        $region26: #{tpu_custom_call.1} parent=11 // pred_check_branch
          %615 = sbr.rel (%p613) target = $region28
        $region27: #{tpu_custom_call.1} parent=11 // pred_region
          %617 = vsyncadd [#allocation6], 0
          %s619 = sshll.u32 %s6, 4
          %s620 = int_to_ptr.hbm [resolvable:$true] %s619
          %s621 = sshll.u32 [#allocation5], 4
          %s622 = int_to_ptr.vmem [resolvable:$true] %s621
          %624 = dma.hbm_to_vmem [thread:$0]  %s620, 16, %s622, [#allocation6]
        $region28: #{tpu_custom_call.1} parent=11 // pred_fallthru
          _
        // Predicated region
        $region29: #{tpu_custom_call.1} parent=11 // pred_check
          %p625 = pneg %p218
        $region30: #{tpu_custom_call.1} parent=11 // pred_check_branch
          %627 = sbr.rel (%p625) target = $region32
        $region31: #{tpu_custom_call.1} parent=11 // pred_region
          _
        $region32: #{tpu_custom_call.1} parent=11 // pred_fallthru
          _
        // Predicated region
        $region33: #{tpu_custom_call.1} parent=11 // pred_check
          %p628 = pneg %p239
        $region34: #{tpu_custom_call.1} parent=11 // pred_check_branch
          %630 = sbr.rel (%p628) target = $region36
        $region35: #{tpu_custom_call.1} parent=11 // pred_region
          _
        $region36: #{tpu_custom_call.1} parent=11 // pred_fallthru
          _
        // Predicated region
        $region37: #{tpu_custom_call.1} parent=11 // pred_check
          %p631 = pneg %p260
        $region38: #{tpu_custom_call.1} parent=11 // pred_check_branch
          %633 = sbr.rel (%p631) target = $region40
        $region39: #{tpu_custom_call.1} parent=11 // pred_region
          _
        $region40: #{tpu_custom_call.1} parent=11 // pred_fallthru
          _
        // Predicated region
        $region41: #{tpu_custom_call.1} parent=11 // pred_check
          %p634 = pneg %p281
        $region42: #{tpu_custom_call.1} parent=11 // pred_check_branch
          %636 = sbr.rel (%p634) target = $region44
        $region43: #{tpu_custom_call.1} parent=11 // pred_region
          _
        $region44: #{tpu_custom_call.1} parent=11 // pred_fallthru
          _
        // Predicated region
        $region45: #{tpu_custom_call.1} parent=11 // pred_check
          %p637 = pneg %p302
        $region46: #{tpu_custom_call.1} parent=11 // pred_check_branch
          %639 = sbr.rel (%p637) target = $region48
        $region47: #{tpu_custom_call.1} parent=11 // pred_region
          _
        $region48: #{tpu_custom_call.1} parent=11 // pred_fallthru
          _
        // Predicated region
        $region49: #{tpu_custom_call.1} parent=11 // pred_check
          %p640 = pneg %p323
        $region50: #{tpu_custom_call.1} parent=11 // pred_check_branch
          %642 = sbr.rel (%p640) target = $region52
        $region51: #{tpu_custom_call.1} parent=11 // pred_region
          _
        $region52: #{tpu_custom_call.1} parent=11 // pred_fallthru
          _
        // Predicated region
        $region53: #{tpu_custom_call.1} parent=11 // pred_check
          %p643 = pneg %p344
        $region54: #{tpu_custom_call.1} parent=11 // pred_check_branch
          %645 = sbr.rel (%p643) target = $region56
        $region55: #{tpu_custom_call.1} parent=11 // pred_region
          _
        $region56: #{tpu_custom_call.1} parent=11 // pred_fallthru
          _
        // Predicated region
        $region57: #{tpu_custom_call.1} parent=11 // pred_check
          %p646 = pneg %p365
        $region58: #{tpu_custom_call.1} parent=11 // pred_check_branch
          %648 = sbr.rel (%p646) target = $region60
        $region59: #{tpu_custom_call.1} parent=11 // pred_region
          _
        $region60: #{tpu_custom_call.1} parent=11 // pred_fallthru
          _
        // Predicated region
        $region61: #{tpu_custom_call.1} parent=11 // pred_check
          %p649 = pneg %p386
        $region62: #{tpu_custom_call.1} parent=11 // pred_check_branch
          %651 = sbr.rel (%p649) target = $region64
        $region63: #{tpu_custom_call.1} parent=11 // pred_region
          _
        $region64: #{tpu_custom_call.1} parent=11 // pred_fallthru
          _
        // Predicated region
        $region65: #{tpu_custom_call.1} parent=11 // pred_check
          %p652 = pneg %p407
        $region66: #{tpu_custom_call.1} parent=11 // pred_check_branch
          %654 = sbr.rel (%p652) target = $region68
        $region67: #{tpu_custom_call.1} parent=11 // pred_region
          _
        $region68: #{tpu_custom_call.1} parent=11 // pred_fallthru
          _
        // Predicated region
        $region69: #{tpu_custom_call.1} parent=11 // pred_check
          %p655 = pneg %p428
        $region70: #{tpu_custom_call.1} parent=11 // pred_check_branch
          %657 = sbr.rel (%p655) target = $region72
        $region71: #{tpu_custom_call.1} parent=11 // pred_region
          _
        $region72: #{tpu_custom_call.1} parent=11 // pred_fallthru
          _
        // Predicated region
        $region73: #{tpu_custom_call.1} parent=11 // pred_check
          %p658 = pneg %p449
        $region74: #{tpu_custom_call.1} parent=11 // pred_check_branch
          %660 = sbr.rel (%p658) target = $region76
        $region75: #{tpu_custom_call.1} parent=11 // pred_region
          _
        $region76: #{tpu_custom_call.1} parent=11 // pred_fallthru
          _
        // Predicated region
        $region77: #{tpu_custom_call.1} parent=11 // pred_check
          %p661 = pneg %p470
        $region78: #{tpu_custom_call.1} parent=11 // pred_check_branch
          %663 = sbr.rel (%p661) target = $region80
        $region79: #{tpu_custom_call.1} parent=11 // pred_region
          _
        $region80: #{tpu_custom_call.1} parent=11 // pred_fallthru
          _
        // Predicated region
        $region81: #{tpu_custom_call.1} parent=11 // pred_check
          %p664 = pneg %p491
        $region82: #{tpu_custom_call.1} parent=11 // pred_check_branch
          %666 = sbr.rel (%p664) target = $region84
        $region83: #{tpu_custom_call.1} parent=11 // pred_region
          _
        $region84: #{tpu_custom_call.1} parent=11 // pred_fallthru
          _
        // Predicated region
        $region85: #{tpu_custom_call.1} parent=11 // pred_check
          %p667 = pneg %p512
        $region86: #{tpu_custom_call.1} parent=11 // pred_check_branch
          %669 = sbr.rel (%p667) target = $region88
        $region87: #{tpu_custom_call.1} parent=11 // pred_region
          %671 = vsyncadd [#allocation6], 0
          %s672 = sshll.u32 %s21, 4
          %s673 = int_to_ptr.hbm [resolvable:$true] %s672
          %s674 = sshll.u32 [#allocation7], 4
          %s675 = int_to_ptr.vmem [resolvable:$true] %s674
          %680 = dma.hbm_to_vmem [thread:$0]  %s673, 512, %s675, [#allocation6], 128, 128, 8
        $region88: #{tpu_custom_call.1} parent=11 // pred_fallthru
          _
        // Predicated region
        $region89: #{tpu_custom_call.1} parent=11 // pred_check
          %p681 = pneg %p533
        $region90: #{tpu_custom_call.1} parent=11 // pred_check_branch
          %683 = sbr.rel (%p681) target = $region92
        $region91: #{tpu_custom_call.1} parent=11 // pred_region
          _
        $region92: #{tpu_custom_call.1} parent=11 // pred_fallthru
          _
        // Predicated region
        $region93: #{tpu_custom_call.1} parent=11 // pred_check
          %p684 = pneg %p554
        $region94: #{tpu_custom_call.1} parent=11 // pred_check_branch
          %686 = sbr.rel (%p684) target = $region96
        $region95: #{tpu_custom_call.1} parent=11 // pred_region
          _
        $region96: #{tpu_custom_call.1} parent=11 // pred_fallthru
          _
      $region12: #{tpu_custom_call.1} parent=5 // pred_fallthru
        _
      %p687 = scmp.lt.s32.totalorder %s35, 2
      // Predicated region
      $region97: #{tpu_custom_call.1} parent=5 // pred_check
        %p688 = pneg %p687
      $region98: #{tpu_custom_call.1} parent=5 // pred_check_branch
        %690 = sbr.rel (%p688) target = $region100
      $region99: #{tpu_custom_call.1} parent=5 // pred_region
        // Predicated region
        $region101: #{tpu_custom_call.1} parent=99 // pred_check
          %p691 = pneg %p55
        $region102: #{tpu_custom_call.1} parent=99 // pred_check_branch
          %693 = sbr.rel (%p691) target = $region104
        $region103: #{tpu_custom_call.1} parent=99 // pred_region
          %s694 = smul.u32 16, %s35
          %p695 = scmp.lt.s32.totalorder %s694, 31
          %s696 = scalar_select %p695, %s694, 31
          %s697 = smul.addr %s696, 8
          %s698 = scalar_lea.vmem %s0, %s697
          %s699 = smul.u32 16, %s35
        $region104: #{tpu_custom_call.1} parent=99 // pred_fallthru
          _
        // Predicated region
        $region105: #{tpu_custom_call.1} parent=99 // pred_check
          %p700 = pneg %p81
        $region106: #{tpu_custom_call.1} parent=99 // pred_check_branch
          %702 = sbr.rel (%p700) target = $region108
        $region107: #{tpu_custom_call.1} parent=99 // pred_region
          %s703 = smul.u32 16, %s35
          %p704 = scmp.lt.s32.totalorder %s703, 31
          %s705 = scalar_select %p704, %s703, 31
          %s706 = smul.addr %s705, 8
          %s707 = scalar_lea.vmem %s1, %s706
          %s708 = smul.u32 16, %s35
        $region108: #{tpu_custom_call.1} parent=99 // pred_fallthru
          _
        // Predicated region
        $region109: #{tpu_custom_call.1} parent=99 // pred_check
          %p709 = pneg %p107
        $region110: #{tpu_custom_call.1} parent=99 // pred_check_branch
          %711 = sbr.rel (%p709) target = $region112
        $region111: #{tpu_custom_call.1} parent=99 // pred_region
          %s712 = smul.u32 16, %s35
          %p713 = scmp.lt.s32.totalorder %s712, 31
          %s714 = scalar_select %p713, %s712, 31
          %s715 = smul.addr %s714, 8
          %s716 = scalar_lea.vmem %s2, %s715
          %s717 = smul.u32 16, %s35
        $region112: #{tpu_custom_call.1} parent=99 // pred_fallthru
          _
      $region100: #{tpu_custom_call.1} parent=5 // pred_fallthru
        _
      %p718 = scmp.le.s32.totalorder 1, %s35
      %p719 = scmp.lt.s32.totalorder %s35, 3
      %p720 = pnand %p718, %p719
      %p721 = pneg %p720
      // Predicated region
      $region113: #{tpu_custom_call.1} parent=5 // pred_check
        _
      $region114: #{tpu_custom_call.1} parent=5 // pred_check_branch
        %723 = sbr.rel (%p720) target = $region116
      $region115: #{tpu_custom_call.1} parent=5 // pred_region
        %s724 = ssub.s32 %s35, 1
        // Predicated region
        $region117: #{tpu_custom_call.1} parent=115 // pred_check
          %p725 = pneg %p155
        $region118: #{tpu_custom_call.1} parent=115 // pred_check_branch
          %727 = sbr.rel (%p725) target = $region120
        $region119: #{tpu_custom_call.1} parent=115 // pred_region
          %729 = dma.done [#allocation3], 16
        $region120: #{tpu_custom_call.1} parent=115 // pred_fallthru
          _
        // Predicated region
        $region121: #{tpu_custom_call.1} parent=115 // pred_check
          %p730 = pneg %p197
        $region122: #{tpu_custom_call.1} parent=115 // pred_check_branch
          %732 = sbr.rel (%p730) target = $region124
        $region123: #{tpu_custom_call.1} parent=115 // pred_region
          %734 = dma.done [#allocation6], 16
        $region124: #{tpu_custom_call.1} parent=115 // pred_fallthru
          _
        // Predicated region
        $region125: #{tpu_custom_call.1} parent=115 // pred_check
          %p735 = pneg %p512
        $region126: #{tpu_custom_call.1} parent=115 // pred_check_branch
          %737 = sbr.rel (%p735) target = $region128
        $region127: #{tpu_custom_call.1} parent=115 // pred_region
          %739 = dma.done [#allocation6], 512
        $region128: #{tpu_custom_call.1} parent=115 // pred_fallthru
          _
        %s740 = smul.u32 16, %s40
        %p741 = scmp.lt.s32.totalorder %s740, 31
        %s742 = scalar_select %p741, %s740, 31
        %s743 = smul.addr %s742, 8
        %s744 = scalar_lea.vmem %s0, %s743
        %p745 = pneg %p61
        %p746 = pneg %p58
        %s747 = smul.u32 16, %s40
        %p748 = scmp.lt.s32.totalorder %s747, 31
        %s749 = scalar_select %p748, %s747, 31
        %s750 = smul.addr %s749, 8
        %s751 = scalar_lea.vmem %s1, %s750
        %p752 = pneg %p87
        %p753 = pneg %p84
        %s754 = smul.u32 16, %s40
        %p755 = scmp.lt.s32.totalorder %s754, 31
        %s756 = scalar_select %p755, %s754, 31
        %s757 = smul.addr %s756, 8
        %s758 = scalar_lea.vmem %s2, %s757
        %p759 = pneg %p113
        %p760 = pneg %p110
        %p761 = pneg %p134
        %p762 = pneg %p131
        %p763 = pneg %p155
        %p764 = pneg %p152
        %p765 = pneg %p176
        %p766 = pneg %p173
        %p767 = pneg %p197
        %p768 = pneg %p194
        %p769 = pneg %p218
        %p770 = pneg %p215
        %p771 = pneg %p239
        %p772 = pneg %p236
        %p773 = pneg %p260
        %p774 = pneg %p257
        %p775 = pneg %p281
        %p776 = pneg %p278
        %p777 = pneg %p302
        %p778 = pneg %p299
        %p779 = pneg %p323
        %p780 = pneg %p320
        %p781 = pneg %p344
        %p782 = pneg %p341
        %p783 = pneg %p365
        %p784 = pneg %p362
        %p785 = pneg %p386
        %p786 = pneg %p383
        %p787 = pneg %p407
        %p788 = pneg %p404
        %p789 = pneg %p428
        %p790 = pneg %p425
        %p791 = pneg %p449
        %p792 = pneg %p446
        %p793 = pneg %p470
        %p794 = pneg %p467
        %p795 = pneg %p491
        %p796 = pneg %p488
        %p797 = pneg %p512
        %p798 = pneg %p509
        %p799 = pneg %p533
        %p800 = pneg %p530
        %p801 = pneg %p554
        %p802 = pneg %p551
        %p803 = pneg %p580
        %p804 = pneg %p577
        %s805 = sand.u32 %s567, 1
        %s806 = scalar_lea.sflag [#allocation4], %s805
        %s807 = sand.u32 %s567, 1
        %s808 = smul.addr %s807, 128
        %s809 = scalar_lea.vmem [#allocation8], %s808
        %s810 = smul.u32 16, %s40
        %p811 = scmp.lt.s32.totalorder %s810, 31
        %s812 = scalar_select %p811, %s810, 31
        %s813 = smul.addr %s812, 8
        %s814 = scalar_lea.vmem %s0, %s813
        %s815 = smul.u32 16, %s40
        %s816 = smul.u32 16, %s40
        %p817 = scmp.lt.s32.totalorder %s816, 31
        %s818 = scalar_select %p817, %s816, 31
        %s819 = smul.addr %s818, 8
        %s820 = scalar_lea.vmem %s1, %s819
        %s821 = smul.u32 16, %s40
        %s822 = smul.u32 16, %s40
        %p823 = scmp.lt.s32.totalorder %s822, 31
        %s824 = scalar_select %p823, %s822, 31
        %s825 = smul.addr %s824, 8
        %s826 = scalar_lea.vmem %s2, %s825
        %s827 = smul.u32 16, %s40
        %s828 = smul.u32 16, %s40
        %v829 = vld [vmem:[%s814] sm:$0xff]
        %v830 = vld [vmem:[%s814 + $0x8] sm:$0xff]
        %v831 = vld [vmem:[%s814 + $0x10] sm:$0xff]
        %v832 = vld [vmem:[%s814 + $0x18] sm:$0xff]
        %v833 = vld [vmem:[%s814 + $0x20] sm:$0xff]
        %v834 = vld [vmem:[%s814 + $0x28] sm:$0xff]
        %v835 = vld [vmem:[%s814 + $0x30] sm:$0xff]
        %v836 = vld [vmem:[%s814 + $0x38] sm:$0xff]
        %v837 = vld [vmem:[%s814 + $0x40] sm:$0xff]
        %v838 = vld [vmem:[%s814 + $0x48] sm:$0xff]
        %v839 = vld [vmem:[%s814 + $0x50] sm:$0xff]
        %v840 = vld [vmem:[%s814 + $0x58] sm:$0xff]
        %v841 = vld [vmem:[%s814 + $0x60] sm:$0xff]
        %v842 = vld [vmem:[%s814 + $0x68] sm:$0xff]
        %v843 = vld [vmem:[%s814 + $0x70] sm:$0xff]
        %v844 = vld [vmem:[%s814 + $0x78] sm:$0xff]
        %v845 = vld [vmem:[%s820] sm:$0xff]
        %v846 = vld [vmem:[%s820 + $0x8] sm:$0xff]
        %v847 = vld [vmem:[%s820 + $0x10] sm:$0xff]
        %v848 = vld [vmem:[%s820 + $0x18] sm:$0xff]
        %v849 = vld [vmem:[%s820 + $0x20] sm:$0xff]
        %v850 = vld [vmem:[%s820 + $0x28] sm:$0xff]
        %v851 = vld [vmem:[%s820 + $0x30] sm:$0xff]
        %v852 = vld [vmem:[%s820 + $0x38] sm:$0xff]
        %v853 = vld [vmem:[%s820 + $0x40] sm:$0xff]
        %v854 = vld [vmem:[%s820 + $0x48] sm:$0xff]
        %v855 = vld [vmem:[%s820 + $0x50] sm:$0xff]
        %v856 = vld [vmem:[%s820 + $0x58] sm:$0xff]
        %v857 = vld [vmem:[%s820 + $0x60] sm:$0xff]
        %v858 = vld [vmem:[%s820 + $0x68] sm:$0xff]
        %v859 = vld [vmem:[%s820 + $0x70] sm:$0xff]
        %v860 = vld [vmem:[%s820 + $0x78] sm:$0xff]
        %v861 = vld [vmem:[%s826] sm:$0xff]
        %v862 = vld [vmem:[%s826 + $0x8] sm:$0xff]
        %v863 = vld [vmem:[%s826 + $0x10] sm:$0xff]
        %v864 = vld [vmem:[%s826 + $0x18] sm:$0xff]
        %v865 = vld [vmem:[%s826 + $0x20] sm:$0xff]
        %v866 = vld [vmem:[%s826 + $0x28] sm:$0xff]
        %v867 = vld [vmem:[%s826 + $0x30] sm:$0xff]
        %v868 = vld [vmem:[%s826 + $0x38] sm:$0xff]
        %v869 = vld [vmem:[%s826 + $0x40] sm:$0xff]
        %v870 = vld [vmem:[%s826 + $0x48] sm:$0xff]
        %v871 = vld [vmem:[%s826 + $0x50] sm:$0xff]
        %v872 = vld [vmem:[%s826 + $0x58] sm:$0xff]
        %v873 = vld [vmem:[%s826 + $0x60] sm:$0xff]
        %v874 = vld [vmem:[%s826 + $0x68] sm:$0xff]
        %v875 = vld [vmem:[%s826 + $0x70] sm:$0xff]
        %v876 = vld [vmem:[%s826 + $0x78] sm:$0xff]
        %v877 = vld [vmem:[%s3] sm:$0xff]
        %v878 = vld [vmem:[%s3 + $0x8] sm:$0xff]
        %v879 = vld [vmem:[%s3 + $0x10] sm:$0xff]
        %v880 = vld [vmem:[%s3 + $0x18] sm:$0xff]
        %v881 = vld [vmem:[%s5] sm:$0xff]
        %v882 = vld [vmem:[%s5 + $0x8] sm:$0xff]
        %v883 = vld [vmem:[%s5 + $0x10] sm:$0xff]
        %v884 = vld [vmem:[%s5 + $0x18] sm:$0xff]
        %v885 = vld [vmem:[%s9] sm:$0xff]
        %v886 = vld [vmem:[%s9 + $0x8] sm:$0xff]
        %v887 = vld [vmem:[%s9 + $0x10] sm:$0xff]
        %v888 = vld [vmem:[%s9 + $0x18] sm:$0xff]
        %v889 = vld [vmem:[%s10] sm:$0xff]
        %v890 = vld [vmem:[%s10 + $0x8] sm:$0xff]
        %v891 = vld [vmem:[%s10 + $0x10] sm:$0xff]
        %v892 = vld [vmem:[%s10 + $0x18] sm:$0xff]
        %v893 = vld [vmem:[%s11] sm:$0xff]
        %v894 = vld [vmem:[%s11 + $0x8] sm:$0xff]
        %v895 = vld [vmem:[%s11 + $0x10] sm:$0xff]
        %v896 = vld [vmem:[%s11 + $0x18] sm:$0xff]
        %v897 = vld [vmem:[%s14] sm:$0xff]
        %v898 = vld [vmem:[%s14 + $0x8] sm:$0xff]
        %v899 = vld [vmem:[%s14 + $0x10] sm:$0xff]
        %v900 = vld [vmem:[%s14 + $0x18] sm:$0xff]
        %v901 = vld [vmem:[%s15] sm:$0xff]
        %v902 = vld [vmem:[%s15 + $0x8] sm:$0xff]
        %v903 = vld [vmem:[%s15 + $0x10] sm:$0xff]
        %v904 = vld [vmem:[%s15 + $0x18] sm:$0xff]
        %v905 = vld [vmem:[%s16] sm:$0xff]
        %v906 = vld [vmem:[%s16 + $0x8] sm:$0xff]
        %v907 = vld [vmem:[%s16 + $0x10] sm:$0xff]
        %v908 = vld [vmem:[%s16 + $0x18] sm:$0xff]
        %v909 = vld [vmem:[%s19] sm:$0xff]
        %v910 = vld [vmem:[%s19 + $0x8] sm:$0xff]
        %v911 = vld [vmem:[%s19 + $0x10] sm:$0xff]
        %v912 = vld [vmem:[%s19 + $0x18] sm:$0xff]
        %v913 = vld [vmem:[%s20] sm:$0xff]
        %v914 = vld [vmem:[%s20 + $0x8] sm:$0xff]
        %v915 = vld [vmem:[%s20 + $0x10] sm:$0xff]
        %v916 = vld [vmem:[%s20 + $0x18] sm:$0xff]
        %v917 = vld [vmem:[#allocation7] sm:$0xff]
        %v918 = vld [vmem:[#allocation7 + $0x8] sm:$0xff]
        %v919 = vld [vmem:[#allocation7 + $0x10] sm:$0xff]
        %v920 = vld [vmem:[#allocation7 + $0x18] sm:$0xff]
        %v921 = vld [vmem:[#allocation2] sm:$0x1]
        %v922 = vld [vmem:[#allocation5] sm:$0x1]
        %v923 = vld [vmem:[%s7] sm:$0x1]
        %v924 = vld [vmem:[%s8] sm:$0x1]
        %v925 = vld [vmem:[%s12] sm:$0x1]
        %v926 = vld [vmem:[%s13] sm:$0x1]
        %v927 = vld [vmem:[%s17] sm:$0x1]
        %v928 = vld [vmem:[%s18] sm:$0x1]
        %v929 = vld [vmem:[%s22] sm:$0x1]
        %v930 = vld [vmem:[%s23] sm:$0x1]
        loop: start=0, step=1, limit=2
        $region129: #{tpu_custom_call.1} parent=115 // loop_pre_header
          _
        $region130: #{tpu_custom_call.1} parent=115 // loop_header
          %s932 = sphi 0, %s936
          %p933 = scmp.ge.s32.totalorder %s932, 2
          %v937 = vphi %v861, %v3380
          %v938 = vphi %v862, %v3381
          %v939 = vphi %v863, %v3382
          %v940 = vphi %v864, %v3383
          %v941 = vphi %v865, %v3384
          %v942 = vphi %v866, %v3385
          %v943 = vphi %v867, %v3386
          %v944 = vphi %v868, %v3387
          %v945 = vphi %v869, %v3388
          %v946 = vphi %v870, %v3389
          %v947 = vphi %v871, %v3390
          %v948 = vphi %v872, %v3391
          %v949 = vphi %v873, %v3392
          %v950 = vphi %v874, %v3393
          %v951 = vphi %v875, %v3394
          %v952 = vphi %v876, %v3395
        $region131: #{tpu_custom_call.1} parent=115 // loop_header_branch
          %935 = sbr.rel (%p933) target = $region135
        $region132: #{tpu_custom_call.1} parent=115 // loop_body
          %v954 = vperm.slane %v921, 0
          %vm956 = vcmask 261120
          %v958 = vsel %vm956, %v937, 0
          %v961 = vsel %vm956, %v938, 0
          %v964 = vsel %vm956, %v939, 0
          %v967 = vsel %vm956, %v940, 0
          %v970 = vsel %vm956, %v941, 0
          %v973 = vsel %vm956, %v942, 0
          %v976 = vsel %vm956, %v943, 0
          %v979 = vsel %vm956, %v944, 0
          %v982 = vsel %vm956, %v945, 0
          %v985 = vsel %vm956, %v946, 0
          %v988 = vsel %vm956, %v947, 0
          %v991 = vsel %vm956, %v948, 0
          %v994 = vsel %vm956, %v949, 0
          %v997 = vsel %vm956, %v950, 0
          %v1000 = vsel %vm956, %v951, 0
          %v1003 = vsel %vm956, %v952, 0
          %1005 = vmatpush.msra.mxu0 0.0
          %1006 = vmatpush.msra.mxu0 0.0
          %1007 = vmatpush.msra.mxu0 0.0
          %1008 = vmatpush.msra.mxu0 0.0
          %1009 = vmatpush.msra.mxu0 0.0
          %1010 = vmatpush.msra.mxu0 0.0
          %1011 = vmatpush.msra.mxu0 0.0
          %1012 = vmatpush.msra.mxu0 0.0
          %1013 = vmatpush.msra.mxu0 0.0
          %1014 = vmatpush.msra.mxu0 0.0
          %1015 = vmatpush.msra.mxu0 0.0
          %1016 = vmatpush.msra.mxu0 0.0
          %1017 = vmatpush.msra.mxu0 %v880
          %1018 = vmatpush.msra.mxu0 %v879
          %1019 = vmatpush.msra.mxu0 %v878
          %1020 = vmatpush.msra.mxu0 %v877
          %1021 = vmatmul.f32.gmra.mxu0 %v958
          %v1022 = vpop.f32.mrf.mxu0
          %v1023 = vadd.f32 %v954, %v1022
          %1024 = vmatmul.f32.gmra.mxu0 %v961
          %v1025 = vpop.f32.mrf.mxu0
          %v1026 = vadd.f32 %v954, %v1025
          %1027 = vmatmul.f32.gmra.mxu0 %v964
          %v1028 = vpop.f32.mrf.mxu0
          %v1029 = vadd.f32 %v954, %v1028
          %1030 = vmatmul.f32.gmra.mxu0 %v967
          %v1031 = vpop.f32.mrf.mxu0
          %v1032 = vadd.f32 %v954, %v1031
          %1033 = vmatmul.f32.gmra.mxu0 %v970
          %v1034 = vpop.f32.mrf.mxu0
          %v1035 = vadd.f32 %v954, %v1034
          %1036 = vmatmul.f32.gmra.mxu0 %v973
          %v1037 = vpop.f32.mrf.mxu0
          %v1038 = vadd.f32 %v954, %v1037
          %1039 = vmatmul.f32.gmra.mxu0 %v976
          %v1040 = vpop.f32.mrf.mxu0
          %v1041 = vadd.f32 %v954, %v1040
          %1042 = vmatmul.f32.gmra.mxu0 %v979
          %v1043 = vpop.f32.mrf.mxu0
          %v1044 = vadd.f32 %v954, %v1043
          %1045 = vmatmul.f32.gmra.mxu0 %v982
          %v1046 = vpop.f32.mrf.mxu0
          %v1047 = vadd.f32 %v954, %v1046
          %1048 = vmatmul.f32.gmra.mxu0 %v985
          %v1049 = vpop.f32.mrf.mxu0
          %v1050 = vadd.f32 %v954, %v1049
          %1051 = vmatmul.f32.gmra.mxu0 %v988
          %v1052 = vpop.f32.mrf.mxu0
          %v1053 = vadd.f32 %v954, %v1052
          %1054 = vmatmul.f32.gmra.mxu0 %v991
          %v1055 = vpop.f32.mrf.mxu0
          %v1056 = vadd.f32 %v954, %v1055
          %1057 = vmatmul.f32.gmra.mxu0 %v994
          %v1058 = vpop.f32.mrf.mxu0
          %v1059 = vadd.f32 %v954, %v1058
          %1060 = vmatmul.f32.gmra.mxu0 %v997
          %v1061 = vpop.f32.mrf.mxu0
          %v1062 = vadd.f32 %v954, %v1061
          %1063 = vmatmul.f32.gmra.mxu0 %v1000
          %v1064 = vpop.f32.mrf.mxu0
          %v1065 = vadd.f32 %v954, %v1064
          %1066 = vmatmul.f32.gmra.mxu0 %v1003
          %v1067 = vpop.f32.mrf.mxu0
          %v1068 = vadd.f32 %v954, %v1067
          %1069 = vdwg.mxu0
          %v1071 = vperm.slane %v922, 0
          %1073 = vmatpush.msra.mxu0 0.0
          %1074 = vmatpush.msra.mxu0 0.0
          %1075 = vmatpush.msra.mxu0 0.0
          %1076 = vmatpush.msra.mxu0 0.0
          %1077 = vmatpush.msra.mxu0 0.0
          %1078 = vmatpush.msra.mxu0 0.0
          %1079 = vmatpush.msra.mxu0 0.0
          %1080 = vmatpush.msra.mxu0 0.0
          %1081 = vmatpush.msra.mxu0 0.0
          %1082 = vmatpush.msra.mxu0 0.0
          %1083 = vmatpush.msra.mxu0 0.0
          %1084 = vmatpush.msra.mxu0 0.0
          %1085 = vmatpush.msra.mxu0 %v884
          %1086 = vmatpush.msra.mxu0 %v883
          %1087 = vmatpush.msra.mxu0 %v882
          %1088 = vmatpush.msra.mxu0 %v881
          %1089 = vmatmul.f32.gmra.mxu0 %v958
          %v1090 = vpop.f32.mrf.mxu0
          %v1091 = vadd.f32 %v1071, %v1090
          %1092 = vmatmul.f32.gmra.mxu0 %v961
          %v1093 = vpop.f32.mrf.mxu0
          %v1094 = vadd.f32 %v1071, %v1093
          %1095 = vmatmul.f32.gmra.mxu0 %v964
          %v1096 = vpop.f32.mrf.mxu0
          %v1097 = vadd.f32 %v1071, %v1096
          %1098 = vmatmul.f32.gmra.mxu0 %v967
          %v1099 = vpop.f32.mrf.mxu0
          %v1100 = vadd.f32 %v1071, %v1099
          %1101 = vmatmul.f32.gmra.mxu0 %v970
          %v1102 = vpop.f32.mrf.mxu0
          %v1103 = vadd.f32 %v1071, %v1102
          %1104 = vmatmul.f32.gmra.mxu0 %v973
          %v1105 = vpop.f32.mrf.mxu0
          %v1106 = vadd.f32 %v1071, %v1105
          %1107 = vmatmul.f32.gmra.mxu0 %v976
          %v1108 = vpop.f32.mrf.mxu0
          %v1109 = vadd.f32 %v1071, %v1108
          %1110 = vmatmul.f32.gmra.mxu0 %v979
          %v1111 = vpop.f32.mrf.mxu0
          %v1112 = vadd.f32 %v1071, %v1111
          %1113 = vmatmul.f32.gmra.mxu0 %v982
          %v1114 = vpop.f32.mrf.mxu0
          %v1115 = vadd.f32 %v1071, %v1114
          %1116 = vmatmul.f32.gmra.mxu0 %v985
          %v1117 = vpop.f32.mrf.mxu0
          %v1118 = vadd.f32 %v1071, %v1117
          %1119 = vmatmul.f32.gmra.mxu0 %v988
          %v1120 = vpop.f32.mrf.mxu0
          %v1121 = vadd.f32 %v1071, %v1120
          %1122 = vmatmul.f32.gmra.mxu0 %v991
          %v1123 = vpop.f32.mrf.mxu0
          %v1124 = vadd.f32 %v1071, %v1123
          %1125 = vmatmul.f32.gmra.mxu0 %v994
          %v1126 = vpop.f32.mrf.mxu0
          %v1127 = vadd.f32 %v1071, %v1126
          %1128 = vmatmul.f32.gmra.mxu0 %v997
          %v1129 = vpop.f32.mrf.mxu0
          %v1130 = vadd.f32 %v1071, %v1129
          %1131 = vmatmul.f32.gmra.mxu0 %v1000
          %v1132 = vpop.f32.mrf.mxu0
          %v1133 = vadd.f32 %v1071, %v1132
          %1134 = vmatmul.f32.gmra.mxu0 %v1003
          %v1135 = vpop.f32.mrf.mxu0
          %v1136 = vadd.f32 %v1071, %v1135
          %1137 = vdwg.mxu0
          %vm1138 = vcmask 64512
          %v1140 = vsel %vm1138, %v829, 0
          %1142 = vmatpush.msra.mxu0 0.0
          %1143 = vmatpush.msra.mxu0 0.0
          %1144 = vmatpush.msra.mxu0 0.0
          %1145 = vmatpush.msra.mxu0 0.0
          %1146 = vmatpush.msra.mxu0 0.0
          %1147 = vmatpush.msra.mxu0 0.0
          %1148 = vmatpush.msra.mxu0 0.0
          %1149 = vmatpush.msra.mxu0 0.0
          %1150 = vmatpush.msra.mxu0 0.0
          %1151 = vmatpush.msra.mxu0 0.0
          %1152 = vmatpush.msra.mxu0 0.0
          %1153 = vmatpush.msra.mxu0 0.0
          %1154 = vmatpush.msra.mxu0 0.0
          %1155 = vmatpush.msra.mxu0 0.0
          %1156 = vmatpush.msra.mxu0 0.0
          %1157 = vmatpush.msra.mxu0 %v1023
          %1158 = vmatmul.f32.gmra.mxu0 %v1140
          %v1159 = vpop.f32.mrf.mxu0
          %v1160 = vadd.f32 0.0, %v1159
          %1161 = vdwg.mxu0
          %v1163 = vsel %vm1138, %v830, 0
          %1165 = vmatpush.msra.mxu0 0.0
          %1166 = vmatpush.msra.mxu0 0.0
          %1167 = vmatpush.msra.mxu0 0.0
          %1168 = vmatpush.msra.mxu0 0.0
          %1169 = vmatpush.msra.mxu0 0.0
          %1170 = vmatpush.msra.mxu0 0.0
          %1171 = vmatpush.msra.mxu0 0.0
          %1172 = vmatpush.msra.mxu0 0.0
          %1173 = vmatpush.msra.mxu0 0.0
          %1174 = vmatpush.msra.mxu0 0.0
          %1175 = vmatpush.msra.mxu0 0.0
          %1176 = vmatpush.msra.mxu0 0.0
          %1177 = vmatpush.msra.mxu0 0.0
          %1178 = vmatpush.msra.mxu0 0.0
          %1179 = vmatpush.msra.mxu0 0.0
          %1180 = vmatpush.msra.mxu0 %v1026
          %1181 = vmatmul.f32.gmra.mxu0 %v1163
          %v1182 = vpop.f32.mrf.mxu0
          %v1183 = vadd.f32 0.0, %v1182
          %1184 = vdwg.mxu0
          %v1186 = vsel %vm1138, %v831, 0
          %1188 = vmatpush.msra.mxu0 0.0
          %1189 = vmatpush.msra.mxu0 0.0
          %1190 = vmatpush.msra.mxu0 0.0
          %1191 = vmatpush.msra.mxu0 0.0
          %1192 = vmatpush.msra.mxu0 0.0
          %1193 = vmatpush.msra.mxu0 0.0
          %1194 = vmatpush.msra.mxu0 0.0
          %1195 = vmatpush.msra.mxu0 0.0
          %1196 = vmatpush.msra.mxu0 0.0
          %1197 = vmatpush.msra.mxu0 0.0
          %1198 = vmatpush.msra.mxu0 0.0
          %1199 = vmatpush.msra.mxu0 0.0
          %1200 = vmatpush.msra.mxu0 0.0
          %1201 = vmatpush.msra.mxu0 0.0
          %1202 = vmatpush.msra.mxu0 0.0
          %1203 = vmatpush.msra.mxu0 %v1029
          %1204 = vmatmul.f32.gmra.mxu0 %v1186
          %v1205 = vpop.f32.mrf.mxu0
          %v1206 = vadd.f32 0.0, %v1205
          %1207 = vdwg.mxu0
          %v1209 = vsel %vm1138, %v832, 0
          %1211 = vmatpush.msra.mxu0 0.0
          %1212 = vmatpush.msra.mxu0 0.0
          %1213 = vmatpush.msra.mxu0 0.0
          %1214 = vmatpush.msra.mxu0 0.0
          %1215 = vmatpush.msra.mxu0 0.0
          %1216 = vmatpush.msra.mxu0 0.0
          %1217 = vmatpush.msra.mxu0 0.0
          %1218 = vmatpush.msra.mxu0 0.0
          %1219 = vmatpush.msra.mxu0 0.0
          %1220 = vmatpush.msra.mxu0 0.0
          %1221 = vmatpush.msra.mxu0 0.0
          %1222 = vmatpush.msra.mxu0 0.0
          %1223 = vmatpush.msra.mxu0 0.0
          %1224 = vmatpush.msra.mxu0 0.0
          %1225 = vmatpush.msra.mxu0 0.0
          %1226 = vmatpush.msra.mxu0 %v1032
          %1227 = vmatmul.f32.gmra.mxu0 %v1209
          %v1228 = vpop.f32.mrf.mxu0
          %v1229 = vadd.f32 0.0, %v1228
          %1230 = vdwg.mxu0
          %v1232 = vsel %vm1138, %v833, 0
          %1234 = vmatpush.msra.mxu0 0.0
          %1235 = vmatpush.msra.mxu0 0.0
          %1236 = vmatpush.msra.mxu0 0.0
          %1237 = vmatpush.msra.mxu0 0.0
          %1238 = vmatpush.msra.mxu0 0.0
          %1239 = vmatpush.msra.mxu0 0.0
          %1240 = vmatpush.msra.mxu0 0.0
          %1241 = vmatpush.msra.mxu0 0.0
          %1242 = vmatpush.msra.mxu0 0.0
          %1243 = vmatpush.msra.mxu0 0.0
          %1244 = vmatpush.msra.mxu0 0.0
          %1245 = vmatpush.msra.mxu0 0.0
          %1246 = vmatpush.msra.mxu0 0.0
          %1247 = vmatpush.msra.mxu0 0.0
          %1248 = vmatpush.msra.mxu0 0.0
          %1249 = vmatpush.msra.mxu0 %v1035
          %1250 = vmatmul.f32.gmra.mxu0 %v1232
          %v1251 = vpop.f32.mrf.mxu0
          %v1252 = vadd.f32 0.0, %v1251
          %1253 = vdwg.mxu0
          %v1255 = vsel %vm1138, %v834, 0
          %1257 = vmatpush.msra.mxu0 0.0
          %1258 = vmatpush.msra.mxu0 0.0
          %1259 = vmatpush.msra.mxu0 0.0
          %1260 = vmatpush.msra.mxu0 0.0
          %1261 = vmatpush.msra.mxu0 0.0
          %1262 = vmatpush.msra.mxu0 0.0
          %1263 = vmatpush.msra.mxu0 0.0
          %1264 = vmatpush.msra.mxu0 0.0
          %1265 = vmatpush.msra.mxu0 0.0
          %1266 = vmatpush.msra.mxu0 0.0
          %1267 = vmatpush.msra.mxu0 0.0
          %1268 = vmatpush.msra.mxu0 0.0
          %1269 = vmatpush.msra.mxu0 0.0
          %1270 = vmatpush.msra.mxu0 0.0
          %1271 = vmatpush.msra.mxu0 0.0
          %1272 = vmatpush.msra.mxu0 %v1038
          %1273 = vmatmul.f32.gmra.mxu0 %v1255
          %v1274 = vpop.f32.mrf.mxu0
          %v1275 = vadd.f32 0.0, %v1274
          %1276 = vdwg.mxu0
          %v1278 = vsel %vm1138, %v835, 0
          %1280 = vmatpush.msra.mxu0 0.0
          %1281 = vmatpush.msra.mxu0 0.0
          %1282 = vmatpush.msra.mxu0 0.0
          %1283 = vmatpush.msra.mxu0 0.0
          %1284 = vmatpush.msra.mxu0 0.0
          %1285 = vmatpush.msra.mxu0 0.0
          %1286 = vmatpush.msra.mxu0 0.0
          %1287 = vmatpush.msra.mxu0 0.0
          %1288 = vmatpush.msra.mxu0 0.0
          %1289 = vmatpush.msra.mxu0 0.0
          %1290 = vmatpush.msra.mxu0 0.0
          %1291 = vmatpush.msra.mxu0 0.0
          %1292 = vmatpush.msra.mxu0 0.0
          %1293 = vmatpush.msra.mxu0 0.0
          %1294 = vmatpush.msra.mxu0 0.0
          %1295 = vmatpush.msra.mxu0 %v1041
          %1296 = vmatmul.f32.gmra.mxu0 %v1278
          %v1297 = vpop.f32.mrf.mxu0
          %v1298 = vadd.f32 0.0, %v1297
          %1299 = vdwg.mxu0
          %v1301 = vsel %vm1138, %v836, 0
          %1303 = vmatpush.msra.mxu0 0.0
          %1304 = vmatpush.msra.mxu0 0.0
          %1305 = vmatpush.msra.mxu0 0.0
          %1306 = vmatpush.msra.mxu0 0.0
          %1307 = vmatpush.msra.mxu0 0.0
          %1308 = vmatpush.msra.mxu0 0.0
          %1309 = vmatpush.msra.mxu0 0.0
          %1310 = vmatpush.msra.mxu0 0.0
          %1311 = vmatpush.msra.mxu0 0.0
          %1312 = vmatpush.msra.mxu0 0.0
          %1313 = vmatpush.msra.mxu0 0.0
          %1314 = vmatpush.msra.mxu0 0.0
          %1315 = vmatpush.msra.mxu0 0.0
          %1316 = vmatpush.msra.mxu0 0.0
          %1317 = vmatpush.msra.mxu0 0.0
          %1318 = vmatpush.msra.mxu0 %v1044
          %1319 = vmatmul.f32.gmra.mxu0 %v1301
          %v1320 = vpop.f32.mrf.mxu0
          %v1321 = vadd.f32 0.0, %v1320
          %1322 = vdwg.mxu0
          %v1324 = vsel %vm1138, %v837, 0
          %1326 = vmatpush.msra.mxu0 0.0
          %1327 = vmatpush.msra.mxu0 0.0
          %1328 = vmatpush.msra.mxu0 0.0
          %1329 = vmatpush.msra.mxu0 0.0
          %1330 = vmatpush.msra.mxu0 0.0
          %1331 = vmatpush.msra.mxu0 0.0
          %1332 = vmatpush.msra.mxu0 0.0
          %1333 = vmatpush.msra.mxu0 0.0
          %1334 = vmatpush.msra.mxu0 0.0
          %1335 = vmatpush.msra.mxu0 0.0
          %1336 = vmatpush.msra.mxu0 0.0
          %1337 = vmatpush.msra.mxu0 0.0
          %1338 = vmatpush.msra.mxu0 0.0
          %1339 = vmatpush.msra.mxu0 0.0
          %1340 = vmatpush.msra.mxu0 0.0
          %1341 = vmatpush.msra.mxu0 %v1047
          %1342 = vmatmul.f32.gmra.mxu0 %v1324
          %v1343 = vpop.f32.mrf.mxu0
          %v1344 = vadd.f32 0.0, %v1343
          %1345 = vdwg.mxu0
          %v1347 = vsel %vm1138, %v838, 0
          %1349 = vmatpush.msra.mxu0 0.0
          %1350 = vmatpush.msra.mxu0 0.0
          %1351 = vmatpush.msra.mxu0 0.0
          %1352 = vmatpush.msra.mxu0 0.0
          %1353 = vmatpush.msra.mxu0 0.0
          %1354 = vmatpush.msra.mxu0 0.0
          %1355 = vmatpush.msra.mxu0 0.0
          %1356 = vmatpush.msra.mxu0 0.0
          %1357 = vmatpush.msra.mxu0 0.0
          %1358 = vmatpush.msra.mxu0 0.0
          %1359 = vmatpush.msra.mxu0 0.0
          %1360 = vmatpush.msra.mxu0 0.0
          %1361 = vmatpush.msra.mxu0 0.0
          %1362 = vmatpush.msra.mxu0 0.0
          %1363 = vmatpush.msra.mxu0 0.0
          %1364 = vmatpush.msra.mxu0 %v1050
          %1365 = vmatmul.f32.gmra.mxu0 %v1347
          %v1366 = vpop.f32.mrf.mxu0
          %v1367 = vadd.f32 0.0, %v1366
          %1368 = vdwg.mxu0
          %v1370 = vsel %vm1138, %v839, 0
          %1372 = vmatpush.msra.mxu0 0.0
          %1373 = vmatpush.msra.mxu0 0.0
          %1374 = vmatpush.msra.mxu0 0.0
          %1375 = vmatpush.msra.mxu0 0.0
          %1376 = vmatpush.msra.mxu0 0.0
          %1377 = vmatpush.msra.mxu0 0.0
          %1378 = vmatpush.msra.mxu0 0.0
          %1379 = vmatpush.msra.mxu0 0.0
          %1380 = vmatpush.msra.mxu0 0.0
          %1381 = vmatpush.msra.mxu0 0.0
          %1382 = vmatpush.msra.mxu0 0.0
          %1383 = vmatpush.msra.mxu0 0.0
          %1384 = vmatpush.msra.mxu0 0.0
          %1385 = vmatpush.msra.mxu0 0.0
          %1386 = vmatpush.msra.mxu0 0.0
          %1387 = vmatpush.msra.mxu0 %v1053
          %1388 = vmatmul.f32.gmra.mxu0 %v1370
          %v1389 = vpop.f32.mrf.mxu0
          %v1390 = vadd.f32 0.0, %v1389
          %1391 = vdwg.mxu0
          %v1393 = vsel %vm1138, %v840, 0
          %1395 = vmatpush.msra.mxu0 0.0
          %1396 = vmatpush.msra.mxu0 0.0
          %1397 = vmatpush.msra.mxu0 0.0
          %1398 = vmatpush.msra.mxu0 0.0
          %1399 = vmatpush.msra.mxu0 0.0
          %1400 = vmatpush.msra.mxu0 0.0
          %1401 = vmatpush.msra.mxu0 0.0
          %1402 = vmatpush.msra.mxu0 0.0
          %1403 = vmatpush.msra.mxu0 0.0
          %1404 = vmatpush.msra.mxu0 0.0
          %1405 = vmatpush.msra.mxu0 0.0
          %1406 = vmatpush.msra.mxu0 0.0
          %1407 = vmatpush.msra.mxu0 0.0
          %1408 = vmatpush.msra.mxu0 0.0
          %1409 = vmatpush.msra.mxu0 0.0
          %1410 = vmatpush.msra.mxu0 %v1056
          %1411 = vmatmul.f32.gmra.mxu0 %v1393
          %v1412 = vpop.f32.mrf.mxu0
          %v1413 = vadd.f32 0.0, %v1412
          %1414 = vdwg.mxu0
          %v1416 = vsel %vm1138, %v841, 0
          %1418 = vmatpush.msra.mxu0 0.0
          %1419 = vmatpush.msra.mxu0 0.0
          %1420 = vmatpush.msra.mxu0 0.0
          %1421 = vmatpush.msra.mxu0 0.0
          %1422 = vmatpush.msra.mxu0 0.0
          %1423 = vmatpush.msra.mxu0 0.0
          %1424 = vmatpush.msra.mxu0 0.0
          %1425 = vmatpush.msra.mxu0 0.0
          %1426 = vmatpush.msra.mxu0 0.0
          %1427 = vmatpush.msra.mxu0 0.0
          %1428 = vmatpush.msra.mxu0 0.0
          %1429 = vmatpush.msra.mxu0 0.0
          %1430 = vmatpush.msra.mxu0 0.0
          %1431 = vmatpush.msra.mxu0 0.0
          %1432 = vmatpush.msra.mxu0 0.0
          %1433 = vmatpush.msra.mxu0 %v1059
          %1434 = vmatmul.f32.gmra.mxu0 %v1416
          %v1435 = vpop.f32.mrf.mxu0
          %v1436 = vadd.f32 0.0, %v1435
          %1437 = vdwg.mxu0
          %v1439 = vsel %vm1138, %v842, 0
          %1441 = vmatpush.msra.mxu0 0.0
          %1442 = vmatpush.msra.mxu0 0.0
          %1443 = vmatpush.msra.mxu0 0.0
          %1444 = vmatpush.msra.mxu0 0.0
          %1445 = vmatpush.msra.mxu0 0.0
          %1446 = vmatpush.msra.mxu0 0.0
          %1447 = vmatpush.msra.mxu0 0.0
          %1448 = vmatpush.msra.mxu0 0.0
          %1449 = vmatpush.msra.mxu0 0.0
          %1450 = vmatpush.msra.mxu0 0.0
          %1451 = vmatpush.msra.mxu0 0.0
          %1452 = vmatpush.msra.mxu0 0.0
          %1453 = vmatpush.msra.mxu0 0.0
          %1454 = vmatpush.msra.mxu0 0.0
          %1455 = vmatpush.msra.mxu0 0.0
          %1456 = vmatpush.msra.mxu0 %v1062
          %1457 = vmatmul.f32.gmra.mxu0 %v1439
          %v1458 = vpop.f32.mrf.mxu0
          %v1459 = vadd.f32 0.0, %v1458
          %1460 = vdwg.mxu0
          %v1462 = vsel %vm1138, %v843, 0
          %1464 = vmatpush.msra.mxu0 0.0
          %1465 = vmatpush.msra.mxu0 0.0
          %1466 = vmatpush.msra.mxu0 0.0
          %1467 = vmatpush.msra.mxu0 0.0
          %1468 = vmatpush.msra.mxu0 0.0
          %1469 = vmatpush.msra.mxu0 0.0
          %1470 = vmatpush.msra.mxu0 0.0
          %1471 = vmatpush.msra.mxu0 0.0
          %1472 = vmatpush.msra.mxu0 0.0
          %1473 = vmatpush.msra.mxu0 0.0
          %1474 = vmatpush.msra.mxu0 0.0
          %1475 = vmatpush.msra.mxu0 0.0
          %1476 = vmatpush.msra.mxu0 0.0
          %1477 = vmatpush.msra.mxu0 0.0
          %1478 = vmatpush.msra.mxu0 0.0
          %1479 = vmatpush.msra.mxu0 %v1065
          %1480 = vmatmul.f32.gmra.mxu0 %v1462
          %v1481 = vpop.f32.mrf.mxu0
          %v1482 = vadd.f32 0.0, %v1481
          %1483 = vdwg.mxu0
          %v1485 = vsel %vm1138, %v844, 0
          %1487 = vmatpush.msra.mxu0 0.0
          %1488 = vmatpush.msra.mxu0 0.0
          %1489 = vmatpush.msra.mxu0 0.0
          %1490 = vmatpush.msra.mxu0 0.0
          %1491 = vmatpush.msra.mxu0 0.0
          %1492 = vmatpush.msra.mxu0 0.0
          %1493 = vmatpush.msra.mxu0 0.0
          %1494 = vmatpush.msra.mxu0 0.0
          %1495 = vmatpush.msra.mxu0 0.0
          %1496 = vmatpush.msra.mxu0 0.0
          %1497 = vmatpush.msra.mxu0 0.0
          %1498 = vmatpush.msra.mxu0 0.0
          %1499 = vmatpush.msra.mxu0 0.0
          %1500 = vmatpush.msra.mxu0 0.0
          %1501 = vmatpush.msra.mxu0 0.0
          %1502 = vmatpush.msra.mxu0 %v1068
          %1503 = vmatmul.f32.gmra.mxu0 %v1485
          %v1504 = vpop.f32.mrf.mxu0
          %v1505 = vadd.f32 0.0, %v1504
          %1506 = vdwg.mxu0
          %v1508 = vperm.slane %v923, 0
          %v1510 = vadd.f32 %v1160, %v1508
          %v1511 = vadd.f32 %v1183, %v1508
          %v1512 = vadd.f32 %v1206, %v1508
          %v1513 = vadd.f32 %v1229, %v1508
          %v1514 = vadd.f32 %v1252, %v1508
          %v1515 = vadd.f32 %v1275, %v1508
          %v1516 = vadd.f32 %v1298, %v1508
          %v1517 = vadd.f32 %v1321, %v1508
          %v1518 = vadd.f32 %v1344, %v1508
          %v1519 = vadd.f32 %v1367, %v1508
          %v1520 = vadd.f32 %v1390, %v1508
          %v1521 = vadd.f32 %v1413, %v1508
          %v1522 = vadd.f32 %v1436, %v1508
          %v1523 = vadd.f32 %v1459, %v1508
          %v1524 = vadd.f32 %v1482, %v1508
          %v1525 = vadd.f32 %v1505, %v1508
          %v1527 = vsel %vm1138, %v845, 0
          %1529 = vmatpush.msra.mxu0 0.0
          %1530 = vmatpush.msra.mxu0 0.0
          %1531 = vmatpush.msra.mxu0 0.0
          %1532 = vmatpush.msra.mxu0 0.0
          %1533 = vmatpush.msra.mxu0 0.0
          %1534 = vmatpush.msra.mxu0 0.0
          %1535 = vmatpush.msra.mxu0 0.0
          %1536 = vmatpush.msra.mxu0 0.0
          %1537 = vmatpush.msra.mxu0 0.0
          %1538 = vmatpush.msra.mxu0 0.0
          %1539 = vmatpush.msra.mxu0 0.0
          %1540 = vmatpush.msra.mxu0 0.0
          %1541 = vmatpush.msra.mxu0 0.0
          %1542 = vmatpush.msra.mxu0 0.0
          %1543 = vmatpush.msra.mxu0 0.0
          %1544 = vmatpush.msra.mxu0 %v1091
          %1545 = vmatmul.f32.gmra.mxu0 %v1527
          %v1546 = vpop.f32.mrf.mxu0
          %v1547 = vadd.f32 0.0, %v1546
          %1548 = vdwg.mxu0
          %v1550 = vsel %vm1138, %v846, 0
          %1552 = vmatpush.msra.mxu0 0.0
          %1553 = vmatpush.msra.mxu0 0.0
          %1554 = vmatpush.msra.mxu0 0.0
          %1555 = vmatpush.msra.mxu0 0.0
          %1556 = vmatpush.msra.mxu0 0.0
          %1557 = vmatpush.msra.mxu0 0.0
          %1558 = vmatpush.msra.mxu0 0.0
          %1559 = vmatpush.msra.mxu0 0.0
          %1560 = vmatpush.msra.mxu0 0.0
          %1561 = vmatpush.msra.mxu0 0.0
          %1562 = vmatpush.msra.mxu0 0.0
          %1563 = vmatpush.msra.mxu0 0.0
          %1564 = vmatpush.msra.mxu0 0.0
          %1565 = vmatpush.msra.mxu0 0.0
          %1566 = vmatpush.msra.mxu0 0.0
          %1567 = vmatpush.msra.mxu0 %v1094
          %1568 = vmatmul.f32.gmra.mxu0 %v1550
          %v1569 = vpop.f32.mrf.mxu0
          %v1570 = vadd.f32 0.0, %v1569
          %1571 = vdwg.mxu0
          %v1573 = vsel %vm1138, %v847, 0
          %1575 = vmatpush.msra.mxu0 0.0
          %1576 = vmatpush.msra.mxu0 0.0
          %1577 = vmatpush.msra.mxu0 0.0
          %1578 = vmatpush.msra.mxu0 0.0
          %1579 = vmatpush.msra.mxu0 0.0
          %1580 = vmatpush.msra.mxu0 0.0
          %1581 = vmatpush.msra.mxu0 0.0
          %1582 = vmatpush.msra.mxu0 0.0
          %1583 = vmatpush.msra.mxu0 0.0
          %1584 = vmatpush.msra.mxu0 0.0
          %1585 = vmatpush.msra.mxu0 0.0
          %1586 = vmatpush.msra.mxu0 0.0
          %1587 = vmatpush.msra.mxu0 0.0
          %1588 = vmatpush.msra.mxu0 0.0
          %1589 = vmatpush.msra.mxu0 0.0
          %1590 = vmatpush.msra.mxu0 %v1097
          %1591 = vmatmul.f32.gmra.mxu0 %v1573
          %v1592 = vpop.f32.mrf.mxu0
          %v1593 = vadd.f32 0.0, %v1592
          %1594 = vdwg.mxu0
          %v1596 = vsel %vm1138, %v848, 0
          %1598 = vmatpush.msra.mxu0 0.0
          %1599 = vmatpush.msra.mxu0 0.0
          %1600 = vmatpush.msra.mxu0 0.0
          %1601 = vmatpush.msra.mxu0 0.0
          %1602 = vmatpush.msra.mxu0 0.0
          %1603 = vmatpush.msra.mxu0 0.0
          %1604 = vmatpush.msra.mxu0 0.0
          %1605 = vmatpush.msra.mxu0 0.0
          %1606 = vmatpush.msra.mxu0 0.0
          %1607 = vmatpush.msra.mxu0 0.0
          %1608 = vmatpush.msra.mxu0 0.0
          %1609 = vmatpush.msra.mxu0 0.0
          %1610 = vmatpush.msra.mxu0 0.0
          %1611 = vmatpush.msra.mxu0 0.0
          %1612 = vmatpush.msra.mxu0 0.0
          %1613 = vmatpush.msra.mxu0 %v1100
          %1614 = vmatmul.f32.gmra.mxu0 %v1596
          %v1615 = vpop.f32.mrf.mxu0
          %v1616 = vadd.f32 0.0, %v1615
          %1617 = vdwg.mxu0
          %v1619 = vsel %vm1138, %v849, 0
          %1621 = vmatpush.msra.mxu0 0.0
          %1622 = vmatpush.msra.mxu0 0.0
          %1623 = vmatpush.msra.mxu0 0.0
          %1624 = vmatpush.msra.mxu0 0.0
          %1625 = vmatpush.msra.mxu0 0.0
          %1626 = vmatpush.msra.mxu0 0.0
          %1627 = vmatpush.msra.mxu0 0.0
          %1628 = vmatpush.msra.mxu0 0.0
          %1629 = vmatpush.msra.mxu0 0.0
          %1630 = vmatpush.msra.mxu0 0.0
          %1631 = vmatpush.msra.mxu0 0.0
          %1632 = vmatpush.msra.mxu0 0.0
          %1633 = vmatpush.msra.mxu0 0.0
          %1634 = vmatpush.msra.mxu0 0.0
          %1635 = vmatpush.msra.mxu0 0.0
          %1636 = vmatpush.msra.mxu0 %v1103
          %1637 = vmatmul.f32.gmra.mxu0 %v1619
          %v1638 = vpop.f32.mrf.mxu0
          %v1639 = vadd.f32 0.0, %v1638
          %1640 = vdwg.mxu0
          %v1642 = vsel %vm1138, %v850, 0
          %1644 = vmatpush.msra.mxu0 0.0
          %1645 = vmatpush.msra.mxu0 0.0
          %1646 = vmatpush.msra.mxu0 0.0
          %1647 = vmatpush.msra.mxu0 0.0
          %1648 = vmatpush.msra.mxu0 0.0
          %1649 = vmatpush.msra.mxu0 0.0
          %1650 = vmatpush.msra.mxu0 0.0
          %1651 = vmatpush.msra.mxu0 0.0
          %1652 = vmatpush.msra.mxu0 0.0
          %1653 = vmatpush.msra.mxu0 0.0
          %1654 = vmatpush.msra.mxu0 0.0
          %1655 = vmatpush.msra.mxu0 0.0
          %1656 = vmatpush.msra.mxu0 0.0
          %1657 = vmatpush.msra.mxu0 0.0
          %1658 = vmatpush.msra.mxu0 0.0
          %1659 = vmatpush.msra.mxu0 %v1106
          %1660 = vmatmul.f32.gmra.mxu0 %v1642
          %v1661 = vpop.f32.mrf.mxu0
          %v1662 = vadd.f32 0.0, %v1661
          %1663 = vdwg.mxu0
          %v1665 = vsel %vm1138, %v851, 0
          %1667 = vmatpush.msra.mxu0 0.0
          %1668 = vmatpush.msra.mxu0 0.0
          %1669 = vmatpush.msra.mxu0 0.0
          %1670 = vmatpush.msra.mxu0 0.0
          %1671 = vmatpush.msra.mxu0 0.0
          %1672 = vmatpush.msra.mxu0 0.0
          %1673 = vmatpush.msra.mxu0 0.0
          %1674 = vmatpush.msra.mxu0 0.0
          %1675 = vmatpush.msra.mxu0 0.0
          %1676 = vmatpush.msra.mxu0 0.0
          %1677 = vmatpush.msra.mxu0 0.0
          %1678 = vmatpush.msra.mxu0 0.0
          %1679 = vmatpush.msra.mxu0 0.0
          %1680 = vmatpush.msra.mxu0 0.0
          %1681 = vmatpush.msra.mxu0 0.0
          %1682 = vmatpush.msra.mxu0 %v1109
          %1683 = vmatmul.f32.gmra.mxu0 %v1665
          %v1684 = vpop.f32.mrf.mxu0
          %v1685 = vadd.f32 0.0, %v1684
          %1686 = vdwg.mxu0
          %v1688 = vsel %vm1138, %v852, 0
          %1690 = vmatpush.msra.mxu0 0.0
          %1691 = vmatpush.msra.mxu0 0.0
          %1692 = vmatpush.msra.mxu0 0.0
          %1693 = vmatpush.msra.mxu0 0.0
          %1694 = vmatpush.msra.mxu0 0.0
          %1695 = vmatpush.msra.mxu0 0.0
          %1696 = vmatpush.msra.mxu0 0.0
          %1697 = vmatpush.msra.mxu0 0.0
          %1698 = vmatpush.msra.mxu0 0.0
          %1699 = vmatpush.msra.mxu0 0.0
          %1700 = vmatpush.msra.mxu0 0.0
          %1701 = vmatpush.msra.mxu0 0.0
          %1702 = vmatpush.msra.mxu0 0.0
          %1703 = vmatpush.msra.mxu0 0.0
          %1704 = vmatpush.msra.mxu0 0.0
          %1705 = vmatpush.msra.mxu0 %v1112
          %1706 = vmatmul.f32.gmra.mxu0 %v1688
          %v1707 = vpop.f32.mrf.mxu0
          %v1708 = vadd.f32 0.0, %v1707
          %1709 = vdwg.mxu0
          %v1711 = vsel %vm1138, %v853, 0
          %1713 = vmatpush.msra.mxu0 0.0
          %1714 = vmatpush.msra.mxu0 0.0
          %1715 = vmatpush.msra.mxu0 0.0
          %1716 = vmatpush.msra.mxu0 0.0
          %1717 = vmatpush.msra.mxu0 0.0
          %1718 = vmatpush.msra.mxu0 0.0
          %1719 = vmatpush.msra.mxu0 0.0
          %1720 = vmatpush.msra.mxu0 0.0
          %1721 = vmatpush.msra.mxu0 0.0
          %1722 = vmatpush.msra.mxu0 0.0
          %1723 = vmatpush.msra.mxu0 0.0
          %1724 = vmatpush.msra.mxu0 0.0
          %1725 = vmatpush.msra.mxu0 0.0
          %1726 = vmatpush.msra.mxu0 0.0
          %1727 = vmatpush.msra.mxu0 0.0
          %1728 = vmatpush.msra.mxu0 %v1115
          %1729 = vmatmul.f32.gmra.mxu0 %v1711
          %v1730 = vpop.f32.mrf.mxu0
          %v1731 = vadd.f32 0.0, %v1730
          %1732 = vdwg.mxu0
          %v1734 = vsel %vm1138, %v854, 0
          %1736 = vmatpush.msra.mxu0 0.0
          %1737 = vmatpush.msra.mxu0 0.0
          %1738 = vmatpush.msra.mxu0 0.0
          %1739 = vmatpush.msra.mxu0 0.0
          %1740 = vmatpush.msra.mxu0 0.0
          %1741 = vmatpush.msra.mxu0 0.0
          %1742 = vmatpush.msra.mxu0 0.0
          %1743 = vmatpush.msra.mxu0 0.0
          %1744 = vmatpush.msra.mxu0 0.0
          %1745 = vmatpush.msra.mxu0 0.0
          %1746 = vmatpush.msra.mxu0 0.0
          %1747 = vmatpush.msra.mxu0 0.0
          %1748 = vmatpush.msra.mxu0 0.0
          %1749 = vmatpush.msra.mxu0 0.0
          %1750 = vmatpush.msra.mxu0 0.0
          %1751 = vmatpush.msra.mxu0 %v1118
          %1752 = vmatmul.f32.gmra.mxu0 %v1734
          %v1753 = vpop.f32.mrf.mxu0
          %v1754 = vadd.f32 0.0, %v1753
          %1755 = vdwg.mxu0
          %v1757 = vsel %vm1138, %v855, 0
          %1759 = vmatpush.msra.mxu0 0.0
          %1760 = vmatpush.msra.mxu0 0.0
          %1761 = vmatpush.msra.mxu0 0.0
          %1762 = vmatpush.msra.mxu0 0.0
          %1763 = vmatpush.msra.mxu0 0.0
          %1764 = vmatpush.msra.mxu0 0.0
          %1765 = vmatpush.msra.mxu0 0.0
          %1766 = vmatpush.msra.mxu0 0.0
          %1767 = vmatpush.msra.mxu0 0.0
          %1768 = vmatpush.msra.mxu0 0.0
          %1769 = vmatpush.msra.mxu0 0.0
          %1770 = vmatpush.msra.mxu0 0.0
          %1771 = vmatpush.msra.mxu0 0.0
          %1772 = vmatpush.msra.mxu0 0.0
          %1773 = vmatpush.msra.mxu0 0.0
          %1774 = vmatpush.msra.mxu0 %v1121
          %1775 = vmatmul.f32.gmra.mxu0 %v1757
          %v1776 = vpop.f32.mrf.mxu0
          %v1777 = vadd.f32 0.0, %v1776
          %1778 = vdwg.mxu0
          %v1780 = vsel %vm1138, %v856, 0
          %1782 = vmatpush.msra.mxu0 0.0
          %1783 = vmatpush.msra.mxu0 0.0
          %1784 = vmatpush.msra.mxu0 0.0
          %1785 = vmatpush.msra.mxu0 0.0
          %1786 = vmatpush.msra.mxu0 0.0
          %1787 = vmatpush.msra.mxu0 0.0
          %1788 = vmatpush.msra.mxu0 0.0
          %1789 = vmatpush.msra.mxu0 0.0
          %1790 = vmatpush.msra.mxu0 0.0
          %1791 = vmatpush.msra.mxu0 0.0
          %1792 = vmatpush.msra.mxu0 0.0
          %1793 = vmatpush.msra.mxu0 0.0
          %1794 = vmatpush.msra.mxu0 0.0
          %1795 = vmatpush.msra.mxu0 0.0
          %1796 = vmatpush.msra.mxu0 0.0
          %1797 = vmatpush.msra.mxu0 %v1124
          %1798 = vmatmul.f32.gmra.mxu0 %v1780
          %v1799 = vpop.f32.mrf.mxu0
          %v1800 = vadd.f32 0.0, %v1799
          %1801 = vdwg.mxu0
          %v1803 = vsel %vm1138, %v857, 0
          %1805 = vmatpush.msra.mxu0 0.0
          %1806 = vmatpush.msra.mxu0 0.0
          %1807 = vmatpush.msra.mxu0 0.0
          %1808 = vmatpush.msra.mxu0 0.0
          %1809 = vmatpush.msra.mxu0 0.0
          %1810 = vmatpush.msra.mxu0 0.0
          %1811 = vmatpush.msra.mxu0 0.0
          %1812 = vmatpush.msra.mxu0 0.0
          %1813 = vmatpush.msra.mxu0 0.0
          %1814 = vmatpush.msra.mxu0 0.0
          %1815 = vmatpush.msra.mxu0 0.0
          %1816 = vmatpush.msra.mxu0 0.0
          %1817 = vmatpush.msra.mxu0 0.0
          %1818 = vmatpush.msra.mxu0 0.0
          %1819 = vmatpush.msra.mxu0 0.0
          %1820 = vmatpush.msra.mxu0 %v1127
          %1821 = vmatmul.f32.gmra.mxu0 %v1803
          %v1822 = vpop.f32.mrf.mxu0
          %v1823 = vadd.f32 0.0, %v1822
          %1824 = vdwg.mxu0
          %v1826 = vsel %vm1138, %v858, 0
          %1828 = vmatpush.msra.mxu0 0.0
          %1829 = vmatpush.msra.mxu0 0.0
          %1830 = vmatpush.msra.mxu0 0.0
          %1831 = vmatpush.msra.mxu0 0.0
          %1832 = vmatpush.msra.mxu0 0.0
          %1833 = vmatpush.msra.mxu0 0.0
          %1834 = vmatpush.msra.mxu0 0.0
          %1835 = vmatpush.msra.mxu0 0.0
          %1836 = vmatpush.msra.mxu0 0.0
          %1837 = vmatpush.msra.mxu0 0.0
          %1838 = vmatpush.msra.mxu0 0.0
          %1839 = vmatpush.msra.mxu0 0.0
          %1840 = vmatpush.msra.mxu0 0.0
          %1841 = vmatpush.msra.mxu0 0.0
          %1842 = vmatpush.msra.mxu0 0.0
          %1843 = vmatpush.msra.mxu0 %v1130
          %1844 = vmatmul.f32.gmra.mxu0 %v1826
          %v1845 = vpop.f32.mrf.mxu0
          %v1846 = vadd.f32 0.0, %v1845
          %1847 = vdwg.mxu0
          %v1849 = vsel %vm1138, %v859, 0
          %1851 = vmatpush.msra.mxu0 0.0
          %1852 = vmatpush.msra.mxu0 0.0
          %1853 = vmatpush.msra.mxu0 0.0
          %1854 = vmatpush.msra.mxu0 0.0
          %1855 = vmatpush.msra.mxu0 0.0
          %1856 = vmatpush.msra.mxu0 0.0
          %1857 = vmatpush.msra.mxu0 0.0
          %1858 = vmatpush.msra.mxu0 0.0
          %1859 = vmatpush.msra.mxu0 0.0
          %1860 = vmatpush.msra.mxu0 0.0
          %1861 = vmatpush.msra.mxu0 0.0
          %1862 = vmatpush.msra.mxu0 0.0
          %1863 = vmatpush.msra.mxu0 0.0
          %1864 = vmatpush.msra.mxu0 0.0
          %1865 = vmatpush.msra.mxu0 0.0
          %1866 = vmatpush.msra.mxu0 %v1133
          %1867 = vmatmul.f32.gmra.mxu0 %v1849
          %v1868 = vpop.f32.mrf.mxu0
          %v1869 = vadd.f32 0.0, %v1868
          %1870 = vdwg.mxu0
          %v1872 = vsel %vm1138, %v860, 0
          %1874 = vmatpush.msra.mxu0 0.0
          %1875 = vmatpush.msra.mxu0 0.0
          %1876 = vmatpush.msra.mxu0 0.0
          %1877 = vmatpush.msra.mxu0 0.0
          %1878 = vmatpush.msra.mxu0 0.0
          %1879 = vmatpush.msra.mxu0 0.0
          %1880 = vmatpush.msra.mxu0 0.0
          %1881 = vmatpush.msra.mxu0 0.0
          %1882 = vmatpush.msra.mxu0 0.0
          %1883 = vmatpush.msra.mxu0 0.0
          %1884 = vmatpush.msra.mxu0 0.0
          %1885 = vmatpush.msra.mxu0 0.0
          %1886 = vmatpush.msra.mxu0 0.0
          %1887 = vmatpush.msra.mxu0 0.0
          %1888 = vmatpush.msra.mxu0 0.0
          %1889 = vmatpush.msra.mxu0 %v1136
          %1890 = vmatmul.f32.gmra.mxu0 %v1872
          %v1891 = vpop.f32.mrf.mxu0
          %v1892 = vadd.f32 0.0, %v1891
          %1893 = vdwg.mxu0
          %v1895 = vperm.slane %v924, 0
          %v1897 = vadd.f32 %v1547, %v1895
          %v1898 = vadd.f32 %v1570, %v1895
          %v1899 = vadd.f32 %v1593, %v1895
          %v1900 = vadd.f32 %v1616, %v1895
          %v1901 = vadd.f32 %v1639, %v1895
          %v1902 = vadd.f32 %v1662, %v1895
          %v1903 = vadd.f32 %v1685, %v1895
          %v1904 = vadd.f32 %v1708, %v1895
          %v1905 = vadd.f32 %v1731, %v1895
          %v1906 = vadd.f32 %v1754, %v1895
          %v1907 = vadd.f32 %v1777, %v1895
          %v1908 = vadd.f32 %v1800, %v1895
          %v1909 = vadd.f32 %v1823, %v1895
          %v1910 = vadd.f32 %v1846, %v1895
          %v1911 = vadd.f32 %v1869, %v1895
          %v1912 = vadd.f32 %v1892, %v1895
          %v1914 = vsel %vm956, %v1897, 0
          %v1917 = vsel %vm956, %v1898, 0
          %v1920 = vsel %vm956, %v1899, 0
          %v1923 = vsel %vm956, %v1900, 0
          %v1926 = vsel %vm956, %v1901, 0
          %v1929 = vsel %vm956, %v1902, 0
          %v1932 = vsel %vm956, %v1903, 0
          %v1935 = vsel %vm956, %v1904, 0
          %v1938 = vsel %vm956, %v1905, 0
          %v1941 = vsel %vm956, %v1906, 0
          %v1944 = vsel %vm956, %v1907, 0
          %v1947 = vsel %vm956, %v1908, 0
          %v1950 = vsel %vm956, %v1909, 0
          %v1953 = vsel %vm956, %v1910, 0
          %v1956 = vsel %vm956, %v1911, 0
          %v1959 = vsel %vm956, %v1912, 0
          %1961 = vmatpush.msra.mxu0 0.0
          %1962 = vmatpush.msra.mxu0 0.0
          %1963 = vmatpush.msra.mxu0 0.0
          %1964 = vmatpush.msra.mxu0 0.0
          %1965 = vmatpush.msra.mxu0 0.0
          %1966 = vmatpush.msra.mxu0 0.0
          %1967 = vmatpush.msra.mxu0 0.0
          %1968 = vmatpush.msra.mxu0 0.0
          %1969 = vmatpush.msra.mxu0 0.0
          %1970 = vmatpush.msra.mxu0 0.0
          %1971 = vmatpush.msra.mxu0 0.0
          %1972 = vmatpush.msra.mxu0 0.0
          %1973 = vmatpush.msra.mxu0 %v892
          %1974 = vmatpush.msra.mxu0 %v891
          %1975 = vmatpush.msra.mxu0 %v890
          %1976 = vmatpush.msra.mxu0 %v889
          %1977 = vmatmul.f32.gmra.mxu0 %v1914
          %v1978 = vpop.f32.mrf.mxu0
          %v1979 = vadd.f32 0.0, %v1978
          %1980 = vmatmul.f32.gmra.mxu0 %v1917
          %v1981 = vpop.f32.mrf.mxu0
          %v1982 = vadd.f32 0.0, %v1981
          %1983 = vmatmul.f32.gmra.mxu0 %v1920
          %v1984 = vpop.f32.mrf.mxu0
          %v1985 = vadd.f32 0.0, %v1984
          %1986 = vmatmul.f32.gmra.mxu0 %v1923
          %v1987 = vpop.f32.mrf.mxu0
          %v1988 = vadd.f32 0.0, %v1987
          %1989 = vmatmul.f32.gmra.mxu0 %v1926
          %v1990 = vpop.f32.mrf.mxu0
          %v1991 = vadd.f32 0.0, %v1990
          %1992 = vmatmul.f32.gmra.mxu0 %v1929
          %v1993 = vpop.f32.mrf.mxu0
          %v1994 = vadd.f32 0.0, %v1993
          %1995 = vmatmul.f32.gmra.mxu0 %v1932
          %v1996 = vpop.f32.mrf.mxu0
          %v1997 = vadd.f32 0.0, %v1996
          %1998 = vmatmul.f32.gmra.mxu0 %v1935
          %v1999 = vpop.f32.mrf.mxu0
          %v2000 = vadd.f32 0.0, %v1999
          %2001 = vmatmul.f32.gmra.mxu0 %v1938
          %v2002 = vpop.f32.mrf.mxu0
          %v2003 = vadd.f32 0.0, %v2002
          %2004 = vmatmul.f32.gmra.mxu0 %v1941
          %v2005 = vpop.f32.mrf.mxu0
          %v2006 = vadd.f32 0.0, %v2005
          %2007 = vmatmul.f32.gmra.mxu0 %v1944
          %v2008 = vpop.f32.mrf.mxu0
          %v2009 = vadd.f32 0.0, %v2008
          %2010 = vmatmul.f32.gmra.mxu0 %v1947
          %v2011 = vpop.f32.mrf.mxu0
          %v2012 = vadd.f32 0.0, %v2011
          %2013 = vmatmul.f32.gmra.mxu0 %v1950
          %v2014 = vpop.f32.mrf.mxu0
          %v2015 = vadd.f32 0.0, %v2014
          %2016 = vmatmul.f32.gmra.mxu0 %v1953
          %v2017 = vpop.f32.mrf.mxu0
          %v2018 = vadd.f32 0.0, %v2017
          %2019 = vmatmul.f32.gmra.mxu0 %v1956
          %v2020 = vpop.f32.mrf.mxu0
          %v2021 = vadd.f32 0.0, %v2020
          %2022 = vmatmul.f32.gmra.mxu0 %v1959
          %v2023 = vpop.f32.mrf.mxu0
          %v2024 = vadd.f32 0.0, %v2023
          %2025 = vdwg.mxu0
          %v2027 = vsel %vm956, %v1510, 0
          %v2030 = vsel %vm956, %v1511, 0
          %v2033 = vsel %vm956, %v1512, 0
          %v2036 = vsel %vm956, %v1513, 0
          %v2039 = vsel %vm956, %v1514, 0
          %v2042 = vsel %vm956, %v1515, 0
          %v2045 = vsel %vm956, %v1516, 0
          %v2048 = vsel %vm956, %v1517, 0
          %v2051 = vsel %vm956, %v1518, 0
          %v2054 = vsel %vm956, %v1519, 0
          %v2057 = vsel %vm956, %v1520, 0
          %v2060 = vsel %vm956, %v1521, 0
          %v2063 = vsel %vm956, %v1522, 0
          %v2066 = vsel %vm956, %v1523, 0
          %v2069 = vsel %vm956, %v1524, 0
          %v2072 = vsel %vm956, %v1525, 0
          %2074 = vmatpush.msra.mxu0 0.0
          %2075 = vmatpush.msra.mxu0 0.0
          %2076 = vmatpush.msra.mxu0 0.0
          %2077 = vmatpush.msra.mxu0 0.0
          %2078 = vmatpush.msra.mxu0 0.0
          %2079 = vmatpush.msra.mxu0 0.0
          %2080 = vmatpush.msra.mxu0 0.0
          %2081 = vmatpush.msra.mxu0 0.0
          %2082 = vmatpush.msra.mxu0 0.0
          %2083 = vmatpush.msra.mxu0 0.0
          %2084 = vmatpush.msra.mxu0 0.0
          %2085 = vmatpush.msra.mxu0 0.0
          %2086 = vmatpush.msra.mxu0 %v888
          %2087 = vmatpush.msra.mxu0 %v887
          %2088 = vmatpush.msra.mxu0 %v886
          %2089 = vmatpush.msra.mxu0 %v885
          %2090 = vmatmul.f32.gmra.mxu0 %v2027
          %v2091 = vpop.f32.mrf.mxu0
          %v2092 = vadd.f32 %v1979, %v2091
          %2093 = vmatmul.f32.gmra.mxu0 %v2030
          %v2094 = vpop.f32.mrf.mxu0
          %v2095 = vadd.f32 %v1982, %v2094
          %2096 = vmatmul.f32.gmra.mxu0 %v2033
          %v2097 = vpop.f32.mrf.mxu0
          %v2098 = vadd.f32 %v1985, %v2097
          %2099 = vmatmul.f32.gmra.mxu0 %v2036
          %v2100 = vpop.f32.mrf.mxu0
          %v2101 = vadd.f32 %v1988, %v2100
          %2102 = vmatmul.f32.gmra.mxu0 %v2039
          %v2103 = vpop.f32.mrf.mxu0
          %v2104 = vadd.f32 %v1991, %v2103
          %2105 = vmatmul.f32.gmra.mxu0 %v2042
          %v2106 = vpop.f32.mrf.mxu0
          %v2107 = vadd.f32 %v1994, %v2106
          %2108 = vmatmul.f32.gmra.mxu0 %v2045
          %v2109 = vpop.f32.mrf.mxu0
          %v2110 = vadd.f32 %v1997, %v2109
          %2111 = vmatmul.f32.gmra.mxu0 %v2048
          %v2112 = vpop.f32.mrf.mxu0
          %v2113 = vadd.f32 %v2000, %v2112
          %2114 = vmatmul.f32.gmra.mxu0 %v2051
          %v2115 = vpop.f32.mrf.mxu0
          %v2116 = vadd.f32 %v2003, %v2115
          %2117 = vmatmul.f32.gmra.mxu0 %v2054
          %v2118 = vpop.f32.mrf.mxu0
          %v2119 = vadd.f32 %v2006, %v2118
          %2120 = vmatmul.f32.gmra.mxu0 %v2057
          %v2121 = vpop.f32.mrf.mxu0
          %v2122 = vadd.f32 %v2009, %v2121
          %2123 = vmatmul.f32.gmra.mxu0 %v2060
          %v2124 = vpop.f32.mrf.mxu0
          %v2125 = vadd.f32 %v2012, %v2124
          %2126 = vmatmul.f32.gmra.mxu0 %v2063
          %v2127 = vpop.f32.mrf.mxu0
          %v2128 = vadd.f32 %v2015, %v2127
          %2129 = vmatmul.f32.gmra.mxu0 %v2066
          %v2130 = vpop.f32.mrf.mxu0
          %v2131 = vadd.f32 %v2018, %v2130
          %2132 = vmatmul.f32.gmra.mxu0 %v2069
          %v2133 = vpop.f32.mrf.mxu0
          %v2134 = vadd.f32 %v2021, %v2133
          %2135 = vmatmul.f32.gmra.mxu0 %v2072
          %v2136 = vpop.f32.mrf.mxu0
          %v2137 = vadd.f32 %v2024, %v2136
          %2138 = vdwg.mxu0
          %v2140 = vperm.slane %v925, 0
          %v2142 = vadd.f32 %v2092, %v2140
          %v2143 = vadd.f32 %v2095, %v2140
          %v2144 = vadd.f32 %v2098, %v2140
          %v2145 = vadd.f32 %v2101, %v2140
          %v2146 = vadd.f32 %v2104, %v2140
          %v2147 = vadd.f32 %v2107, %v2140
          %v2148 = vadd.f32 %v2110, %v2140
          %v2149 = vadd.f32 %v2113, %v2140
          %v2150 = vadd.f32 %v2116, %v2140
          %v2151 = vadd.f32 %v2119, %v2140
          %v2152 = vadd.f32 %v2122, %v2140
          %v2153 = vadd.f32 %v2125, %v2140
          %v2154 = vadd.f32 %v2128, %v2140
          %v2155 = vadd.f32 %v2131, %v2140
          %v2156 = vadd.f32 %v2134, %v2140
          %v2157 = vadd.f32 %v2137, %v2140
          %2158 = vmatpush.msra.mxu0 0.0
          %2159 = vmatpush.msra.mxu0 0.0
          %2160 = vmatpush.msra.mxu0 0.0
          %2161 = vmatpush.msra.mxu0 0.0
          %2162 = vmatpush.msra.mxu0 0.0
          %2163 = vmatpush.msra.mxu0 0.0
          %2164 = vmatpush.msra.mxu0 0.0
          %2165 = vmatpush.msra.mxu0 0.0
          %2166 = vmatpush.msra.mxu0 0.0
          %2167 = vmatpush.msra.mxu0 0.0
          %2168 = vmatpush.msra.mxu0 0.0
          %2169 = vmatpush.msra.mxu0 0.0
          %2170 = vmatpush.msra.mxu0 %v904
          %2171 = vmatpush.msra.mxu0 %v903
          %2172 = vmatpush.msra.mxu0 %v902
          %2173 = vmatpush.msra.mxu0 %v901
          %2174 = vmatmul.f32.gmra.mxu0 %v1914
          %v2175 = vpop.f32.mrf.mxu0
          %v2176 = vadd.f32 0.0, %v2175
          %2177 = vmatmul.f32.gmra.mxu0 %v1917
          %v2178 = vpop.f32.mrf.mxu0
          %v2179 = vadd.f32 0.0, %v2178
          %2180 = vmatmul.f32.gmra.mxu0 %v1920
          %v2181 = vpop.f32.mrf.mxu0
          %v2182 = vadd.f32 0.0, %v2181
          %2183 = vmatmul.f32.gmra.mxu0 %v1923
          %v2184 = vpop.f32.mrf.mxu0
          %v2185 = vadd.f32 0.0, %v2184
          %2186 = vmatmul.f32.gmra.mxu0 %v1926
          %v2187 = vpop.f32.mrf.mxu0
          %v2188 = vadd.f32 0.0, %v2187
          %2189 = vmatmul.f32.gmra.mxu0 %v1929
          %v2190 = vpop.f32.mrf.mxu0
          %v2191 = vadd.f32 0.0, %v2190
          %2192 = vmatmul.f32.gmra.mxu0 %v1932
          %v2193 = vpop.f32.mrf.mxu0
          %v2194 = vadd.f32 0.0, %v2193
          %2195 = vmatmul.f32.gmra.mxu0 %v1935
          %v2196 = vpop.f32.mrf.mxu0
          %v2197 = vadd.f32 0.0, %v2196
          %2198 = vmatmul.f32.gmra.mxu0 %v1938
          %v2199 = vpop.f32.mrf.mxu0
          %v2200 = vadd.f32 0.0, %v2199
          %2201 = vmatmul.f32.gmra.mxu0 %v1941
          %v2202 = vpop.f32.mrf.mxu0
          %v2203 = vadd.f32 0.0, %v2202
          %2204 = vmatmul.f32.gmra.mxu0 %v1944
          %v2205 = vpop.f32.mrf.mxu0
          %v2206 = vadd.f32 0.0, %v2205
          %2207 = vmatmul.f32.gmra.mxu0 %v1947
          %v2208 = vpop.f32.mrf.mxu0
          %v2209 = vadd.f32 0.0, %v2208
          %2210 = vmatmul.f32.gmra.mxu0 %v1950
          %v2211 = vpop.f32.mrf.mxu0
          %v2212 = vadd.f32 0.0, %v2211
          %2213 = vmatmul.f32.gmra.mxu0 %v1953
          %v2214 = vpop.f32.mrf.mxu0
          %v2215 = vadd.f32 0.0, %v2214
          %2216 = vmatmul.f32.gmra.mxu0 %v1956
          %v2217 = vpop.f32.mrf.mxu0
          %v2218 = vadd.f32 0.0, %v2217
          %2219 = vmatmul.f32.gmra.mxu0 %v1959
          %v2220 = vpop.f32.mrf.mxu0
          %v2221 = vadd.f32 0.0, %v2220
          %2222 = vdwg.mxu0
          %2223 = vmatpush.msra.mxu0 0.0
          %2224 = vmatpush.msra.mxu0 0.0
          %2225 = vmatpush.msra.mxu0 0.0
          %2226 = vmatpush.msra.mxu0 0.0
          %2227 = vmatpush.msra.mxu0 0.0
          %2228 = vmatpush.msra.mxu0 0.0
          %2229 = vmatpush.msra.mxu0 0.0
          %2230 = vmatpush.msra.mxu0 0.0
          %2231 = vmatpush.msra.mxu0 0.0
          %2232 = vmatpush.msra.mxu0 0.0
          %2233 = vmatpush.msra.mxu0 0.0
          %2234 = vmatpush.msra.mxu0 0.0
          %2235 = vmatpush.msra.mxu0 %v900
          %2236 = vmatpush.msra.mxu0 %v899
          %2237 = vmatpush.msra.mxu0 %v898
          %2238 = vmatpush.msra.mxu0 %v897
          %2239 = vmatmul.f32.gmra.mxu0 %v2027
          %v2240 = vpop.f32.mrf.mxu0
          %v2241 = vadd.f32 %v2176, %v2240
          %2242 = vmatmul.f32.gmra.mxu0 %v2030
          %v2243 = vpop.f32.mrf.mxu0
          %v2244 = vadd.f32 %v2179, %v2243
          %2245 = vmatmul.f32.gmra.mxu0 %v2033
          %v2246 = vpop.f32.mrf.mxu0
          %v2247 = vadd.f32 %v2182, %v2246
          %2248 = vmatmul.f32.gmra.mxu0 %v2036
          %v2249 = vpop.f32.mrf.mxu0
          %v2250 = vadd.f32 %v2185, %v2249
          %2251 = vmatmul.f32.gmra.mxu0 %v2039
          %v2252 = vpop.f32.mrf.mxu0
          %v2253 = vadd.f32 %v2188, %v2252
          %2254 = vmatmul.f32.gmra.mxu0 %v2042
          %v2255 = vpop.f32.mrf.mxu0
          %v2256 = vadd.f32 %v2191, %v2255
          %2257 = vmatmul.f32.gmra.mxu0 %v2045
          %v2258 = vpop.f32.mrf.mxu0
          %v2259 = vadd.f32 %v2194, %v2258
          %2260 = vmatmul.f32.gmra.mxu0 %v2048
          %v2261 = vpop.f32.mrf.mxu0
          %v2262 = vadd.f32 %v2197, %v2261
          %2263 = vmatmul.f32.gmra.mxu0 %v2051
          %v2264 = vpop.f32.mrf.mxu0
          %v2265 = vadd.f32 %v2200, %v2264
          %2266 = vmatmul.f32.gmra.mxu0 %v2054
          %v2267 = vpop.f32.mrf.mxu0
          %v2268 = vadd.f32 %v2203, %v2267
          %2269 = vmatmul.f32.gmra.mxu0 %v2057
          %v2270 = vpop.f32.mrf.mxu0
          %v2271 = vadd.f32 %v2206, %v2270
          %2272 = vmatmul.f32.gmra.mxu0 %v2060
          %v2273 = vpop.f32.mrf.mxu0
          %v2274 = vadd.f32 %v2209, %v2273
          %2275 = vmatmul.f32.gmra.mxu0 %v2063
          %v2276 = vpop.f32.mrf.mxu0
          %v2277 = vadd.f32 %v2212, %v2276
          %2278 = vmatmul.f32.gmra.mxu0 %v2066
          %v2279 = vpop.f32.mrf.mxu0
          %v2280 = vadd.f32 %v2215, %v2279
          %2281 = vmatmul.f32.gmra.mxu0 %v2069
          %v2282 = vpop.f32.mrf.mxu0
          %v2283 = vadd.f32 %v2218, %v2282
          %2284 = vmatmul.f32.gmra.mxu0 %v2072
          %v2285 = vpop.f32.mrf.mxu0
          %v2286 = vadd.f32 %v2221, %v2285
          %2287 = vdwg.mxu0
          %v2289 = vperm.slane %v927, 0
          %v2291 = vadd.f32 %v2241, %v2289
          %v2292 = vadd.f32 %v2244, %v2289
          %v2293 = vadd.f32 %v2247, %v2289
          %v2294 = vadd.f32 %v2250, %v2289
          %v2295 = vadd.f32 %v2253, %v2289
          %v2296 = vadd.f32 %v2256, %v2289
          %v2297 = vadd.f32 %v2259, %v2289
          %v2298 = vadd.f32 %v2262, %v2289
          %v2299 = vadd.f32 %v2265, %v2289
          %v2300 = vadd.f32 %v2268, %v2289
          %v2301 = vadd.f32 %v2271, %v2289
          %v2302 = vadd.f32 %v2274, %v2289
          %v2303 = vadd.f32 %v2277, %v2289
          %v2304 = vadd.f32 %v2280, %v2289
          %v2305 = vadd.f32 %v2283, %v2289
          %v2306 = vadd.f32 %v2286, %v2289
          %2307 = vmatpush.msra.mxu0 0.0
          %2308 = vmatpush.msra.mxu0 0.0
          %2309 = vmatpush.msra.mxu0 0.0
          %2310 = vmatpush.msra.mxu0 0.0
          %2311 = vmatpush.msra.mxu0 0.0
          %2312 = vmatpush.msra.mxu0 0.0
          %2313 = vmatpush.msra.mxu0 0.0
          %2314 = vmatpush.msra.mxu0 0.0
          %2315 = vmatpush.msra.mxu0 0.0
          %2316 = vmatpush.msra.mxu0 0.0
          %2317 = vmatpush.msra.mxu0 0.0
          %2318 = vmatpush.msra.mxu0 0.0
          %2319 = vmatpush.msra.mxu0 %v916
          %2320 = vmatpush.msra.mxu0 %v915
          %2321 = vmatpush.msra.mxu0 %v914
          %2322 = vmatpush.msra.mxu0 %v913
          %2323 = vmatmul.f32.gmra.mxu0 %v1914
          %v2324 = vpop.f32.mrf.mxu0
          %v2325 = vadd.f32 0.0, %v2324
          %2326 = vmatmul.f32.gmra.mxu0 %v1917
          %v2327 = vpop.f32.mrf.mxu0
          %v2328 = vadd.f32 0.0, %v2327
          %2329 = vmatmul.f32.gmra.mxu0 %v1920
          %v2330 = vpop.f32.mrf.mxu0
          %v2331 = vadd.f32 0.0, %v2330
          %2332 = vmatmul.f32.gmra.mxu0 %v1923
          %v2333 = vpop.f32.mrf.mxu0
          %v2334 = vadd.f32 0.0, %v2333
          %2335 = vmatmul.f32.gmra.mxu0 %v1926
          %v2336 = vpop.f32.mrf.mxu0
          %v2337 = vadd.f32 0.0, %v2336
          %2338 = vmatmul.f32.gmra.mxu0 %v1929
          %v2339 = vpop.f32.mrf.mxu0
          %v2340 = vadd.f32 0.0, %v2339
          %2341 = vmatmul.f32.gmra.mxu0 %v1932
          %v2342 = vpop.f32.mrf.mxu0
          %v2343 = vadd.f32 0.0, %v2342
          %2344 = vmatmul.f32.gmra.mxu0 %v1935
          %v2345 = vpop.f32.mrf.mxu0
          %v2346 = vadd.f32 0.0, %v2345
          %2347 = vmatmul.f32.gmra.mxu0 %v1938
          %v2348 = vpop.f32.mrf.mxu0
          %v2349 = vadd.f32 0.0, %v2348
          %2350 = vmatmul.f32.gmra.mxu0 %v1941
          %v2351 = vpop.f32.mrf.mxu0
          %v2352 = vadd.f32 0.0, %v2351
          %2353 = vmatmul.f32.gmra.mxu0 %v1944
          %v2354 = vpop.f32.mrf.mxu0
          %v2355 = vadd.f32 0.0, %v2354
          %2356 = vmatmul.f32.gmra.mxu0 %v1947
          %v2357 = vpop.f32.mrf.mxu0
          %v2358 = vadd.f32 0.0, %v2357
          %2359 = vmatmul.f32.gmra.mxu0 %v1950
          %v2360 = vpop.f32.mrf.mxu0
          %v2361 = vadd.f32 0.0, %v2360
          %2362 = vmatmul.f32.gmra.mxu0 %v1953
          %v2363 = vpop.f32.mrf.mxu0
          %v2364 = vadd.f32 0.0, %v2363
          %2365 = vmatmul.f32.gmra.mxu0 %v1956
          %v2366 = vpop.f32.mrf.mxu0
          %v2367 = vadd.f32 0.0, %v2366
          %2368 = vmatmul.f32.gmra.mxu0 %v1959
          %v2369 = vpop.f32.mrf.mxu0
          %v2370 = vadd.f32 0.0, %v2369
          %2371 = vdwg.mxu0
          %2372 = vmatpush.msra.mxu0 0.0
          %2373 = vmatpush.msra.mxu0 0.0
          %2374 = vmatpush.msra.mxu0 0.0
          %2375 = vmatpush.msra.mxu0 0.0
          %2376 = vmatpush.msra.mxu0 0.0
          %2377 = vmatpush.msra.mxu0 0.0
          %2378 = vmatpush.msra.mxu0 0.0
          %2379 = vmatpush.msra.mxu0 0.0
          %2380 = vmatpush.msra.mxu0 0.0
          %2381 = vmatpush.msra.mxu0 0.0
          %2382 = vmatpush.msra.mxu0 0.0
          %2383 = vmatpush.msra.mxu0 0.0
          %2384 = vmatpush.msra.mxu0 %v912
          %2385 = vmatpush.msra.mxu0 %v911
          %2386 = vmatpush.msra.mxu0 %v910
          %2387 = vmatpush.msra.mxu0 %v909
          %2388 = vmatmul.f32.gmra.mxu0 %v2027
          %v2389 = vpop.f32.mrf.mxu0
          %v2390 = vadd.f32 %v2325, %v2389
          %2391 = vmatmul.f32.gmra.mxu0 %v2030
          %v2392 = vpop.f32.mrf.mxu0
          %v2393 = vadd.f32 %v2328, %v2392
          %2394 = vmatmul.f32.gmra.mxu0 %v2033
          %v2395 = vpop.f32.mrf.mxu0
          %v2396 = vadd.f32 %v2331, %v2395
          %2397 = vmatmul.f32.gmra.mxu0 %v2036
          %v2398 = vpop.f32.mrf.mxu0
          %v2399 = vadd.f32 %v2334, %v2398
          %2400 = vmatmul.f32.gmra.mxu0 %v2039
          %v2401 = vpop.f32.mrf.mxu0
          %v2402 = vadd.f32 %v2337, %v2401
          %2403 = vmatmul.f32.gmra.mxu0 %v2042
          %v2404 = vpop.f32.mrf.mxu0
          %v2405 = vadd.f32 %v2340, %v2404
          %2406 = vmatmul.f32.gmra.mxu0 %v2045
          %v2407 = vpop.f32.mrf.mxu0
          %v2408 = vadd.f32 %v2343, %v2407
          %2409 = vmatmul.f32.gmra.mxu0 %v2048
          %v2410 = vpop.f32.mrf.mxu0
          %v2411 = vadd.f32 %v2346, %v2410
          %2412 = vmatmul.f32.gmra.mxu0 %v2051
          %v2413 = vpop.f32.mrf.mxu0
          %v2414 = vadd.f32 %v2349, %v2413
          %2415 = vmatmul.f32.gmra.mxu0 %v2054
          %v2416 = vpop.f32.mrf.mxu0
          %v2417 = vadd.f32 %v2352, %v2416
          %2418 = vmatmul.f32.gmra.mxu0 %v2057
          %v2419 = vpop.f32.mrf.mxu0
          %v2420 = vadd.f32 %v2355, %v2419
          %2421 = vmatmul.f32.gmra.mxu0 %v2060
          %v2422 = vpop.f32.mrf.mxu0
          %v2423 = vadd.f32 %v2358, %v2422
          %2424 = vmatmul.f32.gmra.mxu0 %v2063
          %v2425 = vpop.f32.mrf.mxu0
          %v2426 = vadd.f32 %v2361, %v2425
          %2427 = vmatmul.f32.gmra.mxu0 %v2066
          %v2428 = vpop.f32.mrf.mxu0
          %v2429 = vadd.f32 %v2364, %v2428
          %2430 = vmatmul.f32.gmra.mxu0 %v2069
          %v2431 = vpop.f32.mrf.mxu0
          %v2432 = vadd.f32 %v2367, %v2431
          %2433 = vmatmul.f32.gmra.mxu0 %v2072
          %v2434 = vpop.f32.mrf.mxu0
          %v2435 = vadd.f32 %v2370, %v2434
          %2436 = vdwg.mxu0
          %v2438 = vperm.slane %v929, 0
          %v2440 = vadd.f32 %v2390, %v2438
          %v2441 = vadd.f32 %v2393, %v2438
          %v2442 = vadd.f32 %v2396, %v2438
          %v2443 = vadd.f32 %v2399, %v2438
          %v2444 = vadd.f32 %v2402, %v2438
          %v2445 = vadd.f32 %v2405, %v2438
          %v2446 = vadd.f32 %v2408, %v2438
          %v2447 = vadd.f32 %v2411, %v2438
          %v2448 = vadd.f32 %v2414, %v2438
          %v2449 = vadd.f32 %v2417, %v2438
          %v2450 = vadd.f32 %v2420, %v2438
          %v2451 = vadd.f32 %v2423, %v2438
          %v2452 = vadd.f32 %v2426, %v2438
          %v2453 = vadd.f32 %v2429, %v2438
          %v2454 = vadd.f32 %v2432, %v2438
          %v2455 = vadd.f32 %v2435, %v2438
          %v2457 = vperm.slane %v926, 0
          %2459 = vmatpush.msra.mxu0 0.0
          %2460 = vmatpush.msra.mxu0 0.0
          %2461 = vmatpush.msra.mxu0 0.0
          %2462 = vmatpush.msra.mxu0 0.0
          %2463 = vmatpush.msra.mxu0 0.0
          %2464 = vmatpush.msra.mxu0 0.0
          %2465 = vmatpush.msra.mxu0 0.0
          %2466 = vmatpush.msra.mxu0 0.0
          %2467 = vmatpush.msra.mxu0 0.0
          %2468 = vmatpush.msra.mxu0 0.0
          %2469 = vmatpush.msra.mxu0 0.0
          %2470 = vmatpush.msra.mxu0 0.0
          %2471 = vmatpush.msra.mxu0 %v896
          %2472 = vmatpush.msra.mxu0 %v895
          %2473 = vmatpush.msra.mxu0 %v894
          %2474 = vmatpush.msra.mxu0 %v893
          %2475 = vmatmul.f32.gmra.mxu0 %v958
          %v2476 = vpop.f32.mrf.mxu0
          %v2477 = vadd.f32 %v2457, %v2476
          %2478 = vmatmul.f32.gmra.mxu0 %v961
          %v2479 = vpop.f32.mrf.mxu0
          %v2480 = vadd.f32 %v2457, %v2479
          %2481 = vmatmul.f32.gmra.mxu0 %v964
          %v2482 = vpop.f32.mrf.mxu0
          %v2483 = vadd.f32 %v2457, %v2482
          %2484 = vmatmul.f32.gmra.mxu0 %v967
          %v2485 = vpop.f32.mrf.mxu0
          %v2486 = vadd.f32 %v2457, %v2485
          %2487 = vmatmul.f32.gmra.mxu0 %v970
          %v2488 = vpop.f32.mrf.mxu0
          %v2489 = vadd.f32 %v2457, %v2488
          %2490 = vmatmul.f32.gmra.mxu0 %v973
          %v2491 = vpop.f32.mrf.mxu0
          %v2492 = vadd.f32 %v2457, %v2491
          %2493 = vmatmul.f32.gmra.mxu0 %v976
          %v2494 = vpop.f32.mrf.mxu0
          %v2495 = vadd.f32 %v2457, %v2494
          %2496 = vmatmul.f32.gmra.mxu0 %v979
          %v2497 = vpop.f32.mrf.mxu0
          %v2498 = vadd.f32 %v2457, %v2497
          %2499 = vmatmul.f32.gmra.mxu0 %v982
          %v2500 = vpop.f32.mrf.mxu0
          %v2501 = vadd.f32 %v2457, %v2500
          %2502 = vmatmul.f32.gmra.mxu0 %v985
          %v2503 = vpop.f32.mrf.mxu0
          %v2504 = vadd.f32 %v2457, %v2503
          %2505 = vmatmul.f32.gmra.mxu0 %v988
          %v2506 = vpop.f32.mrf.mxu0
          %v2507 = vadd.f32 %v2457, %v2506
          %2508 = vmatmul.f32.gmra.mxu0 %v991
          %v2509 = vpop.f32.mrf.mxu0
          %v2510 = vadd.f32 %v2457, %v2509
          %2511 = vmatmul.f32.gmra.mxu0 %v994
          %v2512 = vpop.f32.mrf.mxu0
          %v2513 = vadd.f32 %v2457, %v2512
          %2514 = vmatmul.f32.gmra.mxu0 %v997
          %v2515 = vpop.f32.mrf.mxu0
          %v2516 = vadd.f32 %v2457, %v2515
          %2517 = vmatmul.f32.gmra.mxu0 %v1000
          %v2518 = vpop.f32.mrf.mxu0
          %v2519 = vadd.f32 %v2457, %v2518
          %2520 = vmatmul.f32.gmra.mxu0 %v1003
          %v2521 = vpop.f32.mrf.mxu0
          %v2522 = vadd.f32 %v2457, %v2521
          %2523 = vdwg.mxu0
          %v2525 = vperm.slane %v928, 0
          %2527 = vmatpush.msra.mxu0 0.0
          %2528 = vmatpush.msra.mxu0 0.0
          %2529 = vmatpush.msra.mxu0 0.0
          %2530 = vmatpush.msra.mxu0 0.0
          %2531 = vmatpush.msra.mxu0 0.0
          %2532 = vmatpush.msra.mxu0 0.0
          %2533 = vmatpush.msra.mxu0 0.0
          %2534 = vmatpush.msra.mxu0 0.0
          %2535 = vmatpush.msra.mxu0 0.0
          %2536 = vmatpush.msra.mxu0 0.0
          %2537 = vmatpush.msra.mxu0 0.0
          %2538 = vmatpush.msra.mxu0 0.0
          %2539 = vmatpush.msra.mxu0 %v908
          %2540 = vmatpush.msra.mxu0 %v907
          %2541 = vmatpush.msra.mxu0 %v906
          %2542 = vmatpush.msra.mxu0 %v905
          %2543 = vmatmul.f32.gmra.mxu0 %v958
          %v2544 = vpop.f32.mrf.mxu0
          %v2545 = vadd.f32 %v2525, %v2544
          %2546 = vmatmul.f32.gmra.mxu0 %v961
          %v2547 = vpop.f32.mrf.mxu0
          %v2548 = vadd.f32 %v2525, %v2547
          %2549 = vmatmul.f32.gmra.mxu0 %v964
          %v2550 = vpop.f32.mrf.mxu0
          %v2551 = vadd.f32 %v2525, %v2550
          %2552 = vmatmul.f32.gmra.mxu0 %v967
          %v2553 = vpop.f32.mrf.mxu0
          %v2554 = vadd.f32 %v2525, %v2553
          %2555 = vmatmul.f32.gmra.mxu0 %v970
          %v2556 = vpop.f32.mrf.mxu0
          %v2557 = vadd.f32 %v2525, %v2556
          %2558 = vmatmul.f32.gmra.mxu0 %v973
          %v2559 = vpop.f32.mrf.mxu0
          %v2560 = vadd.f32 %v2525, %v2559
          %2561 = vmatmul.f32.gmra.mxu0 %v976
          %v2562 = vpop.f32.mrf.mxu0
          %v2563 = vadd.f32 %v2525, %v2562
          %2564 = vmatmul.f32.gmra.mxu0 %v979
          %v2565 = vpop.f32.mrf.mxu0
          %v2566 = vadd.f32 %v2525, %v2565
          %2567 = vmatmul.f32.gmra.mxu0 %v982
          %v2568 = vpop.f32.mrf.mxu0
          %v2569 = vadd.f32 %v2525, %v2568
          %2570 = vmatmul.f32.gmra.mxu0 %v985
          %v2571 = vpop.f32.mrf.mxu0
          %v2572 = vadd.f32 %v2525, %v2571
          %2573 = vmatmul.f32.gmra.mxu0 %v988
          %v2574 = vpop.f32.mrf.mxu0
          %v2575 = vadd.f32 %v2525, %v2574
          %2576 = vmatmul.f32.gmra.mxu0 %v991
          %v2577 = vpop.f32.mrf.mxu0
          %v2578 = vadd.f32 %v2525, %v2577
          %2579 = vmatmul.f32.gmra.mxu0 %v994
          %v2580 = vpop.f32.mrf.mxu0
          %v2581 = vadd.f32 %v2525, %v2580
          %2582 = vmatmul.f32.gmra.mxu0 %v997
          %v2583 = vpop.f32.mrf.mxu0
          %v2584 = vadd.f32 %v2525, %v2583
          %2585 = vmatmul.f32.gmra.mxu0 %v1000
          %v2586 = vpop.f32.mrf.mxu0
          %v2587 = vadd.f32 %v2525, %v2586
          %2588 = vmatmul.f32.gmra.mxu0 %v1003
          %v2589 = vpop.f32.mrf.mxu0
          %v2590 = vadd.f32 %v2525, %v2589
          %2591 = vdwg.mxu0
          %v2593 = vperm.slane %v930, 0
          %2595 = vmatpush.msra.mxu0 0.0
          %2596 = vmatpush.msra.mxu0 0.0
          %2597 = vmatpush.msra.mxu0 0.0
          %2598 = vmatpush.msra.mxu0 0.0
          %2599 = vmatpush.msra.mxu0 0.0
          %2600 = vmatpush.msra.mxu0 0.0
          %2601 = vmatpush.msra.mxu0 0.0
          %2602 = vmatpush.msra.mxu0 0.0
          %2603 = vmatpush.msra.mxu0 0.0
          %2604 = vmatpush.msra.mxu0 0.0
          %2605 = vmatpush.msra.mxu0 0.0
          %2606 = vmatpush.msra.mxu0 0.0
          %2607 = vmatpush.msra.mxu0 %v920
          %2608 = vmatpush.msra.mxu0 %v919
          %2609 = vmatpush.msra.mxu0 %v918
          %2610 = vmatpush.msra.mxu0 %v917
          %2611 = vmatmul.f32.gmra.mxu0 %v958
          %v2612 = vpop.f32.mrf.mxu0
          %v2613 = vadd.f32 %v2593, %v2612
          %2614 = vmatmul.f32.gmra.mxu0 %v961
          %v2615 = vpop.f32.mrf.mxu0
          %v2616 = vadd.f32 %v2593, %v2615
          %2617 = vmatmul.f32.gmra.mxu0 %v964
          %v2618 = vpop.f32.mrf.mxu0
          %v2619 = vadd.f32 %v2593, %v2618
          %2620 = vmatmul.f32.gmra.mxu0 %v967
          %v2621 = vpop.f32.mrf.mxu0
          %v2622 = vadd.f32 %v2593, %v2621
          %2623 = vmatmul.f32.gmra.mxu0 %v970
          %v2624 = vpop.f32.mrf.mxu0
          %v2625 = vadd.f32 %v2593, %v2624
          %2626 = vmatmul.f32.gmra.mxu0 %v973
          %v2627 = vpop.f32.mrf.mxu0
          %v2628 = vadd.f32 %v2593, %v2627
          %2629 = vmatmul.f32.gmra.mxu0 %v976
          %v2630 = vpop.f32.mrf.mxu0
          %v2631 = vadd.f32 %v2593, %v2630
          %2632 = vmatmul.f32.gmra.mxu0 %v979
          %v2633 = vpop.f32.mrf.mxu0
          %v2634 = vadd.f32 %v2593, %v2633
          %2635 = vmatmul.f32.gmra.mxu0 %v982
          %v2636 = vpop.f32.mrf.mxu0
          %v2637 = vadd.f32 %v2593, %v2636
          %2638 = vmatmul.f32.gmra.mxu0 %v985
          %v2639 = vpop.f32.mrf.mxu0
          %v2640 = vadd.f32 %v2593, %v2639
          %2641 = vmatmul.f32.gmra.mxu0 %v988
          %v2642 = vpop.f32.mrf.mxu0
          %v2643 = vadd.f32 %v2593, %v2642
          %2644 = vmatmul.f32.gmra.mxu0 %v991
          %v2645 = vpop.f32.mrf.mxu0
          %v2646 = vadd.f32 %v2593, %v2645
          %2647 = vmatmul.f32.gmra.mxu0 %v994
          %v2648 = vpop.f32.mrf.mxu0
          %v2649 = vadd.f32 %v2593, %v2648
          %2650 = vmatmul.f32.gmra.mxu0 %v997
          %v2651 = vpop.f32.mrf.mxu0
          %v2652 = vadd.f32 %v2593, %v2651
          %2653 = vmatmul.f32.gmra.mxu0 %v1000
          %v2654 = vpop.f32.mrf.mxu0
          %v2655 = vadd.f32 %v2593, %v2654
          %2656 = vmatmul.f32.gmra.mxu0 %v1003
          %v2657 = vpop.f32.mrf.mxu0
          %v2658 = vadd.f32 %v2593, %v2657
          %2659 = vdwg.mxu0
          %v2660 = vadd.f32 %v2291, %v2545
          %v2661 = vadd.f32 %v2292, %v2548
          %v2662 = vadd.f32 %v2293, %v2551
          %v2663 = vadd.f32 %v2294, %v2554
          %v2664 = vadd.f32 %v2295, %v2557
          %v2665 = vadd.f32 %v2296, %v2560
          %v2666 = vadd.f32 %v2297, %v2563
          %v2667 = vadd.f32 %v2298, %v2566
          %v2668 = vadd.f32 %v2299, %v2569
          %v2669 = vadd.f32 %v2300, %v2572
          %v2670 = vadd.f32 %v2301, %v2575
          %v2671 = vadd.f32 %v2302, %v2578
          %v2672 = vadd.f32 %v2303, %v2581
          %v2673 = vadd.f32 %v2304, %v2584
          %v2674 = vadd.f32 %v2305, %v2587
          %v2675 = vadd.f32 %v2306, %v2590
          %v2676 = vxor.u32 %v2660, 2147483648
          %v2677 = vxor.u32 %v2661, 2147483648
          %v2678 = vxor.u32 %v2662, 2147483648
          %v2679 = vxor.u32 %v2663, 2147483648
          %v2680 = vxor.u32 %v2664, 2147483648
          %v2681 = vxor.u32 %v2665, 2147483648
          %v2682 = vxor.u32 %v2666, 2147483648
          %v2683 = vxor.u32 %v2667, 2147483648
          %v2684 = vxor.u32 %v2668, 2147483648
          %v2685 = vxor.u32 %v2669, 2147483648
          %v2686 = vxor.u32 %v2670, 2147483648
          %v2687 = vxor.u32 %v2671, 2147483648
          %v2688 = vxor.u32 %v2672, 2147483648
          %v2689 = vxor.u32 %v2673, 2147483648
          %v2690 = vxor.u32 %v2674, 2147483648
          %v2691 = vxor.u32 %v2675, 2147483648
          %v2692 = vmul.f32 %v2676, 1.442695
          %v2693 = vpow.pop %v2692
          %v2694 = vmul.f32 %v2677, 1.442695
          %v2695 = vpow.pop %v2694
          %v2696 = vmul.f32 %v2678, 1.442695
          %v2697 = vpow.pop %v2696
          %v2698 = vmul.f32 %v2679, 1.442695
          %v2699 = vpow.pop %v2698
          %v2700 = vmul.f32 %v2680, 1.442695
          %v2701 = vpow.pop %v2700
          %v2702 = vmul.f32 %v2681, 1.442695
          %v2703 = vpow.pop %v2702
          %v2704 = vmul.f32 %v2682, 1.442695
          %v2705 = vpow.pop %v2704
          %v2706 = vmul.f32 %v2683, 1.442695
          %v2707 = vpow.pop %v2706
          %v2708 = vmul.f32 %v2684, 1.442695
          %v2709 = vpow.pop %v2708
          %v2710 = vmul.f32 %v2685, 1.442695
          %v2711 = vpow.pop %v2710
          %v2712 = vmul.f32 %v2686, 1.442695
          %v2713 = vpow.pop %v2712
          %v2714 = vmul.f32 %v2687, 1.442695
          %v2715 = vpow.pop %v2714
          %v2716 = vmul.f32 %v2688, 1.442695
          %v2717 = vpow.pop %v2716
          %v2718 = vmul.f32 %v2689, 1.442695
          %v2719 = vpow.pop %v2718
          %v2720 = vmul.f32 %v2690, 1.442695
          %v2721 = vpow.pop %v2720
          %v2722 = vmul.f32 %v2691, 1.442695
          %v2723 = vpow.pop %v2722
          %v2724 = vadd.f32 %v2693, 1.0
          %v2725 = vadd.f32 %v2695, 1.0
          %v2726 = vadd.f32 %v2697, 1.0
          %v2727 = vadd.f32 %v2699, 1.0
          %v2728 = vadd.f32 %v2701, 1.0
          %v2729 = vadd.f32 %v2703, 1.0
          %v2730 = vadd.f32 %v2705, 1.0
          %v2731 = vadd.f32 %v2707, 1.0
          %v2732 = vadd.f32 %v2709, 1.0
          %v2733 = vadd.f32 %v2711, 1.0
          %v2734 = vadd.f32 %v2713, 1.0
          %v2735 = vadd.f32 %v2715, 1.0
          %v2736 = vadd.f32 %v2717, 1.0
          %v2737 = vadd.f32 %v2719, 1.0
          %v2738 = vadd.f32 %v2721, 1.0
          %v2739 = vadd.f32 %v2723, 1.0
          %v2740 = vrcp.pop %v2724
          %v2741 = vmul.f32 %v2724, %v2740
          %v2742 = vsub.f32 1.0, %v2741
          %v2743 = vmul.f32 %v2740, %v2742
          %v2744 = vadd.f32 %v2740, %v2743
          %vm2745 = vweird.f32 %v2724
          %vm2746 = vweird.f32 %v2740
          %vm2747 = vmor %vm2745, %vm2746
          %v2748 = vsel %vm2747, %v2740, %v2744
          %v2749 = vand.u32 2147483647, %v2724
          %vm2750 = vcmp.eq.f32.partialorder %v2749, 8.507059e+37
          %v2751 = vand.u32 %v2724, 2147483648
          %v2752 = vor.u32 1.1754944e-38, %v2751
          %v2753 = vsel %vm2750, %v2752, %v2748
          %v2754 = vmul.f32 1.0, %v2753
          %v2755 = vrcp.pop %v2725
          %v2756 = vmul.f32 %v2725, %v2755
          %v2757 = vsub.f32 1.0, %v2756
          %v2758 = vmul.f32 %v2755, %v2757
          %v2759 = vadd.f32 %v2755, %v2758
          %vm2760 = vweird.f32 %v2725
          %vm2761 = vweird.f32 %v2755
          %vm2762 = vmor %vm2760, %vm2761
          %v2763 = vsel %vm2762, %v2755, %v2759
          %v2764 = vand.u32 2147483647, %v2725
          %vm2765 = vcmp.eq.f32.partialorder %v2764, 8.507059e+37
          %v2766 = vand.u32 %v2725, 2147483648
          %v2767 = vor.u32 1.1754944e-38, %v2766
          %v2768 = vsel %vm2765, %v2767, %v2763
          %v2769 = vmul.f32 1.0, %v2768
          %v2770 = vrcp.pop %v2726
          %v2771 = vmul.f32 %v2726, %v2770
          %v2772 = vsub.f32 1.0, %v2771
          %v2773 = vmul.f32 %v2770, %v2772
          %v2774 = vadd.f32 %v2770, %v2773
          %vm2775 = vweird.f32 %v2726
          %vm2776 = vweird.f32 %v2770
          %vm2777 = vmor %vm2775, %vm2776
          %v2778 = vsel %vm2777, %v2770, %v2774
          %v2779 = vand.u32 2147483647, %v2726
          %vm2780 = vcmp.eq.f32.partialorder %v2779, 8.507059e+37
          %v2781 = vand.u32 %v2726, 2147483648
          %v2782 = vor.u32 1.1754944e-38, %v2781
          %v2783 = vsel %vm2780, %v2782, %v2778
          %v2784 = vmul.f32 1.0, %v2783
          %v2785 = vrcp.pop %v2727
          %v2786 = vmul.f32 %v2727, %v2785
          %v2787 = vsub.f32 1.0, %v2786
          %v2788 = vmul.f32 %v2785, %v2787
          %v2789 = vadd.f32 %v2785, %v2788
          %vm2790 = vweird.f32 %v2727
          %vm2791 = vweird.f32 %v2785
          %vm2792 = vmor %vm2790, %vm2791
          %v2793 = vsel %vm2792, %v2785, %v2789
          %v2794 = vand.u32 2147483647, %v2727
          %vm2795 = vcmp.eq.f32.partialorder %v2794, 8.507059e+37
          %v2796 = vand.u32 %v2727, 2147483648
          %v2797 = vor.u32 1.1754944e-38, %v2796
          %v2798 = vsel %vm2795, %v2797, %v2793
          %v2799 = vmul.f32 1.0, %v2798
          %v2800 = vrcp.pop %v2728
          %v2801 = vmul.f32 %v2728, %v2800
          %v2802 = vsub.f32 1.0, %v2801
          %v2803 = vmul.f32 %v2800, %v2802
          %v2804 = vadd.f32 %v2800, %v2803
          %vm2805 = vweird.f32 %v2728
          %vm2806 = vweird.f32 %v2800
          %vm2807 = vmor %vm2805, %vm2806
          %v2808 = vsel %vm2807, %v2800, %v2804
          %v2809 = vand.u32 2147483647, %v2728
          %vm2810 = vcmp.eq.f32.partialorder %v2809, 8.507059e+37
          %v2811 = vand.u32 %v2728, 2147483648
          %v2812 = vor.u32 1.1754944e-38, %v2811
          %v2813 = vsel %vm2810, %v2812, %v2808
          %v2814 = vmul.f32 1.0, %v2813
          %v2815 = vrcp.pop %v2729
          %v2816 = vmul.f32 %v2729, %v2815
          %v2817 = vsub.f32 1.0, %v2816
          %v2818 = vmul.f32 %v2815, %v2817
          %v2819 = vadd.f32 %v2815, %v2818
          %vm2820 = vweird.f32 %v2729
          %vm2821 = vweird.f32 %v2815
          %vm2822 = vmor %vm2820, %vm2821
          %v2823 = vsel %vm2822, %v2815, %v2819
          %v2824 = vand.u32 2147483647, %v2729
          %vm2825 = vcmp.eq.f32.partialorder %v2824, 8.507059e+37
          %v2826 = vand.u32 %v2729, 2147483648
          %v2827 = vor.u32 1.1754944e-38, %v2826
          %v2828 = vsel %vm2825, %v2827, %v2823
          %v2829 = vmul.f32 1.0, %v2828
          %v2830 = vrcp.pop %v2730
          %v2831 = vmul.f32 %v2730, %v2830
          %v2832 = vsub.f32 1.0, %v2831
          %v2833 = vmul.f32 %v2830, %v2832
          %v2834 = vadd.f32 %v2830, %v2833
          %vm2835 = vweird.f32 %v2730
          %vm2836 = vweird.f32 %v2830
          %vm2837 = vmor %vm2835, %vm2836
          %v2838 = vsel %vm2837, %v2830, %v2834
          %v2839 = vand.u32 2147483647, %v2730
          %vm2840 = vcmp.eq.f32.partialorder %v2839, 8.507059e+37
          %v2841 = vand.u32 %v2730, 2147483648
          %v2842 = vor.u32 1.1754944e-38, %v2841
          %v2843 = vsel %vm2840, %v2842, %v2838
          %v2844 = vmul.f32 1.0, %v2843
          %v2845 = vrcp.pop %v2731
          %v2846 = vmul.f32 %v2731, %v2845
          %v2847 = vsub.f32 1.0, %v2846
          %v2848 = vmul.f32 %v2845, %v2847
          %v2849 = vadd.f32 %v2845, %v2848
          %vm2850 = vweird.f32 %v2731
          %vm2851 = vweird.f32 %v2845
          %vm2852 = vmor %vm2850, %vm2851
          %v2853 = vsel %vm2852, %v2845, %v2849
          %v2854 = vand.u32 2147483647, %v2731
          %vm2855 = vcmp.eq.f32.partialorder %v2854, 8.507059e+37
          %v2856 = vand.u32 %v2731, 2147483648
          %v2857 = vor.u32 1.1754944e-38, %v2856
          %v2858 = vsel %vm2855, %v2857, %v2853
          %v2859 = vmul.f32 1.0, %v2858
          %v2860 = vrcp.pop %v2732
          %v2861 = vmul.f32 %v2732, %v2860
          %v2862 = vsub.f32 1.0, %v2861
          %v2863 = vmul.f32 %v2860, %v2862
          %v2864 = vadd.f32 %v2860, %v2863
          %vm2865 = vweird.f32 %v2732
          %vm2866 = vweird.f32 %v2860
          %vm2867 = vmor %vm2865, %vm2866
          %v2868 = vsel %vm2867, %v2860, %v2864
          %v2869 = vand.u32 2147483647, %v2732
          %vm2870 = vcmp.eq.f32.partialorder %v2869, 8.507059e+37
          %v2871 = vand.u32 %v2732, 2147483648
          %v2872 = vor.u32 1.1754944e-38, %v2871
          %v2873 = vsel %vm2870, %v2872, %v2868
          %v2874 = vmul.f32 1.0, %v2873
          %v2875 = vrcp.pop %v2733
          %v2876 = vmul.f32 %v2733, %v2875
          %v2877 = vsub.f32 1.0, %v2876
          %v2878 = vmul.f32 %v2875, %v2877
          %v2879 = vadd.f32 %v2875, %v2878
          %vm2880 = vweird.f32 %v2733
          %vm2881 = vweird.f32 %v2875
          %vm2882 = vmor %vm2880, %vm2881
          %v2883 = vsel %vm2882, %v2875, %v2879
          %v2884 = vand.u32 2147483647, %v2733
          %vm2885 = vcmp.eq.f32.partialorder %v2884, 8.507059e+37
          %v2886 = vand.u32 %v2733, 2147483648
          %v2887 = vor.u32 1.1754944e-38, %v2886
          %v2888 = vsel %vm2885, %v2887, %v2883
          %v2889 = vmul.f32 1.0, %v2888
          %v2890 = vrcp.pop %v2734
          %v2891 = vmul.f32 %v2734, %v2890
          %v2892 = vsub.f32 1.0, %v2891
          %v2893 = vmul.f32 %v2890, %v2892
          %v2894 = vadd.f32 %v2890, %v2893
          %vm2895 = vweird.f32 %v2734
          %vm2896 = vweird.f32 %v2890
          %vm2897 = vmor %vm2895, %vm2896
          %v2898 = vsel %vm2897, %v2890, %v2894
          %v2899 = vand.u32 2147483647, %v2734
          %vm2900 = vcmp.eq.f32.partialorder %v2899, 8.507059e+37
          %v2901 = vand.u32 %v2734, 2147483648
          %v2902 = vor.u32 1.1754944e-38, %v2901
          %v2903 = vsel %vm2900, %v2902, %v2898
          %v2904 = vmul.f32 1.0, %v2903
          %v2905 = vrcp.pop %v2735
          %v2906 = vmul.f32 %v2735, %v2905
          %v2907 = vsub.f32 1.0, %v2906
          %v2908 = vmul.f32 %v2905, %v2907
          %v2909 = vadd.f32 %v2905, %v2908
          %vm2910 = vweird.f32 %v2735
          %vm2911 = vweird.f32 %v2905
          %vm2912 = vmor %vm2910, %vm2911
          %v2913 = vsel %vm2912, %v2905, %v2909
          %v2914 = vand.u32 2147483647, %v2735
          %vm2915 = vcmp.eq.f32.partialorder %v2914, 8.507059e+37
          %v2916 = vand.u32 %v2735, 2147483648
          %v2917 = vor.u32 1.1754944e-38, %v2916
          %v2918 = vsel %vm2915, %v2917, %v2913
          %v2919 = vmul.f32 1.0, %v2918
          %v2920 = vrcp.pop %v2736
          %v2921 = vmul.f32 %v2736, %v2920
          %v2922 = vsub.f32 1.0, %v2921
          %v2923 = vmul.f32 %v2920, %v2922
          %v2924 = vadd.f32 %v2920, %v2923
          %vm2925 = vweird.f32 %v2736
          %vm2926 = vweird.f32 %v2920
          %vm2927 = vmor %vm2925, %vm2926
          %v2928 = vsel %vm2927, %v2920, %v2924
          %v2929 = vand.u32 2147483647, %v2736
          %vm2930 = vcmp.eq.f32.partialorder %v2929, 8.507059e+37
          %v2931 = vand.u32 %v2736, 2147483648
          %v2932 = vor.u32 1.1754944e-38, %v2931
          %v2933 = vsel %vm2930, %v2932, %v2928
          %v2934 = vmul.f32 1.0, %v2933
          %v2935 = vrcp.pop %v2737
          %v2936 = vmul.f32 %v2737, %v2935
          %v2937 = vsub.f32 1.0, %v2936
          %v2938 = vmul.f32 %v2935, %v2937
          %v2939 = vadd.f32 %v2935, %v2938
          %vm2940 = vweird.f32 %v2737
          %vm2941 = vweird.f32 %v2935
          %vm2942 = vmor %vm2940, %vm2941
          %v2943 = vsel %vm2942, %v2935, %v2939
          %v2944 = vand.u32 2147483647, %v2737
          %vm2945 = vcmp.eq.f32.partialorder %v2944, 8.507059e+37
          %v2946 = vand.u32 %v2737, 2147483648
          %v2947 = vor.u32 1.1754944e-38, %v2946
          %v2948 = vsel %vm2945, %v2947, %v2943
          %v2949 = vmul.f32 1.0, %v2948
          %v2950 = vrcp.pop %v2738
          %v2951 = vmul.f32 %v2738, %v2950
          %v2952 = vsub.f32 1.0, %v2951
          %v2953 = vmul.f32 %v2950, %v2952
          %v2954 = vadd.f32 %v2950, %v2953
          %vm2955 = vweird.f32 %v2738
          %vm2956 = vweird.f32 %v2950
          %vm2957 = vmor %vm2955, %vm2956
          %v2958 = vsel %vm2957, %v2950, %v2954
          %v2959 = vand.u32 2147483647, %v2738
          %vm2960 = vcmp.eq.f32.partialorder %v2959, 8.507059e+37
          %v2961 = vand.u32 %v2738, 2147483648
          %v2962 = vor.u32 1.1754944e-38, %v2961
          %v2963 = vsel %vm2960, %v2962, %v2958
          %v2964 = vmul.f32 1.0, %v2963
          %v2965 = vrcp.pop %v2739
          %v2966 = vmul.f32 %v2739, %v2965
          %v2967 = vsub.f32 1.0, %v2966
          %v2968 = vmul.f32 %v2965, %v2967
          %v2969 = vadd.f32 %v2965, %v2968
          %vm2970 = vweird.f32 %v2739
          %vm2971 = vweird.f32 %v2965
          %vm2972 = vmor %vm2970, %vm2971
          %v2973 = vsel %vm2972, %v2965, %v2969
          %v2974 = vand.u32 2147483647, %v2739
          %vm2975 = vcmp.eq.f32.partialorder %v2974, 8.507059e+37
          %v2976 = vand.u32 %v2739, 2147483648
          %v2977 = vor.u32 1.1754944e-38, %v2976
          %v2978 = vsel %vm2975, %v2977, %v2973
          %v2979 = vmul.f32 1.0, %v2978
          %v2980 = vadd.f32 %v2142, %v2477
          %v2981 = vadd.f32 %v2143, %v2480
          %v2982 = vadd.f32 %v2144, %v2483
          %v2983 = vadd.f32 %v2145, %v2486
          %v2984 = vadd.f32 %v2146, %v2489
          %v2985 = vadd.f32 %v2147, %v2492
          %v2986 = vadd.f32 %v2148, %v2495
          %v2987 = vadd.f32 %v2149, %v2498
          %v2988 = vadd.f32 %v2150, %v2501
          %v2989 = vadd.f32 %v2151, %v2504
          %v2990 = vadd.f32 %v2152, %v2507
          %v2991 = vadd.f32 %v2153, %v2510
          %v2992 = vadd.f32 %v2154, %v2513
          %v2993 = vadd.f32 %v2155, %v2516
          %v2994 = vadd.f32 %v2156, %v2519
          %v2995 = vadd.f32 %v2157, %v2522
          %v2996 = vxor.u32 %v2980, 2147483648
          %v2997 = vxor.u32 %v2981, 2147483648
          %v2998 = vxor.u32 %v2982, 2147483648
          %v2999 = vxor.u32 %v2983, 2147483648
          %v3000 = vxor.u32 %v2984, 2147483648
          %v3001 = vxor.u32 %v2985, 2147483648
          %v3002 = vxor.u32 %v2986, 2147483648
          %v3003 = vxor.u32 %v2987, 2147483648
          %v3004 = vxor.u32 %v2988, 2147483648
          %v3005 = vxor.u32 %v2989, 2147483648
          %v3006 = vxor.u32 %v2990, 2147483648
          %v3007 = vxor.u32 %v2991, 2147483648
          %v3008 = vxor.u32 %v2992, 2147483648
          %v3009 = vxor.u32 %v2993, 2147483648
          %v3010 = vxor.u32 %v2994, 2147483648
          %v3011 = vxor.u32 %v2995, 2147483648
          %v3012 = vmul.f32 %v2996, 1.442695
          %v3013 = vpow.pop %v3012
          %v3014 = vmul.f32 %v2997, 1.442695
          %v3015 = vpow.pop %v3014
          %v3016 = vmul.f32 %v2998, 1.442695
          %v3017 = vpow.pop %v3016
          %v3018 = vmul.f32 %v2999, 1.442695
          %v3019 = vpow.pop %v3018
          %v3020 = vmul.f32 %v3000, 1.442695
          %v3021 = vpow.pop %v3020
          %v3022 = vmul.f32 %v3001, 1.442695
          %v3023 = vpow.pop %v3022
          %v3024 = vmul.f32 %v3002, 1.442695
          %v3025 = vpow.pop %v3024
          %v3026 = vmul.f32 %v3003, 1.442695
          %v3027 = vpow.pop %v3026
          %v3028 = vmul.f32 %v3004, 1.442695
          %v3029 = vpow.pop %v3028
          %v3030 = vmul.f32 %v3005, 1.442695
          %v3031 = vpow.pop %v3030
          %v3032 = vmul.f32 %v3006, 1.442695
          %v3033 = vpow.pop %v3032
          %v3034 = vmul.f32 %v3007, 1.442695
          %v3035 = vpow.pop %v3034
          %v3036 = vmul.f32 %v3008, 1.442695
          %v3037 = vpow.pop %v3036
          %v3038 = vmul.f32 %v3009, 1.442695
          %v3039 = vpow.pop %v3038
          %v3040 = vmul.f32 %v3010, 1.442695
          %v3041 = vpow.pop %v3040
          %v3042 = vmul.f32 %v3011, 1.442695
          %v3043 = vpow.pop %v3042
          %v3044 = vadd.f32 %v3013, 1.0
          %v3045 = vadd.f32 %v3015, 1.0
          %v3046 = vadd.f32 %v3017, 1.0
          %v3047 = vadd.f32 %v3019, 1.0
          %v3048 = vadd.f32 %v3021, 1.0
          %v3049 = vadd.f32 %v3023, 1.0
          %v3050 = vadd.f32 %v3025, 1.0
          %v3051 = vadd.f32 %v3027, 1.0
          %v3052 = vadd.f32 %v3029, 1.0
          %v3053 = vadd.f32 %v3031, 1.0
          %v3054 = vadd.f32 %v3033, 1.0
          %v3055 = vadd.f32 %v3035, 1.0
          %v3056 = vadd.f32 %v3037, 1.0
          %v3057 = vadd.f32 %v3039, 1.0
          %v3058 = vadd.f32 %v3041, 1.0
          %v3059 = vadd.f32 %v3043, 1.0
          %v3060 = vrcp.pop %v3044
          %v3061 = vmul.f32 %v3044, %v3060
          %v3062 = vsub.f32 1.0, %v3061
          %v3063 = vmul.f32 %v3060, %v3062
          %v3064 = vadd.f32 %v3060, %v3063
          %vm3065 = vweird.f32 %v3044
          %vm3066 = vweird.f32 %v3060
          %vm3067 = vmor %vm3065, %vm3066
          %v3068 = vsel %vm3067, %v3060, %v3064
          %v3069 = vand.u32 2147483647, %v3044
          %vm3070 = vcmp.eq.f32.partialorder %v3069, 8.507059e+37
          %v3071 = vand.u32 %v3044, 2147483648
          %v3072 = vor.u32 1.1754944e-38, %v3071
          %v3073 = vsel %vm3070, %v3072, %v3068
          %v3074 = vmul.f32 1.0, %v3073
          %v3075 = vrcp.pop %v3045
          %v3076 = vmul.f32 %v3045, %v3075
          %v3077 = vsub.f32 1.0, %v3076
          %v3078 = vmul.f32 %v3075, %v3077
          %v3079 = vadd.f32 %v3075, %v3078
          %vm3080 = vweird.f32 %v3045
          %vm3081 = vweird.f32 %v3075
          %vm3082 = vmor %vm3080, %vm3081
          %v3083 = vsel %vm3082, %v3075, %v3079
          %v3084 = vand.u32 2147483647, %v3045
          %vm3085 = vcmp.eq.f32.partialorder %v3084, 8.507059e+37
          %v3086 = vand.u32 %v3045, 2147483648
          %v3087 = vor.u32 1.1754944e-38, %v3086
          %v3088 = vsel %vm3085, %v3087, %v3083
          %v3089 = vmul.f32 1.0, %v3088
          %v3090 = vrcp.pop %v3046
          %v3091 = vmul.f32 %v3046, %v3090
          %v3092 = vsub.f32 1.0, %v3091
          %v3093 = vmul.f32 %v3090, %v3092
          %v3094 = vadd.f32 %v3090, %v3093
          %vm3095 = vweird.f32 %v3046
          %vm3096 = vweird.f32 %v3090
          %vm3097 = vmor %vm3095, %vm3096
          %v3098 = vsel %vm3097, %v3090, %v3094
          %v3099 = vand.u32 2147483647, %v3046
          %vm3100 = vcmp.eq.f32.partialorder %v3099, 8.507059e+37
          %v3101 = vand.u32 %v3046, 2147483648
          %v3102 = vor.u32 1.1754944e-38, %v3101
          %v3103 = vsel %vm3100, %v3102, %v3098
          %v3104 = vmul.f32 1.0, %v3103
          %v3105 = vrcp.pop %v3047
          %v3106 = vmul.f32 %v3047, %v3105
          %v3107 = vsub.f32 1.0, %v3106
          %v3108 = vmul.f32 %v3105, %v3107
          %v3109 = vadd.f32 %v3105, %v3108
          %vm3110 = vweird.f32 %v3047
          %vm3111 = vweird.f32 %v3105
          %vm3112 = vmor %vm3110, %vm3111
          %v3113 = vsel %vm3112, %v3105, %v3109
          %v3114 = vand.u32 2147483647, %v3047
          %vm3115 = vcmp.eq.f32.partialorder %v3114, 8.507059e+37
          %v3116 = vand.u32 %v3047, 2147483648
          %v3117 = vor.u32 1.1754944e-38, %v3116
          %v3118 = vsel %vm3115, %v3117, %v3113
          %v3119 = vmul.f32 1.0, %v3118
          %v3120 = vrcp.pop %v3048
          %v3121 = vmul.f32 %v3048, %v3120
          %v3122 = vsub.f32 1.0, %v3121
          %v3123 = vmul.f32 %v3120, %v3122
          %v3124 = vadd.f32 %v3120, %v3123
          %vm3125 = vweird.f32 %v3048
          %vm3126 = vweird.f32 %v3120
          %vm3127 = vmor %vm3125, %vm3126
          %v3128 = vsel %vm3127, %v3120, %v3124
          %v3129 = vand.u32 2147483647, %v3048
          %vm3130 = vcmp.eq.f32.partialorder %v3129, 8.507059e+37
          %v3131 = vand.u32 %v3048, 2147483648
          %v3132 = vor.u32 1.1754944e-38, %v3131
          %v3133 = vsel %vm3130, %v3132, %v3128
          %v3134 = vmul.f32 1.0, %v3133
          %v3135 = vrcp.pop %v3049
          %v3136 = vmul.f32 %v3049, %v3135
          %v3137 = vsub.f32 1.0, %v3136
          %v3138 = vmul.f32 %v3135, %v3137
          %v3139 = vadd.f32 %v3135, %v3138
          %vm3140 = vweird.f32 %v3049
          %vm3141 = vweird.f32 %v3135
          %vm3142 = vmor %vm3140, %vm3141
          %v3143 = vsel %vm3142, %v3135, %v3139
          %v3144 = vand.u32 2147483647, %v3049
          %vm3145 = vcmp.eq.f32.partialorder %v3144, 8.507059e+37
          %v3146 = vand.u32 %v3049, 2147483648
          %v3147 = vor.u32 1.1754944e-38, %v3146
          %v3148 = vsel %vm3145, %v3147, %v3143
          %v3149 = vmul.f32 1.0, %v3148
          %v3150 = vrcp.pop %v3050
          %v3151 = vmul.f32 %v3050, %v3150
          %v3152 = vsub.f32 1.0, %v3151
          %v3153 = vmul.f32 %v3150, %v3152
          %v3154 = vadd.f32 %v3150, %v3153
          %vm3155 = vweird.f32 %v3050
          %vm3156 = vweird.f32 %v3150
          %vm3157 = vmor %vm3155, %vm3156
          %v3158 = vsel %vm3157, %v3150, %v3154
          %v3159 = vand.u32 2147483647, %v3050
          %vm3160 = vcmp.eq.f32.partialorder %v3159, 8.507059e+37
          %v3161 = vand.u32 %v3050, 2147483648
          %v3162 = vor.u32 1.1754944e-38, %v3161
          %v3163 = vsel %vm3160, %v3162, %v3158
          %v3164 = vmul.f32 1.0, %v3163
          %v3165 = vrcp.pop %v3051
          %v3166 = vmul.f32 %v3051, %v3165
          %v3167 = vsub.f32 1.0, %v3166
          %v3168 = vmul.f32 %v3165, %v3167
          %v3169 = vadd.f32 %v3165, %v3168
          %vm3170 = vweird.f32 %v3051
          %vm3171 = vweird.f32 %v3165
          %vm3172 = vmor %vm3170, %vm3171
          %v3173 = vsel %vm3172, %v3165, %v3169
          %v3174 = vand.u32 2147483647, %v3051
          %vm3175 = vcmp.eq.f32.partialorder %v3174, 8.507059e+37
          %v3176 = vand.u32 %v3051, 2147483648
          %v3177 = vor.u32 1.1754944e-38, %v3176
          %v3178 = vsel %vm3175, %v3177, %v3173
          %v3179 = vmul.f32 1.0, %v3178
          %v3180 = vrcp.pop %v3052
          %v3181 = vmul.f32 %v3052, %v3180
          %v3182 = vsub.f32 1.0, %v3181
          %v3183 = vmul.f32 %v3180, %v3182
          %v3184 = vadd.f32 %v3180, %v3183
          %vm3185 = vweird.f32 %v3052
          %vm3186 = vweird.f32 %v3180
          %vm3187 = vmor %vm3185, %vm3186
          %v3188 = vsel %vm3187, %v3180, %v3184
          %v3189 = vand.u32 2147483647, %v3052
          %vm3190 = vcmp.eq.f32.partialorder %v3189, 8.507059e+37
          %v3191 = vand.u32 %v3052, 2147483648
          %v3192 = vor.u32 1.1754944e-38, %v3191
          %v3193 = vsel %vm3190, %v3192, %v3188
          %v3194 = vmul.f32 1.0, %v3193
          %v3195 = vrcp.pop %v3053
          %v3196 = vmul.f32 %v3053, %v3195
          %v3197 = vsub.f32 1.0, %v3196
          %v3198 = vmul.f32 %v3195, %v3197
          %v3199 = vadd.f32 %v3195, %v3198
          %vm3200 = vweird.f32 %v3053
          %vm3201 = vweird.f32 %v3195
          %vm3202 = vmor %vm3200, %vm3201
          %v3203 = vsel %vm3202, %v3195, %v3199
          %v3204 = vand.u32 2147483647, %v3053
          %vm3205 = vcmp.eq.f32.partialorder %v3204, 8.507059e+37
          %v3206 = vand.u32 %v3053, 2147483648
          %v3207 = vor.u32 1.1754944e-38, %v3206
          %v3208 = vsel %vm3205, %v3207, %v3203
          %v3209 = vmul.f32 1.0, %v3208
          %v3210 = vrcp.pop %v3054
          %v3211 = vmul.f32 %v3054, %v3210
          %v3212 = vsub.f32 1.0, %v3211
          %v3213 = vmul.f32 %v3210, %v3212
          %v3214 = vadd.f32 %v3210, %v3213
          %vm3215 = vweird.f32 %v3054
          %vm3216 = vweird.f32 %v3210
          %vm3217 = vmor %vm3215, %vm3216
          %v3218 = vsel %vm3217, %v3210, %v3214
          %v3219 = vand.u32 2147483647, %v3054
          %vm3220 = vcmp.eq.f32.partialorder %v3219, 8.507059e+37
          %v3221 = vand.u32 %v3054, 2147483648
          %v3222 = vor.u32 1.1754944e-38, %v3221
          %v3223 = vsel %vm3220, %v3222, %v3218
          %v3224 = vmul.f32 1.0, %v3223
          %v3225 = vrcp.pop %v3055
          %v3226 = vmul.f32 %v3055, %v3225
          %v3227 = vsub.f32 1.0, %v3226
          %v3228 = vmul.f32 %v3225, %v3227
          %v3229 = vadd.f32 %v3225, %v3228
          %vm3230 = vweird.f32 %v3055
          %vm3231 = vweird.f32 %v3225
          %vm3232 = vmor %vm3230, %vm3231
          %v3233 = vsel %vm3232, %v3225, %v3229
          %v3234 = vand.u32 2147483647, %v3055
          %vm3235 = vcmp.eq.f32.partialorder %v3234, 8.507059e+37
          %v3236 = vand.u32 %v3055, 2147483648
          %v3237 = vor.u32 1.1754944e-38, %v3236
          %v3238 = vsel %vm3235, %v3237, %v3233
          %v3239 = vmul.f32 1.0, %v3238
          %v3240 = vrcp.pop %v3056
          %v3241 = vmul.f32 %v3056, %v3240
          %v3242 = vsub.f32 1.0, %v3241
          %v3243 = vmul.f32 %v3240, %v3242
          %v3244 = vadd.f32 %v3240, %v3243
          %vm3245 = vweird.f32 %v3056
          %vm3246 = vweird.f32 %v3240
          %vm3247 = vmor %vm3245, %vm3246
          %v3248 = vsel %vm3247, %v3240, %v3244
          %v3249 = vand.u32 2147483647, %v3056
          %vm3250 = vcmp.eq.f32.partialorder %v3249, 8.507059e+37
          %v3251 = vand.u32 %v3056, 2147483648
          %v3252 = vor.u32 1.1754944e-38, %v3251
          %v3253 = vsel %vm3250, %v3252, %v3248
          %v3254 = vmul.f32 1.0, %v3253
          %v3255 = vrcp.pop %v3057
          %v3256 = vmul.f32 %v3057, %v3255
          %v3257 = vsub.f32 1.0, %v3256
          %v3258 = vmul.f32 %v3255, %v3257
          %v3259 = vadd.f32 %v3255, %v3258
          %vm3260 = vweird.f32 %v3057
          %vm3261 = vweird.f32 %v3255
          %vm3262 = vmor %vm3260, %vm3261
          %v3263 = vsel %vm3262, %v3255, %v3259
          %v3264 = vand.u32 2147483647, %v3057
          %vm3265 = vcmp.eq.f32.partialorder %v3264, 8.507059e+37
          %v3266 = vand.u32 %v3057, 2147483648
          %v3267 = vor.u32 1.1754944e-38, %v3266
          %v3268 = vsel %vm3265, %v3267, %v3263
          %v3269 = vmul.f32 1.0, %v3268
          %v3270 = vrcp.pop %v3058
          %v3271 = vmul.f32 %v3058, %v3270
          %v3272 = vsub.f32 1.0, %v3271
          %v3273 = vmul.f32 %v3270, %v3272
          %v3274 = vadd.f32 %v3270, %v3273
          %vm3275 = vweird.f32 %v3058
          %vm3276 = vweird.f32 %v3270
          %vm3277 = vmor %vm3275, %vm3276
          %v3278 = vsel %vm3277, %v3270, %v3274
          %v3279 = vand.u32 2147483647, %v3058
          %vm3280 = vcmp.eq.f32.partialorder %v3279, 8.507059e+37
          %v3281 = vand.u32 %v3058, 2147483648
          %v3282 = vor.u32 1.1754944e-38, %v3281
          %v3283 = vsel %vm3280, %v3282, %v3278
          %v3284 = vmul.f32 1.0, %v3283
          %v3285 = vrcp.pop %v3059
          %v3286 = vmul.f32 %v3059, %v3285
          %v3287 = vsub.f32 1.0, %v3286
          %v3288 = vmul.f32 %v3285, %v3287
          %v3289 = vadd.f32 %v3285, %v3288
          %vm3290 = vweird.f32 %v3059
          %vm3291 = vweird.f32 %v3285
          %vm3292 = vmor %vm3290, %vm3291
          %v3293 = vsel %vm3292, %v3285, %v3289
          %v3294 = vand.u32 2147483647, %v3059
          %vm3295 = vcmp.eq.f32.partialorder %v3294, 8.507059e+37
          %v3296 = vand.u32 %v3059, 2147483648
          %v3297 = vor.u32 1.1754944e-38, %v3296
          %v3298 = vsel %vm3295, %v3297, %v3293
          %v3299 = vmul.f32 1.0, %v3298
          %v3300 = vmul.f32 %v3074, %v2613
          %v3301 = vmul.f32 %v3089, %v2616
          %v3302 = vmul.f32 %v3104, %v2619
          %v3303 = vmul.f32 %v3119, %v2622
          %v3304 = vmul.f32 %v3134, %v2625
          %v3305 = vmul.f32 %v3149, %v2628
          %v3306 = vmul.f32 %v3164, %v2631
          %v3307 = vmul.f32 %v3179, %v2634
          %v3308 = vmul.f32 %v3194, %v2637
          %v3309 = vmul.f32 %v3209, %v2640
          %v3310 = vmul.f32 %v3224, %v2643
          %v3311 = vmul.f32 %v3239, %v2646
          %v3312 = vmul.f32 %v3254, %v2649
          %v3313 = vmul.f32 %v3269, %v2652
          %v3314 = vmul.f32 %v3284, %v2655
          %v3315 = vmul.f32 %v3299, %v2658
          %v3316 = vadd.f32 %v2440, %v3300
          %v3317 = vadd.f32 %v2441, %v3301
          %v3318 = vadd.f32 %v2442, %v3302
          %v3319 = vadd.f32 %v2443, %v3303
          %v3320 = vadd.f32 %v2444, %v3304
          %v3321 = vadd.f32 %v2445, %v3305
          %v3322 = vadd.f32 %v2446, %v3306
          %v3323 = vadd.f32 %v2447, %v3307
          %v3324 = vadd.f32 %v2448, %v3308
          %v3325 = vadd.f32 %v2449, %v3309
          %v3326 = vadd.f32 %v2450, %v3310
          %v3327 = vadd.f32 %v2451, %v3311
          %v3328 = vadd.f32 %v2452, %v3312
          %v3329 = vadd.f32 %v2453, %v3313
          %v3330 = vadd.f32 %v2454, %v3314
          %v3331 = vadd.f32 %v2455, %v3315
          %v3332 = vtanh.pop %v3316
          %v3333 = vtanh.pop %v3317
          %v3334 = vtanh.pop %v3318
          %v3335 = vtanh.pop %v3319
          %v3336 = vtanh.pop %v3320
          %v3337 = vtanh.pop %v3321
          %v3338 = vtanh.pop %v3322
          %v3339 = vtanh.pop %v3323
          %v3340 = vtanh.pop %v3324
          %v3341 = vtanh.pop %v3325
          %v3342 = vtanh.pop %v3326
          %v3343 = vtanh.pop %v3327
          %v3344 = vtanh.pop %v3328
          %v3345 = vtanh.pop %v3329
          %v3346 = vtanh.pop %v3330
          %v3347 = vtanh.pop %v3331
          %v3348 = vsub.f32 %v937, %v3332
          %v3349 = vsub.f32 %v938, %v3333
          %v3350 = vsub.f32 %v939, %v3334
          %v3351 = vsub.f32 %v940, %v3335
          %v3352 = vsub.f32 %v941, %v3336
          %v3353 = vsub.f32 %v942, %v3337
          %v3354 = vsub.f32 %v943, %v3338
          %v3355 = vsub.f32 %v944, %v3339
          %v3356 = vsub.f32 %v945, %v3340
          %v3357 = vsub.f32 %v946, %v3341
          %v3358 = vsub.f32 %v947, %v3342
          %v3359 = vsub.f32 %v948, %v3343
          %v3360 = vsub.f32 %v949, %v3344
          %v3361 = vsub.f32 %v950, %v3345
          %v3362 = vsub.f32 %v951, %v3346
          %v3363 = vsub.f32 %v952, %v3347
          %v3364 = vmul.f32 %v3348, %v2754
          %v3365 = vmul.f32 %v3349, %v2769
          %v3366 = vmul.f32 %v3350, %v2784
          %v3367 = vmul.f32 %v3351, %v2799
          %v3368 = vmul.f32 %v3352, %v2814
          %v3369 = vmul.f32 %v3353, %v2829
          %v3370 = vmul.f32 %v3354, %v2844
          %v3371 = vmul.f32 %v3355, %v2859
          %v3372 = vmul.f32 %v3356, %v2874
          %v3373 = vmul.f32 %v3357, %v2889
          %v3374 = vmul.f32 %v3358, %v2904
          %v3375 = vmul.f32 %v3359, %v2919
          %v3376 = vmul.f32 %v3360, %v2934
          %v3377 = vmul.f32 %v3361, %v2949
          %v3378 = vmul.f32 %v3362, %v2964
          %v3379 = vmul.f32 %v3363, %v2979
          %v3380 = vadd.f32 %v3364, %v3332
          %v3381 = vadd.f32 %v3365, %v3333
          %v3382 = vadd.f32 %v3366, %v3334
          %v3383 = vadd.f32 %v3367, %v3335
          %v3384 = vadd.f32 %v3368, %v3336
          %v3385 = vadd.f32 %v3369, %v3337
          %v3386 = vadd.f32 %v3370, %v3338
          %v3387 = vadd.f32 %v3371, %v3339
          %v3388 = vadd.f32 %v3372, %v3340
          %v3389 = vadd.f32 %v3373, %v3341
          %v3390 = vadd.f32 %v3374, %v3342
          %v3391 = vadd.f32 %v3375, %v3343
          %v3392 = vadd.f32 %v3376, %v3344
          %v3393 = vadd.f32 %v3377, %v3345
          %v3394 = vadd.f32 %v3378, %v3346
          %v3395 = vadd.f32 %v3379, %v3347
        $region133: #{tpu_custom_call.1} parent=115 // loop_footer
          %s936 = sadd.s32 1, %s932
        $region134: #{tpu_custom_call.1} parent=115 // loop_footer_branch
          %931 = sbr.rel target = $region130
        $region135: #{tpu_custom_call.1} parent=115 // loop_exit
          _
        %vm3396 = vcmask 261120
        %3397 = vst.msk [vmem:[%s809] sm:$0xff] %vm3396, %v937
        %3398 = vst.msk [vmem:[%s809 + $0x8] sm:$0xff] %vm3396, %v938
        %3399 = vst.msk [vmem:[%s809 + $0x10] sm:$0xff] %vm3396, %v939
        %3400 = vst.msk [vmem:[%s809 + $0x18] sm:$0xff] %vm3396, %v940
        %3401 = vst.msk [vmem:[%s809 + $0x20] sm:$0xff] %vm3396, %v941
        %3402 = vst.msk [vmem:[%s809 + $0x28] sm:$0xff] %vm3396, %v942
        %3403 = vst.msk [vmem:[%s809 + $0x30] sm:$0xff] %vm3396, %v943
        %3404 = vst.msk [vmem:[%s809 + $0x38] sm:$0xff] %vm3396, %v944
        %3405 = vst.msk [vmem:[%s809 + $0x40] sm:$0xff] %vm3396, %v945
        %3406 = vst.msk [vmem:[%s809 + $0x48] sm:$0xff] %vm3396, %v946
        %3407 = vst.msk [vmem:[%s809 + $0x50] sm:$0xff] %vm3396, %v947
        %3408 = vst.msk [vmem:[%s809 + $0x58] sm:$0xff] %vm3396, %v948
        %3409 = vst.msk [vmem:[%s809 + $0x60] sm:$0xff] %vm3396, %v949
        %3410 = vst.msk [vmem:[%s809 + $0x68] sm:$0xff] %vm3396, %v950
        %3411 = vst.msk [vmem:[%s809 + $0x70] sm:$0xff] %vm3396, %v951
        %3412 = vst.msk [vmem:[%s809 + $0x78] sm:$0xff] %vm3396, %v952
        %s3413 = sand.u32 %s567, 1
        %s3414 = scalar_lea.sflag [#allocation4], %s3413
        %s3415 = sand.u32 %s567, 1
        %s3416 = smul.addr %s3415, 128
        %s3417 = scalar_lea.vmem [#allocation8], %s3416
        // Predicated region
        $region136: #{tpu_custom_call.1} parent=115 // pred_check
          %p3418 = pneg %p577
        $region137: #{tpu_custom_call.1} parent=115 // pred_check_branch
          %3420 = sbr.rel (%p3418) target = $region139
        $region138: #{tpu_custom_call.1} parent=115 // pred_region
          %s3421 = smul.u32 16, %s40
          %3423 = vsyncadd %s3414, 0
          %s3424 = smul.addr %s3421, 8
          %s3425 = scalar_lea.hbm %s24, %s3424
          %s3426 = sshll.u32 %s3417, 4
          %s3427 = int_to_ptr.vmem [resolvable:$true] %s3426
          %s3428 = sshll.u32 %s3425, 4
          %s3429 = int_to_ptr.hbm [resolvable:$true] %s3428
          %3434 = dma.vmem_to_hbm [thread:$0]  %s3427, 2048, %s3429, %s3414, 128, 128, 8
        $region139: #{tpu_custom_call.1} parent=115 // pred_fallthru
          _
      $region116: #{tpu_custom_call.1} parent=5 // pred_fallthru
        _
      %p3435 = scmp.le.s32.totalorder 2, %s35
      // Predicated region
      $region140: #{tpu_custom_call.1} parent=5 // pred_check
        %p3436 = pneg %p3435
      $region141: #{tpu_custom_call.1} parent=5 // pred_check_branch
        %3438 = sbr.rel (%p3436) target = $region143
      $region142: #{tpu_custom_call.1} parent=5 // pred_region
        %s3439 = ssub.s32 %s35, 2
        // Predicated region
        $region144: #{tpu_custom_call.1} parent=142 // pred_check
          %p3440 = pneg %p583
        $region145: #{tpu_custom_call.1} parent=142 // pred_check_branch
          %3442 = sbr.rel (%p3440) target = $region147
        $region146: #{tpu_custom_call.1} parent=142 // pred_region
          %s3443 = sand.u32 %s568, 1
          %s3444 = scalar_lea.sflag [#allocation4], %s3443
          %s3445 = sand.u32 %s568, 1
          %s3446 = smul.addr %s3445, 128
          %s3447 = scalar_lea.vmem [#allocation8], %s3446
          %3449 = dma.done %s3444, 2048
        $region147: #{tpu_custom_call.1} parent=142 // pred_fallthru
          _
      $region143: #{tpu_custom_call.1} parent=5 // pred_fallthru
        _
    $region6: #{tpu_custom_call.1} parent=1 // loop_footer
      %s39 = sadd.s32 1, %s35
    $region7: #{tpu_custom_call.1} parent=1 // loop_footer_branch
      %34 = sbr.rel target = $region3
    $region8: #{tpu_custom_call.1} parent=1 // loop_exit
      _
    %3450 = vsyncpa [#allocation3], 1
    %s3451 = scalar_lea.sflag [#allocation3], 1
    %3452 = vsyncpa %s3451, 1
    %3453 = vsyncpa [#allocation6], 1
    %3454 = vsyncpa [#allocation4], 1
    %s3455 = scalar_lea.sflag [#allocation4], 1
    %3456 = vsyncpa %s3455, 1

</llo_original>
